<compile_context>
chip_gen: v7x
topology: tpu7x:2x2x1
jax: 0.10.0
libtpu: 0.0.40
codegen_flags: <defaults>
</compile_context>

<pallas_src>
import functools

import jax
import jax.numpy as jnp
from jax.experimental import pallas as pl
from jax.experimental.pallas import tpu as pltpu

NHEAD = 4          # Role_Embedding hard-codes nhead=4
LN_EPS = 1e-5      # nn.LayerNorm / TransformerEncoderLayer default eps


def _layer_norm(x, gamma, beta, eps=LN_EPS):
    mean = jnp.mean(x, axis=-1, keepdims=True)
    centered = x - mean
    var = jnp.mean(centered * centered, axis=-1, keepdims=True)
    return centered * jax.lax.rsqrt(var + eps) * gamma + beta


def role_embedding_kernel(
    x_ref,
    wq_ref, bq_ref, wk_ref, bk_ref, wv_ref, bv_ref, wo_ref, bo_ref,
    g1_ref, be1_ref,
    wf1_ref, bf1_ref, wf2_ref, bf2_ref,
    g2_ref, be2_ref,
    wr_ref, br_ref,
    g3_ref, be3_ref,
    out_ref,
    *, use_ln: bool,
):
    x = x_ref[0]                       # [N, D]  (one batch element per grid step)
    n, d = x.shape
    hd = d // NHEAD
    scale = 1.0 / (hd ** 0.5)

    # --- multi-head self-attention (q = k = v = x, no mask) ---
    q = jnp.dot(x, wq_ref[...], preferred_element_type=jnp.float32) + bq_ref[...]
    k = jnp.dot(x, wk_ref[...], preferred_element_type=jnp.float32) + bk_ref[...]
    v = jnp.dot(x, wv_ref[...], preferred_element_type=jnp.float32) + bv_ref[...]

    ctx_heads = []
    for h in range(NHEAD):             # static head loop, static lane slices
        sl = slice(h * hd, (h + 1) * hd)
        qh, kh, vh = q[:, sl], k[:, sl], v[:, sl]
        s = jnp.dot(qh, kh.T, preferred_element_type=jnp.float32) * scale   # [N, N]
        s = s - jnp.max(s, axis=-1, keepdims=True)
        p = jnp.exp(s)
        p = p / jnp.sum(p, axis=-1, keepdims=True)
        ctx_heads.append(jnp.dot(p, vh, preferred_element_type=jnp.float32))
    ctx = jnp.concatenate(ctx_heads, axis=-1)                               # [N, D]

    attn_out = jnp.dot(ctx, wo_ref[...], preferred_element_type=jnp.float32) + bo_ref[...]
    x1 = _layer_norm(x + attn_out, g1_ref[...], be1_ref[...])               # norm1 (post-norm)

    # --- feed-forward block ---
    h1 = jnp.maximum(
        jnp.dot(x1, wf1_ref[...], preferred_element_type=jnp.float32) + bf1_ref[...], 0.0)
    ff = jnp.dot(h1, wf2_ref[...], preferred_element_type=jnp.float32) + bf2_ref[...]
    x2 = _layer_norm(x1 + ff, g2_ref[...], be2_ref[...])                    # norm2

    # --- role head: Linear (+ optional LayerNorm) + sigmoid ---
    role = jnp.dot(x2, wr_ref[...], preferred_element_type=jnp.float32) + br_ref[...]
    if use_ln:
        role = _layer_norm(role, g3_ref[...], be3_ref[...])

    out = 1.0 / (1.0 + jnp.exp(-role))                                      # sigmoid
    out_ref[0] = out.astype(out_ref.dtype)


_WEIGHT_NAMES = ("wq", "bq", "wk", "bk", "wv", "bv", "wo", "bo",
                 "g1", "be1", "wf1", "bf1", "wf2", "bf2",
                 "g2", "be2", "wr", "br", "g3", "be3")


def role_embedding_forward(x, params, *, use_ln=True):
    """x: [B, N, D] or [N, D]. Returns sigmoid(role_embedding), shape [B, N, R] (or [N, R])."""
    squeeze = False
    if x.ndim == 2:                    # mirrors the unsqueeze/squeeze branch in forward()
        x = x[None]
        squeeze = True
    B, N, D = x.shape
    R = params["wr"].shape[1]
    F = params["wf1"].shape[1]
    weights = [params[name] for name in _WEIGHT_NAMES]

    # Weights/biases: full-shape blocks with constant index_map -> VMEM-resident across grid.
    def const_spec(arr):
        return pl.BlockSpec(arr.shape, lambda b: (0, 0))

    x_spec = pl.BlockSpec((1, N, D), lambda b: (b, 0, 0))
    out_spec = pl.BlockSpec((1, N, R), lambda b: (b, 0, 0))

    flops = 2 * B * N * (4 * D * D + 2 * N * D + 2 * D * F + D * R)
    transcendentals = B * (NHEAD * N * N + N * R)
    bytes_accessed = 4 * (x.size + B * N * R + sum(int(w.size) for w in weights))

    kernel = functools.partial(role_embedding_kernel, use_ln=use_ln)

    out = pl.pallas_call(
        kernel,
        out_shape=jax.ShapeDtypeStruct((B, N, R), jnp.float32),
        grid=(B,),
        in_specs=[x_spec] + [const_spec(w) for w in weights],
        out_specs=out_spec,
        compiler_params=pltpu.CompilerParams(dimension_semantics=("parallel",)),
        cost_estimate=pl.CostEstimate(
            flops=flops, transcendentals=transcendentals, bytes_accessed=bytes_accessed),
    )(x, *weights)

    if squeeze:
        out = out[0]
    return out


def init_params(key, d_model, dim_ff, role_dim):
    keys = jax.random.split(key, 13)

    def lin(k, fan_in, fan_out):
        kw, kb = jax.random.split(k)
        bound = 1.0 / (fan_in ** 0.5)
        w = jax.random.uniform(kw, (fan_in, fan_out), jnp.float32, -bound, bound)
        b = jax.random.uniform(kb, (1, fan_out), jnp.float32, -bound, bound)
        return w, b

    p = {}
    p["wq"], p["bq"] = lin(keys[0], d_model, d_model)
    p["wk"], p["bk"] = lin(keys[1], d_model, d_model)
    p["wv"], p["bv"] = lin(keys[2], d_model, d_model)
    p["wo"], p["bo"] = lin(keys[3], d_model, d_model)
    p["g1"] = 1.0 + 0.1 * jax.random.normal(keys[4], (1, d_model), jnp.float32)
    p["be1"] = 0.1 * jax.random.normal(keys[5], (1, d_model), jnp.float32)
    p["wf1"], p["bf1"] = lin(keys[6], d_model, dim_ff)
    p["wf2"], p["bf2"] = lin(keys[7], dim_ff, d_model)
    p["g2"] = 1.0 + 0.1 * jax.random.normal(keys[8], (1, d_model), jnp.float32)
    p["be2"] = 0.1 * jax.random.normal(keys[9], (1, d_model), jnp.float32)
    p["wr"], p["br"] = lin(keys[10], d_model, role_dim)
    p["g3"] = 1.0 + 0.1 * jax.random.normal(keys[11], (1, role_dim), jnp.float32)
    p["be3"] = 0.1 * jax.random.normal(keys[12], (1, role_dim), jnp.float32)
    return p


def reference_forward(x, p, *, use_ln=True):
    """Pure-JAX mirror of PyTorch nn.TransformerEncoderLayer (post-norm, relu, dropout=0)
    + Linear (+ LayerNorm) + sigmoid."""
    hi = jax.lax.Precision.HIGHEST
    dot = functools.partial(jnp.matmul, precision=hi)

    def ln(t, g, b):
        m = jnp.mean(t, axis=-1, keepdims=True)
        v = jnp.mean((t - m) ** 2, axis=-1, keepdims=True)
        return (t - m) / jnp.sqrt(v + LN_EPS) * g + b

    B, N, D = x.shape
    hd = D // NHEAD

    q = dot(x, p["wq"]) + p["bq"]
    k = dot(x, p["wk"]) + p["bk"]
    v = dot(x, p["wv"]) + p["bv"]

    def heads(t):
        return t.reshape(B, N, NHEAD, hd).transpose(0, 2, 1, 3)

    qh, kh, vh = heads(q), heads(k), heads(v)
    s = jnp.einsum("bhnd,bhmd->bhnm", qh, kh, precision=hi) / (hd ** 0.5)
    a = jax.nn.softmax(s, axis=-1)
    ctx = jnp.einsum("bhnm,bhmd->bhnd", a, vh, precision=hi)
    ctx = ctx.transpose(0, 2, 1, 3).reshape(B, N, D)

    attn_out = dot(ctx, p["wo"]) + p["bo"]
    x1 = ln(x + attn_out, p["g1"], p["be1"])
    ff = jnp.maximum(dot(x1, p["wf1"]) + p["bf1"], 0.0)
    ff = dot(ff, p["wf2"]) + p["bf2"]
    x2 = ln(x1 + ff, p["g2"], p["be2"])
    role = dot(x2, p["wr"]) + p["br"]
    if use_ln:
        role = ln(role, p["g3"], p["be3"])
    return jax.nn.sigmoid(role)


if __name__ == "__main__":
    # Small shapes consistent with the module: d_model divisible by nhead=4,
    # dim_feedforward left at the nn.TransformerEncoderLayer default (2048).
    batch = 2
    n_agents = 8
    agent_embedding_dim = 64
    role_embedding_dim = 32
    dim_feedforward = 2048
    use_ln = True

    key = jax.random.PRNGKey(0)
    kx, kp = jax.random.split(key)
    x = jax.random.normal(kx, (batch, n_agents, agent_embedding_dim), jnp.float32)
    params = init_params(kp, agent_embedding_dim, dim_feedforward, role_embedding_dim)

    out = role_embedding_forward(x, params, use_ln=use_ln)
    jax.block_until_ready(out)

    ref = reference_forward(x, params, use_ln=use_ln)
    assert out.shape == (batch, n_agents, role_embedding_dim)
    err = float(jnp.max(jnp.abs(out - ref)))
    assert jnp.allclose(out, ref, atol=1e-3, rtol=1e-3), f"mismatch vs reference, max err {err}"

    # Also exercise the 2-D input branch (unsqueeze -> encoder -> squeeze) of forward().
    out2d = role_embedding_forward(x[0], params, use_ln=use_ln)
    jax.block_until_ready(out2d)
    assert out2d.shape == (n_agents, role_embedding_dim)
    assert jnp.allclose(out2d, ref[0], atol=1e-3, rtol=1e-3)

    print("KERNEL_OK")
</pallas_src>

<mosaic_0001>
module attributes {stable_mosaic.version = 11 : i64} {
  func.func @role_embedding_kernel(%arg0: i32, %arg1: memref<1x8x64xf32, #tpu.memory_space<vmem>>, %arg2: memref<64x64xf32, #tpu.memory_space<vmem>>, %arg3: memref<1x64xf32, #tpu.memory_space<vmem>>, %arg4: memref<64x64xf32, #tpu.memory_space<vmem>>, %arg5: memref<1x64xf32, #tpu.memory_space<vmem>>, %arg6: memref<64x64xf32, #tpu.memory_space<vmem>>, %arg7: memref<1x64xf32, #tpu.memory_space<vmem>>, %arg8: memref<64x64xf32, #tpu.memory_space<vmem>>, %arg9: memref<1x64xf32, #tpu.memory_space<vmem>>, %arg10: memref<1x64xf32, #tpu.memory_space<vmem>>, %arg11: memref<1x64xf32, #tpu.memory_space<vmem>>, %arg12: memref<64x2048xf32, #tpu.memory_space<vmem>>, %arg13: memref<1x2048xf32, #tpu.memory_space<vmem>>, %arg14: memref<2048x64xf32, #tpu.memory_space<vmem>>, %arg15: memref<1x64xf32, #tpu.memory_space<vmem>>, %arg16: memref<1x64xf32, #tpu.memory_space<vmem>>, %arg17: memref<1x64xf32, #tpu.memory_space<vmem>>, %arg18: memref<64x32xf32, #tpu.memory_space<vmem>>, %arg19: memref<1x32xf32, #tpu.memory_space<vmem>>, %arg20: memref<1x32xf32, #tpu.memory_space<vmem>>, %arg21: memref<1x32xf32, #tpu.memory_space<vmem>>, %arg22: memref<1x8x32xf32, #tpu.memory_space<vmem>>) attributes {dimension_semantics = [#tpu.dimension_semantics<parallel>], iteration_bounds = array<i64: 2>, scalar_prefetch = 0 : i64, scratch_operands = 0 : i64, tpu.core_type = #tpu.core_type<tc>, window_params = [{transform_indices = @transform_0, window_bounds = array<i64: 1, 8, 64>}, {pipeline_mode = #tpu.pipeline_mode<synchronous>, transform_indices = @transform_1, window_bounds = array<i64: 64, 64>}, {pipeline_mode = #tpu.pipeline_mode<synchronous>, transform_indices = @transform_2, window_bounds = array<i64: 1, 64>}, {pipeline_mode = #tpu.pipeline_mode<synchronous>, transform_indices = @transform_3, window_bounds = array<i64: 64, 64>}, {pipeline_mode = #tpu.pipeline_mode<synchronous>, transform_indices = @transform_4, window_bounds = array<i64: 1, 64>}, {pipeline_mode = #tpu.pipeline_mode<synchronous>, transform_indices = @transform_5, window_bounds = array<i64: 64, 64>}, {pipeline_mode = #tpu.pipeline_mode<synchronous>, transform_indices = @transform_6, window_bounds = array<i64: 1, 64>}, {pipeline_mode = #tpu.pipeline_mode<synchronous>, transform_indices = @transform_7, window_bounds = array<i64: 64, 64>}, {pipeline_mode = #tpu.pipeline_mode<synchronous>, transform_indices = @transform_8, window_bounds = array<i64: 1, 64>}, {pipeline_mode = #tpu.pipeline_mode<synchronous>, transform_indices = @transform_9, window_bounds = array<i64: 1, 64>}, {pipeline_mode = #tpu.pipeline_mode<synchronous>, transform_indices = @transform_10, window_bounds = array<i64: 1, 64>}, {pipeline_mode = #tpu.pipeline_mode<synchronous>, transform_indices = @transform_11, window_bounds = array<i64: 64, 2048>}, {pipeline_mode = #tpu.pipeline_mode<synchronous>, transform_indices = @transform_12, window_bounds = array<i64: 1, 2048>}, {pipeline_mode = #tpu.pipeline_mode<synchronous>, transform_indices = @transform_13, window_bounds = array<i64: 2048, 64>}, {pipeline_mode = #tpu.pipeline_mode<synchronous>, transform_indices = @transform_14, window_bounds = array<i64: 1, 64>}, {pipeline_mode = #tpu.pipeline_mode<synchronous>, transform_indices = @transform_15, window_bounds = array<i64: 1, 64>}, {pipeline_mode = #tpu.pipeline_mode<synchronous>, transform_indices = @transform_16, window_bounds = array<i64: 1, 64>}, {pipeline_mode = #tpu.pipeline_mode<synchronous>, transform_indices = @transform_17, window_bounds = array<i64: 64, 32>}, {pipeline_mode = #tpu.pipeline_mode<synchronous>, transform_indices = @transform_18, window_bounds = array<i64: 1, 32>}, {pipeline_mode = #tpu.pipeline_mode<synchronous>, transform_indices = @transform_19, window_bounds = array<i64: 1, 32>}, {pipeline_mode = #tpu.pipeline_mode<synchronous>, transform_indices = @transform_20, window_bounds = array<i64: 1, 32>}, {transform_indices = @transform_21, window_bounds = array<i64: 1, 8, 32>}]} {
    %c0 = arith.constant 0 : index
    %c0_0 = arith.constant 0 : index
    %c0_1 = arith.constant 0 : index
    %0 = vector.load %arg1[%c0, %c0_0, %c0_1] : memref<1x8x64xf32, #tpu.memory_space<vmem>>, vector<1x8x64xf32>
    %1 = vector.shape_cast %0 : vector<1x8x64xf32> to vector<8x64xf32>
    %c0_2 = arith.constant 0 : index
    %c0_3 = arith.constant 0 : index
    %2 = vector.load %arg2[%c0_2, %c0_3] : memref<64x64xf32, #tpu.memory_space<vmem>>, vector<64x64xf32>
    %cst = arith.constant dense<0.000000e+00> : vector<8x64xf32>
    %3 = tpu.matmul %1, %2, %cst {dimension_numbers = #tpu.dot_dimension_numbers<[1], [0], [0], [1], [0, 0, 1, 1], [], []>} : vector<8x64xf32>, vector<64x64xf32>, vector<8x64xf32> -> vector<8x64xf32>
    %c0_4 = arith.constant 0 : index
    %c0_5 = arith.constant 0 : index
    %4 = vector.load %arg3[%c0_4, %c0_5] : memref<1x64xf32, #tpu.memory_space<vmem>>, vector<1x64xf32>
    %5 = vector.broadcast %4 : vector<1x64xf32> to vector<8x64xf32>
    %6 = arith.addf %3, %5 : vector<8x64xf32>
    %c0_6 = arith.constant 0 : index
    %c0_7 = arith.constant 0 : index
    %7 = vector.load %arg4[%c0_6, %c0_7] : memref<64x64xf32, #tpu.memory_space<vmem>>, vector<64x64xf32>
    %cst_8 = arith.constant dense<0.000000e+00> : vector<8x64xf32>
    %8 = tpu.matmul %1, %7, %cst_8 {dimension_numbers = #tpu.dot_dimension_numbers<[1], [0], [0], [1], [0, 0, 1, 1], [], []>} : vector<8x64xf32>, vector<64x64xf32>, vector<8x64xf32> -> vector<8x64xf32>
    %c0_9 = arith.constant 0 : index
    %c0_10 = arith.constant 0 : index
    %9 = vector.load %arg5[%c0_9, %c0_10] : memref<1x64xf32, #tpu.memory_space<vmem>>, vector<1x64xf32>
    %10 = vector.broadcast %9 : vector<1x64xf32> to vector<8x64xf32>
    %11 = arith.addf %8, %10 : vector<8x64xf32>
    %c0_11 = arith.constant 0 : index
    %c0_12 = arith.constant 0 : index
    %12 = vector.load %arg6[%c0_11, %c0_12] : memref<64x64xf32, #tpu.memory_space<vmem>>, vector<64x64xf32>
    %cst_13 = arith.constant dense<0.000000e+00> : vector<8x64xf32>
    %13 = tpu.matmul %1, %12, %cst_13 {dimension_numbers = #tpu.dot_dimension_numbers<[1], [0], [0], [1], [0, 0, 1, 1], [], []>} : vector<8x64xf32>, vector<64x64xf32>, vector<8x64xf32> -> vector<8x64xf32>
    %c0_14 = arith.constant 0 : index
    %c0_15 = arith.constant 0 : index
    %14 = vector.load %arg7[%c0_14, %c0_15] : memref<1x64xf32, #tpu.memory_space<vmem>>, vector<1x64xf32>
    %15 = vector.broadcast %14 : vector<1x64xf32> to vector<8x64xf32>
    %16 = arith.addf %13, %15 : vector<8x64xf32>
    %17 = vector.extract_strided_slice %6 {offsets = [0, 0], sizes = [8, 16], strides = [1, 1]} : vector<8x64xf32> to vector<8x16xf32>
    %18 = vector.extract_strided_slice %11 {offsets = [0, 0], sizes = [8, 16], strides = [1, 1]} : vector<8x64xf32> to vector<8x16xf32>
    %19 = vector.extract_strided_slice %16 {offsets = [0, 0], sizes = [8, 16], strides = [1, 1]} : vector<8x64xf32> to vector<8x16xf32>
    %20 = tpu.transpose %18, [1, 0] : vector<8x16xf32> -> vector<16x8xf32>
    %cst_16 = arith.constant dense<0.000000e+00> : vector<8x8xf32>
    %21 = tpu.matmul %17, %20, %cst_16 {dimension_numbers = #tpu.dot_dimension_numbers<[1], [0], [0], [1], [0, 0, 1, 1], [], []>} : vector<8x16xf32>, vector<16x8xf32>, vector<8x8xf32> -> vector<8x8xf32>
    %cst_17 = arith.constant 2.500000e-01 : f32
    %22 = vector.broadcast %cst_17 : f32 to vector<8x8xf32>
    %23 = arith.mulf %21, %22 : vector<8x8xf32>
    %cst_18 = arith.constant dense<0xFF800000> : vector<8xf32>
    %24 = vector.multi_reduction <maximumf>, %23, %cst_18 [1] : vector<8x8xf32> to vector<8xf32>
    %25 = vector.shape_cast %24 : vector<8xf32> to vector<8x1xf32>
    %26 = vector.broadcast %25 : vector<8x1xf32> to vector<8x8xf32>
    %27 = arith.subf %23, %26 : vector<8x8xf32>
    %28 = math.exp %27 : vector<8x8xf32>
    %cst_19 = arith.constant dense<0.000000e+00> : vector<8xf32>
    %29 = vector.multi_reduction <add>, %28, %cst_19 [1] : vector<8x8xf32> to vector<8xf32>
    %30 = vector.shape_cast %29 : vector<8xf32> to vector<8x1xf32>
    %31 = vector.broadcast %30 : vector<8x1xf32> to vector<8x8xf32>
    %32 = arith.divf %28, %31 : vector<8x8xf32>
    %cst_20 = arith.constant dense<0.000000e+00> : vector<8x16xf32>
    %33 = tpu.matmul %32, %19, %cst_20 {dimension_numbers = #tpu.dot_dimension_numbers<[1], [0], [0], [1], [0, 0, 1, 1], [], []>} : vector<8x8xf32>, vector<8x16xf32>, vector<8x16xf32> -> vector<8x16xf32>
    %34 = vector.extract_strided_slice %6 {offsets = [0, 16], sizes = [8, 16], strides = [1, 1]} : vector<8x64xf32> to vector<8x16xf32>
    %35 = vector.extract_strided_slice %11 {offsets = [0, 16], sizes = [8, 16], strides = [1, 1]} : vector<8x64xf32> to vector<8x16xf32>
    %36 = vector.extract_strided_slice %16 {offsets = [0, 16], sizes = [8, 16], strides = [1, 1]} : vector<8x64xf32> to vector<8x16xf32>
    %37 = tpu.transpose %35, [1, 0] : vector<8x16xf32> -> vector<16x8xf32>
    %cst_21 = arith.constant dense<0.000000e+00> : vector<8x8xf32>
    %38 = tpu.matmul %34, %37, %cst_21 {dimension_numbers = #tpu.dot_dimension_numbers<[1], [0], [0], [1], [0, 0, 1, 1], [], []>} : vector<8x16xf32>, vector<16x8xf32>, vector<8x8xf32> -> vector<8x8xf32>
    %cst_22 = arith.constant 2.500000e-01 : f32
    %39 = vector.broadcast %cst_22 : f32 to vector<8x8xf32>
    %40 = arith.mulf %38, %39 : vector<8x8xf32>
    %cst_23 = arith.constant dense<0xFF800000> : vector<8xf32>
    %41 = vector.multi_reduction <maximumf>, %40, %cst_23 [1] : vector<8x8xf32> to vector<8xf32>
    %42 = vector.shape_cast %41 : vector<8xf32> to vector<8x1xf32>
    %43 = vector.broadcast %42 : vector<8x1xf32> to vector<8x8xf32>
    %44 = arith.subf %40, %43 : vector<8x8xf32>
    %45 = math.exp %44 : vector<8x8xf32>
    %cst_24 = arith.constant dense<0.000000e+00> : vector<8xf32>
    %46 = vector.multi_reduction <add>, %45, %cst_24 [1] : vector<8x8xf32> to vector<8xf32>
    %47 = vector.shape_cast %46 : vector<8xf32> to vector<8x1xf32>
    %48 = vector.broadcast %47 : vector<8x1xf32> to vector<8x8xf32>
    %49 = arith.divf %45, %48 : vector<8x8xf32>
    %cst_25 = arith.constant dense<0.000000e+00> : vector<8x16xf32>
    %50 = tpu.matmul %49, %36, %cst_25 {dimension_numbers = #tpu.dot_dimension_numbers<[1], [0], [0], [1], [0, 0, 1, 1], [], []>} : vector<8x8xf32>, vector<8x16xf32>, vector<8x16xf32> -> vector<8x16xf32>
    %51 = vector.extract_strided_slice %6 {offsets = [0, 32], sizes = [8, 16], strides = [1, 1]} : vector<8x64xf32> to vector<8x16xf32>
    %52 = vector.extract_strided_slice %11 {offsets = [0, 32], sizes = [8, 16], strides = [1, 1]} : vector<8x64xf32> to vector<8x16xf32>
    %53 = vector.extract_strided_slice %16 {offsets = [0, 32], sizes = [8, 16], strides = [1, 1]} : vector<8x64xf32> to vector<8x16xf32>
    %54 = tpu.transpose %52, [1, 0] : vector<8x16xf32> -> vector<16x8xf32>
    %cst_26 = arith.constant dense<0.000000e+00> : vector<8x8xf32>
    %55 = tpu.matmul %51, %54, %cst_26 {dimension_numbers = #tpu.dot_dimension_numbers<[1], [0], [0], [1], [0, 0, 1, 1], [], []>} : vector<8x16xf32>, vector<16x8xf32>, vector<8x8xf32> -> vector<8x8xf32>
    %cst_27 = arith.constant 2.500000e-01 : f32
    %56 = vector.broadcast %cst_27 : f32 to vector<8x8xf32>
    %57 = arith.mulf %55, %56 : vector<8x8xf32>
    %cst_28 = arith.constant dense<0xFF800000> : vector<8xf32>
    %58 = vector.multi_reduction <maximumf>, %57, %cst_28 [1] : vector<8x8xf32> to vector<8xf32>
    %59 = vector.shape_cast %58 : vector<8xf32> to vector<8x1xf32>
    %60 = vector.broadcast %59 : vector<8x1xf32> to vector<8x8xf32>
    %61 = arith.subf %57, %60 : vector<8x8xf32>
    %62 = math.exp %61 : vector<8x8xf32>
    %cst_29 = arith.constant dense<0.000000e+00> : vector<8xf32>
    %63 = vector.multi_reduction <add>, %62, %cst_29 [1] : vector<8x8xf32> to vector<8xf32>
    %64 = vector.shape_cast %63 : vector<8xf32> to vector<8x1xf32>
    %65 = vector.broadcast %64 : vector<8x1xf32> to vector<8x8xf32>
    %66 = arith.divf %62, %65 : vector<8x8xf32>
    %cst_30 = arith.constant dense<0.000000e+00> : vector<8x16xf32>
    %67 = tpu.matmul %66, %53, %cst_30 {dimension_numbers = #tpu.dot_dimension_numbers<[1], [0], [0], [1], [0, 0, 1, 1], [], []>} : vector<8x8xf32>, vector<8x16xf32>, vector<8x16xf32> -> vector<8x16xf32>
    %68 = vector.extract_strided_slice %6 {offsets = [0, 48], sizes = [8, 16], strides = [1, 1]} : vector<8x64xf32> to vector<8x16xf32>
    %69 = vector.extract_strided_slice %11 {offsets = [0, 48], sizes = [8, 16], strides = [1, 1]} : vector<8x64xf32> to vector<8x16xf32>
    %70 = vector.extract_strided_slice %16 {offsets = [0, 48], sizes = [8, 16], strides = [1, 1]} : vector<8x64xf32> to vector<8x16xf32>
    %71 = tpu.transpose %69, [1, 0] : vector<8x16xf32> -> vector<16x8xf32>
    %cst_31 = arith.constant dense<0.000000e+00> : vector<8x8xf32>
    %72 = tpu.matmul %68, %71, %cst_31 {dimension_numbers = #tpu.dot_dimension_numbers<[1], [0], [0], [1], [0, 0, 1, 1], [], []>} : vector<8x16xf32>, vector<16x8xf32>, vector<8x8xf32> -> vector<8x8xf32>
    %cst_32 = arith.constant 2.500000e-01 : f32
    %73 = vector.broadcast %cst_32 : f32 to vector<8x8xf32>
    %74 = arith.mulf %72, %73 : vector<8x8xf32>
    %cst_33 = arith.constant dense<0xFF800000> : vector<8xf32>
    %75 = vector.multi_reduction <maximumf>, %74, %cst_33 [1] : vector<8x8xf32> to vector<8xf32>
    %76 = vector.shape_cast %75 : vector<8xf32> to vector<8x1xf32>
    %77 = vector.broadcast %76 : vector<8x1xf32> to vector<8x8xf32>
    %78 = arith.subf %74, %77 : vector<8x8xf32>
    %79 = math.exp %78 : vector<8x8xf32>
    %cst_34 = arith.constant dense<0.000000e+00> : vector<8xf32>
    %80 = vector.multi_reduction <add>, %79, %cst_34 [1] : vector<8x8xf32> to vector<8xf32>
    %81 = vector.shape_cast %80 : vector<8xf32> to vector<8x1xf32>
    %82 = vector.broadcast %81 : vector<8x1xf32> to vector<8x8xf32>
    %83 = arith.divf %79, %82 : vector<8x8xf32>
    %cst_35 = arith.constant dense<0.000000e+00> : vector<8x16xf32>
    %84 = tpu.matmul %83, %70, %cst_35 {dimension_numbers = #tpu.dot_dimension_numbers<[1], [0], [0], [1], [0, 0, 1, 1], [], []>} : vector<8x8xf32>, vector<8x16xf32>, vector<8x16xf32> -> vector<8x16xf32>
    %85 = tpu.concatenate %33, %50, %67, %84 in 1 : vector<8x16xf32>, vector<8x16xf32>, vector<8x16xf32>, vector<8x16xf32> -> vector<8x64xf32>
    %c0_36 = arith.constant 0 : index
    %c0_37 = arith.constant 0 : index
    %86 = vector.load %arg8[%c0_36, %c0_37] : memref<64x64xf32, #tpu.memory_space<vmem>>, vector<64x64xf32>
    %cst_38 = arith.constant dense<0.000000e+00> : vector<8x64xf32>
    %87 = tpu.matmul %85, %86, %cst_38 {dimension_numbers = #tpu.dot_dimension_numbers<[1], [0], [0], [1], [0, 0, 1, 1], [], []>} : vector<8x64xf32>, vector<64x64xf32>, vector<8x64xf32> -> vector<8x64xf32>
    %c0_39 = arith.constant 0 : index
    %c0_40 = arith.constant 0 : index
    %88 = vector.load %arg9[%c0_39, %c0_40] : memref<1x64xf32, #tpu.memory_space<vmem>>, vector<1x64xf32>
    %89 = vector.broadcast %88 : vector<1x64xf32> to vector<8x64xf32>
    %90 = arith.addf %87, %89 : vector<8x64xf32>
    %91 = arith.addf %1, %90 : vector<8x64xf32>
    %c0_41 = arith.constant 0 : index
    %c0_42 = arith.constant 0 : index
    %92 = vector.load %arg10[%c0_41, %c0_42] : memref<1x64xf32, #tpu.memory_space<vmem>>, vector<1x64xf32>
    %c0_43 = arith.constant 0 : index
    %c0_44 = arith.constant 0 : index
    %93 = vector.load %arg11[%c0_43, %c0_44] : memref<1x64xf32, #tpu.memory_space<vmem>>, vector<1x64xf32>
    %cst_45 = arith.constant dense<0.000000e+00> : vector<8xf32>
    %94 = vector.multi_reduction <add>, %91, %cst_45 [1] : vector<8x64xf32> to vector<8xf32>
    %95 = vector.shape_cast %94 : vector<8xf32> to vector<8x1xf32>
    %cst_46 = arith.constant 6.400000e+01 : f32
    %96 = vector.broadcast %cst_46 : f32 to vector<8x1xf32>
    %97 = arith.divf %95, %96 : vector<8x1xf32>
    %98 = vector.broadcast %97 : vector<8x1xf32> to vector<8x64xf32>
    %99 = arith.subf %91, %98 : vector<8x64xf32>
    %100 = arith.mulf %99, %99 : vector<8x64xf32>
    %cst_47 = arith.constant dense<0.000000e+00> : vector<8xf32>
    %101 = vector.multi_reduction <add>, %100, %cst_47 [1] : vector<8x64xf32> to vector<8xf32>
    %102 = vector.shape_cast %101 : vector<8xf32> to vector<8x1xf32>
    %cst_48 = arith.constant 6.400000e+01 : f32
    %103 = vector.broadcast %cst_48 : f32 to vector<8x1xf32>
    %104 = arith.divf %102, %103 : vector<8x1xf32>
    %cst_49 = arith.constant 9.99999974E-6 : f32
    %105 = vector.broadcast %cst_49 : f32 to vector<8x1xf32>
    %106 = arith.addf %104, %105 : vector<8x1xf32>
    %107 = math.rsqrt %106 : vector<8x1xf32>
    %108 = vector.broadcast %107 : vector<8x1xf32> to vector<8x64xf32>
    %109 = arith.mulf %99, %108 : vector<8x64xf32>
    %110 = vector.broadcast %92 : vector<1x64xf32> to vector<8x64xf32>
    %111 = arith.mulf %109, %110 : vector<8x64xf32>
    %112 = vector.broadcast %93 : vector<1x64xf32> to vector<8x64xf32>
    %113 = arith.addf %111, %112 : vector<8x64xf32>
    %c0_50 = arith.constant 0 : index
    %c0_51 = arith.constant 0 : index
    %114 = vector.load %arg12[%c0_50, %c0_51] : memref<64x2048xf32, #tpu.memory_space<vmem>>, vector<64x2048xf32>
    %cst_52 = arith.constant dense<0.000000e+00> : vector<8x2048xf32>
    %115 = tpu.matmul %113, %114, %cst_52 {dimension_numbers = #tpu.dot_dimension_numbers<[1], [0], [0], [1], [0, 0, 1, 1], [], []>} : vector<8x64xf32>, vector<64x2048xf32>, vector<8x2048xf32> -> vector<8x2048xf32>
    %c0_53 = arith.constant 0 : index
    %c0_54 = arith.constant 0 : index
    %116 = vector.load %arg13[%c0_53, %c0_54] : memref<1x2048xf32, #tpu.memory_space<vmem>>, vector<1x2048xf32>
    %117 = vector.broadcast %116 : vector<1x2048xf32> to vector<8x2048xf32>
    %118 = arith.addf %115, %117 : vector<8x2048xf32>
    %cst_55 = arith.constant 0.000000e+00 : f32
    %119 = vector.broadcast %cst_55 : f32 to vector<8x2048xf32>
    %120 = arith.maximumf %118, %119 : vector<8x2048xf32>
    %c0_56 = arith.constant 0 : index
    %c0_57 = arith.constant 0 : index
    %121 = vector.load %arg14[%c0_56, %c0_57] : memref<2048x64xf32, #tpu.memory_space<vmem>>, vector<2048x64xf32>
    %cst_58 = arith.constant dense<0.000000e+00> : vector<8x64xf32>
    %122 = tpu.matmul %120, %121, %cst_58 {dimension_numbers = #tpu.dot_dimension_numbers<[1], [0], [0], [1], [0, 0, 1, 1], [], []>} : vector<8x2048xf32>, vector<2048x64xf32>, vector<8x64xf32> -> vector<8x64xf32>
    %c0_59 = arith.constant 0 : index
    %c0_60 = arith.constant 0 : index
    %123 = vector.load %arg15[%c0_59, %c0_60] : memref<1x64xf32, #tpu.memory_space<vmem>>, vector<1x64xf32>
    %124 = vector.broadcast %123 : vector<1x64xf32> to vector<8x64xf32>
    %125 = arith.addf %122, %124 : vector<8x64xf32>
    %126 = arith.addf %113, %125 : vector<8x64xf32>
    %c0_61 = arith.constant 0 : index
    %c0_62 = arith.constant 0 : index
    %127 = vector.load %arg16[%c0_61, %c0_62] : memref<1x64xf32, #tpu.memory_space<vmem>>, vector<1x64xf32>
    %c0_63 = arith.constant 0 : index
    %c0_64 = arith.constant 0 : index
    %128 = vector.load %arg17[%c0_63, %c0_64] : memref<1x64xf32, #tpu.memory_space<vmem>>, vector<1x64xf32>
    %cst_65 = arith.constant dense<0.000000e+00> : vector<8xf32>
    %129 = vector.multi_reduction <add>, %126, %cst_65 [1] : vector<8x64xf32> to vector<8xf32>
    %130 = vector.shape_cast %129 : vector<8xf32> to vector<8x1xf32>
    %cst_66 = arith.constant 6.400000e+01 : f32
    %131 = vector.broadcast %cst_66 : f32 to vector<8x1xf32>
    %132 = arith.divf %130, %131 : vector<8x1xf32>
    %133 = vector.broadcast %132 : vector<8x1xf32> to vector<8x64xf32>
    %134 = arith.subf %126, %133 : vector<8x64xf32>
    %135 = arith.mulf %134, %134 : vector<8x64xf32>
    %cst_67 = arith.constant dense<0.000000e+00> : vector<8xf32>
    %136 = vector.multi_reduction <add>, %135, %cst_67 [1] : vector<8x64xf32> to vector<8xf32>
    %137 = vector.shape_cast %136 : vector<8xf32> to vector<8x1xf32>
    %cst_68 = arith.constant 6.400000e+01 : f32
    %138 = vector.broadcast %cst_68 : f32 to vector<8x1xf32>
    %139 = arith.divf %137, %138 : vector<8x1xf32>
    %cst_69 = arith.constant 9.99999974E-6 : f32
    %140 = vector.broadcast %cst_69 : f32 to vector<8x1xf32>
    %141 = arith.addf %139, %140 : vector<8x1xf32>
    %142 = math.rsqrt %141 : vector<8x1xf32>
    %143 = vector.broadcast %142 : vector<8x1xf32> to vector<8x64xf32>
    %144 = arith.mulf %134, %143 : vector<8x64xf32>
    %145 = vector.broadcast %127 : vector<1x64xf32> to vector<8x64xf32>
    %146 = arith.mulf %144, %145 : vector<8x64xf32>
    %147 = vector.broadcast %128 : vector<1x64xf32> to vector<8x64xf32>
    %148 = arith.addf %146, %147 : vector<8x64xf32>
    %c0_70 = arith.constant 0 : index
    %c0_71 = arith.constant 0 : index
    %149 = vector.load %arg18[%c0_70, %c0_71] : memref<64x32xf32, #tpu.memory_space<vmem>>, vector<64x32xf32>
    %cst_72 = arith.constant dense<0.000000e+00> : vector<8x32xf32>
    %150 = tpu.matmul %148, %149, %cst_72 {dimension_numbers = #tpu.dot_dimension_numbers<[1], [0], [0], [1], [0, 0, 1, 1], [], []>} : vector<8x64xf32>, vector<64x32xf32>, vector<8x32xf32> -> vector<8x32xf32>
    %c0_73 = arith.constant 0 : index
    %c0_74 = arith.constant 0 : index
    %151 = vector.load %arg19[%c0_73, %c0_74] : memref<1x32xf32, #tpu.memory_space<vmem>>, vector<1x32xf32>
    %152 = vector.broadcast %151 : vector<1x32xf32> to vector<8x32xf32>
    %153 = arith.addf %150, %152 : vector<8x32xf32>
    %c0_75 = arith.constant 0 : index
    %c0_76 = arith.constant 0 : index
    %154 = vector.load %arg20[%c0_75, %c0_76] : memref<1x32xf32, #tpu.memory_space<vmem>>, vector<1x32xf32>
    %c0_77 = arith.constant 0 : index
    %c0_78 = arith.constant 0 : index
    %155 = vector.load %arg21[%c0_77, %c0_78] : memref<1x32xf32, #tpu.memory_space<vmem>>, vector<1x32xf32>
    %cst_79 = arith.constant dense<0.000000e+00> : vector<8xf32>
    %156 = vector.multi_reduction <add>, %153, %cst_79 [1] : vector<8x32xf32> to vector<8xf32>
    %157 = vector.shape_cast %156 : vector<8xf32> to vector<8x1xf32>
    %cst_80 = arith.constant 3.200000e+01 : f32
    %158 = vector.broadcast %cst_80 : f32 to vector<8x1xf32>
    %159 = arith.divf %157, %158 : vector<8x1xf32>
    %160 = vector.broadcast %159 : vector<8x1xf32> to vector<8x32xf32>
    %161 = arith.subf %153, %160 : vector<8x32xf32>
    %162 = arith.mulf %161, %161 : vector<8x32xf32>
    %cst_81 = arith.constant dense<0.000000e+00> : vector<8xf32>
    %163 = vector.multi_reduction <add>, %162, %cst_81 [1] : vector<8x32xf32> to vector<8xf32>
    %164 = vector.shape_cast %163 : vector<8xf32> to vector<8x1xf32>
    %cst_82 = arith.constant 3.200000e+01 : f32
    %165 = vector.broadcast %cst_82 : f32 to vector<8x1xf32>
    %166 = arith.divf %164, %165 : vector<8x1xf32>
    %cst_83 = arith.constant 9.99999974E-6 : f32
    %167 = vector.broadcast %cst_83 : f32 to vector<8x1xf32>
    %168 = arith.addf %166, %167 : vector<8x1xf32>
    %169 = math.rsqrt %168 : vector<8x1xf32>
    %170 = vector.broadcast %169 : vector<8x1xf32> to vector<8x32xf32>
    %171 = arith.mulf %161, %170 : vector<8x32xf32>
    %172 = vector.broadcast %154 : vector<1x32xf32> to vector<8x32xf32>
    %173 = arith.mulf %171, %172 : vector<8x32xf32>
    %174 = vector.broadcast %155 : vector<1x32xf32> to vector<8x32xf32>
    %175 = arith.addf %173, %174 : vector<8x32xf32>
    %cst_84 = arith.constant 0.000000e+00 : f32
    %176 = vector.broadcast %cst_84 : f32 to vector<8x32xf32>
    %177 = arith.subf %176, %175 : vector<8x32xf32>
    %178 = math.exp %177 : vector<8x32xf32>
    %cst_85 = arith.constant 1.000000e+00 : f32
    %179 = vector.broadcast %cst_85 : f32 to vector<8x32xf32>
    %180 = arith.addf %179, %178 : vector<8x32xf32>
    %cst_86 = arith.constant 1.000000e+00 : f32
    %181 = vector.broadcast %cst_86 : f32 to vector<8x32xf32>
    %182 = arith.divf %181, %180 : vector<8x32xf32>
    %c0_87 = arith.constant 0 : index
    %c0_88 = arith.constant 0 : index
    %c0_89 = arith.constant 0 : index
    %183 = vector.load %arg22[%c0_87, %c0_88, %c0_89] : memref<1x8x32xf32, #tpu.memory_space<vmem>>, vector<1x8x32xf32>
    %184 = vector.shape_cast %183 : vector<1x8x32xf32> to vector<8x32xf32>
    %185 = vector.shape_cast %182 : vector<8x32xf32> to vector<1x8x32xf32>
    tpu.vector_store %arg22[%c0_87, %c0_88, %c0_89], %185 {strides = array<i32>} : memref<1x8x32xf32, #tpu.memory_space<vmem>>, vector<1x8x32xf32>,
    return
  }
  func.func @transform_0(%arg0: i32) -> (i32, i32, i32) {
    %c0_i32 = arith.constant 0 : i32
    %c0_i32_0 = arith.constant 0 : i32
    %c0_i32_1 = arith.constant 0 : i32
    return %arg0, %c0_i32, %c0_i32_0 : i32, i32, i32
  }
  func.func @transform_1(%arg0: i32) -> (i32, i32) {
    %c0_i32 = arith.constant 0 : i32
    %c0_i32_0 = arith.constant 0 : i32
    %c0_i32_1 = arith.constant 0 : i32
    return %c0_i32, %c0_i32_0 : i32, i32
  }
  func.func @transform_2(%arg0: i32) -> (i32, i32) {
    %c0_i32 = arith.constant 0 : i32
    %c0_i32_0 = arith.constant 0 : i32
    %c0_i32_1 = arith.constant 0 : i32
    return %c0_i32, %c0_i32_0 : i32, i32
  }
  func.func @transform_3(%arg0: i32) -> (i32, i32) {
    %c0_i32 = arith.constant 0 : i32
    %c0_i32_0 = arith.constant 0 : i32
    %c0_i32_1 = arith.constant 0 : i32
    return %c0_i32, %c0_i32_0 : i32, i32
  }
  func.func @transform_4(%arg0: i32) -> (i32, i32) {
    %c0_i32 = arith.constant 0 : i32
    %c0_i32_0 = arith.constant 0 : i32
    %c0_i32_1 = arith.constant 0 : i32
    return %c0_i32, %c0_i32_0 : i32, i32
  }
  func.func @transform_5(%arg0: i32) -> (i32, i32) {
    %c0_i32 = arith.constant 0 : i32
    %c0_i32_0 = arith.constant 0 : i32
    %c0_i32_1 = arith.constant 0 : i32
    return %c0_i32, %c0_i32_0 : i32, i32
  }
  func.func @transform_6(%arg0: i32) -> (i32, i32) {
    %c0_i32 = arith.constant 0 : i32
    %c0_i32_0 = arith.constant 0 : i32
    %c0_i32_1 = arith.constant 0 : i32
    return %c0_i32, %c0_i32_0 : i32, i32
  }
  func.func @transform_7(%arg0: i32) -> (i32, i32) {
    %c0_i32 = arith.constant 0 : i32
    %c0_i32_0 = arith.constant 0 : i32
    %c0_i32_1 = arith.constant 0 : i32
    return %c0_i32, %c0_i32_0 : i32, i32
  }
  func.func @transform_8(%arg0: i32) -> (i32, i32) {
    %c0_i32 = arith.constant 0 : i32
    %c0_i32_0 = arith.constant 0 : i32
    %c0_i32_1 = arith.constant 0 : i32
    return %c0_i32, %c0_i32_0 : i32, i32
  }
  func.func @transform_9(%arg0: i32) -> (i32, i32) {
    %c0_i32 = arith.constant 0 : i32
    %c0_i32_0 = arith.constant 0 : i32
    %c0_i32_1 = arith.constant 0 : i32
    return %c0_i32, %c0_i32_0 : i32, i32
  }
  func.func @transform_10(%arg0: i32) -> (i32, i32) {
    %c0_i32 = arith.constant 0 : i32
    %c0_i32_0 = arith.constant 0 : i32
    %c0_i32_1 = arith.constant 0 : i32
    return %c0_i32, %c0_i32_0 : i32, i32
  }
  func.func @transform_11(%arg0: i32) -> (i32, i32) {
    %c0_i32 = arith.constant 0 : i32
    %c0_i32_0 = arith.constant 0 : i32
    %c0_i32_1 = arith.constant 0 : i32
    return %c0_i32, %c0_i32_0 : i32, i32
  }
  func.func @transform_12(%arg0: i32) -> (i32, i32) {
    %c0_i32 = arith.constant 0 : i32
    %c0_i32_0 = arith.constant 0 : i32
    %c0_i32_1 = arith.constant 0 : i32
    return %c0_i32, %c0_i32_0 : i32, i32
  }
  func.func @transform_13(%arg0: i32) -> (i32, i32) {
    %c0_i32 = arith.constant 0 : i32
    %c0_i32_0 = arith.constant 0 : i32
    %c0_i32_1 = arith.constant 0 : i32
    return %c0_i32, %c0_i32_0 : i32, i32
  }
  func.func @transform_14(%arg0: i32) -> (i32, i32) {
    %c0_i32 = arith.constant 0 : i32
    %c0_i32_0 = arith.constant 0 : i32
    %c0_i32_1 = arith.constant 0 : i32
    return %c0_i32, %c0_i32_0 : i32, i32
  }
  func.func @transform_15(%arg0: i32) -> (i32, i32) {
    %c0_i32 = arith.constant 0 : i32
    %c0_i32_0 = arith.constant 0 : i32
    %c0_i32_1 = arith.constant 0 : i32
    return %c0_i32, %c0_i32_0 : i32, i32
  }
  func.func @transform_16(%arg0: i32) -> (i32, i32) {
    %c0_i32 = arith.constant 0 : i32
    %c0_i32_0 = arith.constant 0 : i32
    %c0_i32_1 = arith.constant 0 : i32
    return %c0_i32, %c0_i32_0 : i32, i32
  }
  func.func @transform_17(%arg0: i32) -> (i32, i32) {
    %c0_i32 = arith.constant 0 : i32
    %c0_i32_0 = arith.constant 0 : i32
    %c0_i32_1 = arith.constant 0 : i32
    return %c0_i32, %c0_i32_0 : i32, i32
  }
  func.func @transform_18(%arg0: i32) -> (i32, i32) {
    %c0_i32 = arith.constant 0 : i32
    %c0_i32_0 = arith.constant 0 : i32
    %c0_i32_1 = arith.constant 0 : i32
    return %c0_i32, %c0_i32_0 : i32, i32
  }
  func.func @transform_19(%arg0: i32) -> (i32, i32) {
    %c0_i32 = arith.constant 0 : i32
    %c0_i32_0 = arith.constant 0 : i32
    %c0_i32_1 = arith.constant 0 : i32
    return %c0_i32, %c0_i32_0 : i32, i32
  }
  func.func @transform_20(%arg0: i32) -> (i32, i32) {
    %c0_i32 = arith.constant 0 : i32
    %c0_i32_0 = arith.constant 0 : i32
    %c0_i32_1 = arith.constant 0 : i32
    return %c0_i32, %c0_i32_0 : i32, i32
  }
  func.func @transform_21(%arg0: i32) -> (i32, i32, i32) {
    %c0_i32 = arith.constant 0 : i32
    %c0_i32_0 = arith.constant 0 : i32
    %c0_i32_1 = arith.constant 0 : i32
    return %arg0, %c0_i32, %c0_i32_0 : i32, i32, i32
  }
}

</mosaic_0001>

<llo_original>
// kernel: tpu_custom_call.1
$region0: #{tpu_custom_call.1}
  #allocation0 [shape = 'u32[]', space=smem, size = 0x4, offset = 0x4, fixed_abs, tag = 'smem constant byte address 0x4 - core index']
  #allocation1 [shape = 'u32[144,128]{1,0:T(1,128)}', space=vmem, size = 0x12000, scoped, tag = 'internal scratch']
  %s0 = inlined_call_operand.vmem [shape: f32[2,8,64], index: 0, kind: input, shape index: {}]
  %s1 = inlined_call_operand.vmem [shape: f32[64,64], index: 1, kind: input, shape index: {}]
  %s2 = inlined_call_operand.vmem [shape: f32[1,64], index: 2, kind: input, shape index: {}]
  %s3 = inlined_call_operand.vmem [shape: f32[64,64], index: 3, kind: input, shape index: {}]
  %s4 = inlined_call_operand.vmem [shape: f32[1,64], index: 4, kind: input, shape index: {}]
  %s5 = inlined_call_operand.vmem [shape: f32[64,64], index: 5, kind: input, shape index: {}]
  %s6 = inlined_call_operand.vmem [shape: f32[1,64], index: 6, kind: input, shape index: {}]
  %s7 = inlined_call_operand.vmem [shape: f32[64,64], index: 7, kind: input, shape index: {}]
  %s8 = inlined_call_operand.vmem [shape: f32[1,64], index: 8, kind: input, shape index: {}]
  %s9 = inlined_call_operand.vmem [shape: f32[1,64], index: 9, kind: input, shape index: {}]
  %s10 = inlined_call_operand.vmem [shape: f32[1,64], index: 10, kind: input, shape index: {}]
  %s11 = inlined_call_operand.vmem [shape: f32[64,2048], index: 11, kind: input, shape index: {}]
  %s12 = inlined_call_operand.vmem [shape: f32[1,2048], index: 12, kind: input, shape index: {}]
  %s13 = inlined_call_operand.vmem [shape: f32[2048,64], index: 13, kind: input, shape index: {}]
  %s14 = inlined_call_operand.vmem [shape: f32[1,64], index: 14, kind: input, shape index: {}]
  %s15 = inlined_call_operand.vmem [shape: f32[1,64], index: 15, kind: input, shape index: {}]
  %s16 = inlined_call_operand.vmem [shape: f32[1,64], index: 16, kind: input, shape index: {}]
  %s17 = inlined_call_operand.vmem [shape: f32[64,32], index: 17, kind: input, shape index: {}]
  %s18 = inlined_call_operand.vmem [shape: f32[1,32], index: 18, kind: input, shape index: {}]
  %s19 = inlined_call_operand.vmem [shape: f32[1,32], index: 19, kind: input, shape index: {}]
  %s20 = inlined_call_operand.vmem [shape: f32[1,32], index: 20, kind: input, shape index: {}]
  %s21 = inlined_call_operand.hbm [shape: f32[2,8,32], index: 21, kind: output, shape index: {}]
  %s22 = sld [smem:[#allocation0]]
  $region117: #{tpu_custom_call.1} parent=0
    _
  %s24 = ssub.s32 1, %s22
  %s25 = scalar_select 0, %s24, %s22
  $region1: #{tpu_custom_call.1} parent=0
    #allocation2 [shape = 'u8[8192]{0}', space=vmem, size = 0x2000, scoped, tag = 'output window, operand 0']
    #allocation3 [shape = 's32[2]{0}', space=sflag, size = 0x8, scoped, tag = 'scoped memory for tpu_custom_call.1']
    %26 = vsyncpa [#allocation3], 0
    %s27 = scalar_lea.sflag [#allocation3], 1
    %28 = vsyncpa %s27, 0
    loop: start=0, step=1, limit=4
    $region2: #{tpu_custom_call.1} parent=1 // loop_pre_header
      _
    $region3: #{tpu_custom_call.1} parent=1 // loop_header
      %s30 = sphi 0, %s34
      %p31 = scmp.ge.s32.totalorder %s30, 4
      %s40 = sphi 0, %s42
      %s43 = sphi 0, %s40
      %s44 = sphi 0, %s43
      %s60 = sphi 0, %s44
      %s64 = sphi 0, %s64
      %s66 = sphi 0, %s64
      %s67 = sphi 0, %s66
      %s81 = sphi 0, %s67
      %s85 = sphi 0, %s85
      %s87 = sphi 0, %s85
      %s88 = sphi 0, %s87
      %s102 = sphi 0, %s88
      %s106 = sphi 0, %s106
      %s108 = sphi 0, %s106
      %s109 = sphi 0, %s108
      %s123 = sphi 0, %s109
      %s127 = sphi 0, %s127
      %s129 = sphi 0, %s127
      %s130 = sphi 0, %s129
      %s144 = sphi 0, %s130
      %s148 = sphi 0, %s148
      %s150 = sphi 0, %s148
      %s151 = sphi 0, %s150
      %s165 = sphi 0, %s151
      %s169 = sphi 0, %s169
      %s171 = sphi 0, %s169
      %s172 = sphi 0, %s171
      %s186 = sphi 0, %s172
      %s190 = sphi 0, %s190
      %s192 = sphi 0, %s190
      %s193 = sphi 0, %s192
      %s207 = sphi 0, %s193
      %s211 = sphi 0, %s211
      %s213 = sphi 0, %s211
      %s214 = sphi 0, %s213
      %s228 = sphi 0, %s214
      %s232 = sphi 0, %s232
      %s234 = sphi 0, %s232
      %s235 = sphi 0, %s234
      %s249 = sphi 0, %s235
      %s253 = sphi 0, %s253
      %s255 = sphi 0, %s253
      %s256 = sphi 0, %s255
      %s270 = sphi 0, %s256
      %s274 = sphi 0, %s274
      %s276 = sphi 0, %s274
      %s277 = sphi 0, %s276
      %s291 = sphi 0, %s277
      %s295 = sphi 0, %s295
      %s297 = sphi 0, %s295
      %s298 = sphi 0, %s297
      %s312 = sphi 0, %s298
      %s316 = sphi 0, %s316
      %s318 = sphi 0, %s316
      %s319 = sphi 0, %s318
      %s333 = sphi 0, %s319
      %s337 = sphi 0, %s337
      %s339 = sphi 0, %s337
      %s340 = sphi 0, %s339
      %s354 = sphi 0, %s340
      %s358 = sphi 0, %s358
      %s360 = sphi 0, %s358
      %s361 = sphi 0, %s360
      %s375 = sphi 0, %s361
      %s379 = sphi 0, %s379
      %s381 = sphi 0, %s379
      %s382 = sphi 0, %s381
      %s396 = sphi 0, %s382
      %s400 = sphi 0, %s400
      %s402 = sphi 0, %s400
      %s403 = sphi 0, %s402
      %s417 = sphi 0, %s403
      %s421 = sphi 0, %s421
      %s423 = sphi 0, %s421
      %s424 = sphi 0, %s423
      %s438 = sphi 0, %s424
      %s442 = sphi 0, %s442
      %s444 = sphi 0, %s442
      %s445 = sphi 0, %s444
      %s459 = sphi 0, %s445
      %s463 = sphi 0, %s463
      %s465 = sphi 0, %s463
      %s466 = sphi 0, %s465
      %s480 = sphi 0, %s466
      %s486 = sphi 0, %s488
      %s489 = sphi 0, %s486
      %s490 = sphi 0, %s489
      %s506 = sphi 0, %s490
    $region4: #{tpu_custom_call.1} parent=1 // loop_header_branch
      %33 = sbr.rel (%p31) target = $region8
    $region5: #{tpu_custom_call.1} parent=1 // loop_body
      %s35 = ssub.s32 %s30, 1
      %s36 = ssub.s32 %s30, 2
      %s37 = sadd.s32 %s30, 1
      %s38 = ssub.s32 %s30, %s37
      %p39 = scmp.eq.s32.totalorder %s38, 0
      %s41 = sadd.s32 %s40, 1
      %s42 = scalar_select %p39, %s40, %s41
      %p45 = pneg %p39
      %p46 = scmp.eq.s32.totalorder %s30, 1
      %p47 = por %p45, %p46
      %p48 = scmp.ne.s32.totalorder %s40, %s43
      %p49 = scmp.eq.s32.totalorder %s30, 0
      %p50 = por %p48, %p49
      %p51 = scmp.ne.s32.totalorder %s40, %s43
      %p52 = scmp.eq.s32.totalorder %s35, 1
      %p53 = por %p51, %p52
      %p54 = scmp.ne.s32.totalorder %s43, %s44
      %p55 = scmp.eq.s32.totalorder %s35, 0
      %p56 = por %p54, %p55
      %p57 = scmp.ne.s32.totalorder %s43, %s44
      %p58 = scmp.eq.s32.totalorder %s36, 1
      %p59 = por %p57, %p58
      %p61 = scmp.ne.s32.totalorder %s44, %s60
      %p62 = scmp.eq.s32.totalorder %s36, 0
      %p63 = por %p61, %p62
      %s65 = sadd.s32 %s64, 1
      %p68 = scmp.eq.s32.totalorder %s30, 1
      %p69 = scmp.ne.s32.totalorder %s64, %s66
      %p70 = scmp.eq.s32.totalorder %s30, 0
      %p71 = por %p69, %p70
      %p72 = scmp.ne.s32.totalorder %s64, %s66
      %p73 = scmp.eq.s32.totalorder %s35, 1
      %p74 = por %p72, %p73
      %p75 = scmp.ne.s32.totalorder %s66, %s67
      %p76 = scmp.eq.s32.totalorder %s35, 0
      %p77 = por %p75, %p76
      %p78 = scmp.ne.s32.totalorder %s66, %s67
      %p79 = scmp.eq.s32.totalorder %s36, 1
      %p80 = por %p78, %p79
      %p82 = scmp.ne.s32.totalorder %s67, %s81
      %p83 = scmp.eq.s32.totalorder %s36, 0
      %p84 = por %p82, %p83
      %s86 = sadd.s32 %s85, 1
      %p89 = scmp.eq.s32.totalorder %s30, 1
      %p90 = scmp.ne.s32.totalorder %s85, %s87
      %p91 = scmp.eq.s32.totalorder %s30, 0
      %p92 = por %p90, %p91
      %p93 = scmp.ne.s32.totalorder %s85, %s87
      %p94 = scmp.eq.s32.totalorder %s35, 1
      %p95 = por %p93, %p94
      %p96 = scmp.ne.s32.totalorder %s87, %s88
      %p97 = scmp.eq.s32.totalorder %s35, 0
      %p98 = por %p96, %p97
      %p99 = scmp.ne.s32.totalorder %s87, %s88
      %p100 = scmp.eq.s32.totalorder %s36, 1
      %p101 = por %p99, %p100
      %p103 = scmp.ne.s32.totalorder %s88, %s102
      %p104 = scmp.eq.s32.totalorder %s36, 0
      %p105 = por %p103, %p104
      %s107 = sadd.s32 %s106, 1
      %p110 = scmp.eq.s32.totalorder %s30, 1
      %p111 = scmp.ne.s32.totalorder %s106, %s108
      %p112 = scmp.eq.s32.totalorder %s30, 0
      %p113 = por %p111, %p112
      %p114 = scmp.ne.s32.totalorder %s106, %s108
      %p115 = scmp.eq.s32.totalorder %s35, 1
      %p116 = por %p114, %p115
      %p117 = scmp.ne.s32.totalorder %s108, %s109
      %p118 = scmp.eq.s32.totalorder %s35, 0
      %p119 = por %p117, %p118
      %p120 = scmp.ne.s32.totalorder %s108, %s109
      %p121 = scmp.eq.s32.totalorder %s36, 1
      %p122 = por %p120, %p121
      %p124 = scmp.ne.s32.totalorder %s109, %s123
      %p125 = scmp.eq.s32.totalorder %s36, 0
      %p126 = por %p124, %p125
      %s128 = sadd.s32 %s127, 1
      %p131 = scmp.eq.s32.totalorder %s30, 1
      %p132 = scmp.ne.s32.totalorder %s127, %s129
      %p133 = scmp.eq.s32.totalorder %s30, 0
      %p134 = por %p132, %p133
      %p135 = scmp.ne.s32.totalorder %s127, %s129
      %p136 = scmp.eq.s32.totalorder %s35, 1
      %p137 = por %p135, %p136
      %p138 = scmp.ne.s32.totalorder %s129, %s130
      %p139 = scmp.eq.s32.totalorder %s35, 0
      %p140 = por %p138, %p139
      %p141 = scmp.ne.s32.totalorder %s129, %s130
      %p142 = scmp.eq.s32.totalorder %s36, 1
      %p143 = por %p141, %p142
      %p145 = scmp.ne.s32.totalorder %s130, %s144
      %p146 = scmp.eq.s32.totalorder %s36, 0
      %p147 = por %p145, %p146
      %s149 = sadd.s32 %s148, 1
      %p152 = scmp.eq.s32.totalorder %s30, 1
      %p153 = scmp.ne.s32.totalorder %s148, %s150
      %p154 = scmp.eq.s32.totalorder %s30, 0
      %p155 = por %p153, %p154
      %p156 = scmp.ne.s32.totalorder %s148, %s150
      %p157 = scmp.eq.s32.totalorder %s35, 1
      %p158 = por %p156, %p157
      %p159 = scmp.ne.s32.totalorder %s150, %s151
      %p160 = scmp.eq.s32.totalorder %s35, 0
      %p161 = por %p159, %p160
      %p162 = scmp.ne.s32.totalorder %s150, %s151
      %p163 = scmp.eq.s32.totalorder %s36, 1
      %p164 = por %p162, %p163
      %p166 = scmp.ne.s32.totalorder %s151, %s165
      %p167 = scmp.eq.s32.totalorder %s36, 0
      %p168 = por %p166, %p167
      %s170 = sadd.s32 %s169, 1
      %p173 = scmp.eq.s32.totalorder %s30, 1
      %p174 = scmp.ne.s32.totalorder %s169, %s171
      %p175 = scmp.eq.s32.totalorder %s30, 0
      %p176 = por %p174, %p175
      %p177 = scmp.ne.s32.totalorder %s169, %s171
      %p178 = scmp.eq.s32.totalorder %s35, 1
      %p179 = por %p177, %p178
      %p180 = scmp.ne.s32.totalorder %s171, %s172
      %p181 = scmp.eq.s32.totalorder %s35, 0
      %p182 = por %p180, %p181
      %p183 = scmp.ne.s32.totalorder %s171, %s172
      %p184 = scmp.eq.s32.totalorder %s36, 1
      %p185 = por %p183, %p184
      %p187 = scmp.ne.s32.totalorder %s172, %s186
      %p188 = scmp.eq.s32.totalorder %s36, 0
      %p189 = por %p187, %p188
      %s191 = sadd.s32 %s190, 1
      %p194 = scmp.eq.s32.totalorder %s30, 1
      %p195 = scmp.ne.s32.totalorder %s190, %s192
      %p196 = scmp.eq.s32.totalorder %s30, 0
      %p197 = por %p195, %p196
      %p198 = scmp.ne.s32.totalorder %s190, %s192
      %p199 = scmp.eq.s32.totalorder %s35, 1
      %p200 = por %p198, %p199
      %p201 = scmp.ne.s32.totalorder %s192, %s193
      %p202 = scmp.eq.s32.totalorder %s35, 0
      %p203 = por %p201, %p202
      %p204 = scmp.ne.s32.totalorder %s192, %s193
      %p205 = scmp.eq.s32.totalorder %s36, 1
      %p206 = por %p204, %p205
      %p208 = scmp.ne.s32.totalorder %s193, %s207
      %p209 = scmp.eq.s32.totalorder %s36, 0
      %p210 = por %p208, %p209
      %s212 = sadd.s32 %s211, 1
      %p215 = scmp.eq.s32.totalorder %s30, 1
      %p216 = scmp.ne.s32.totalorder %s211, %s213
      %p217 = scmp.eq.s32.totalorder %s30, 0
      %p218 = por %p216, %p217
      %p219 = scmp.ne.s32.totalorder %s211, %s213
      %p220 = scmp.eq.s32.totalorder %s35, 1
      %p221 = por %p219, %p220
      %p222 = scmp.ne.s32.totalorder %s213, %s214
      %p223 = scmp.eq.s32.totalorder %s35, 0
      %p224 = por %p222, %p223
      %p225 = scmp.ne.s32.totalorder %s213, %s214
      %p226 = scmp.eq.s32.totalorder %s36, 1
      %p227 = por %p225, %p226
      %p229 = scmp.ne.s32.totalorder %s214, %s228
      %p230 = scmp.eq.s32.totalorder %s36, 0
      %p231 = por %p229, %p230
      %s233 = sadd.s32 %s232, 1
      %p236 = scmp.eq.s32.totalorder %s30, 1
      %p237 = scmp.ne.s32.totalorder %s232, %s234
      %p238 = scmp.eq.s32.totalorder %s30, 0
      %p239 = por %p237, %p238
      %p240 = scmp.ne.s32.totalorder %s232, %s234
      %p241 = scmp.eq.s32.totalorder %s35, 1
      %p242 = por %p240, %p241
      %p243 = scmp.ne.s32.totalorder %s234, %s235
      %p244 = scmp.eq.s32.totalorder %s35, 0
      %p245 = por %p243, %p244
      %p246 = scmp.ne.s32.totalorder %s234, %s235
      %p247 = scmp.eq.s32.totalorder %s36, 1
      %p248 = por %p246, %p247
      %p250 = scmp.ne.s32.totalorder %s235, %s249
      %p251 = scmp.eq.s32.totalorder %s36, 0
      %p252 = por %p250, %p251
      %s254 = sadd.s32 %s253, 1
      %p257 = scmp.eq.s32.totalorder %s30, 1
      %p258 = scmp.ne.s32.totalorder %s253, %s255
      %p259 = scmp.eq.s32.totalorder %s30, 0
      %p260 = por %p258, %p259
      %p261 = scmp.ne.s32.totalorder %s253, %s255
      %p262 = scmp.eq.s32.totalorder %s35, 1
      %p263 = por %p261, %p262
      %p264 = scmp.ne.s32.totalorder %s255, %s256
      %p265 = scmp.eq.s32.totalorder %s35, 0
      %p266 = por %p264, %p265
      %p267 = scmp.ne.s32.totalorder %s255, %s256
      %p268 = scmp.eq.s32.totalorder %s36, 1
      %p269 = por %p267, %p268
      %p271 = scmp.ne.s32.totalorder %s256, %s270
      %p272 = scmp.eq.s32.totalorder %s36, 0
      %p273 = por %p271, %p272
      %s275 = sadd.s32 %s274, 1
      %p278 = scmp.eq.s32.totalorder %s30, 1
      %p279 = scmp.ne.s32.totalorder %s274, %s276
      %p280 = scmp.eq.s32.totalorder %s30, 0
      %p281 = por %p279, %p280
      %p282 = scmp.ne.s32.totalorder %s274, %s276
      %p283 = scmp.eq.s32.totalorder %s35, 1
      %p284 = por %p282, %p283
      %p285 = scmp.ne.s32.totalorder %s276, %s277
      %p286 = scmp.eq.s32.totalorder %s35, 0
      %p287 = por %p285, %p286
      %p288 = scmp.ne.s32.totalorder %s276, %s277
      %p289 = scmp.eq.s32.totalorder %s36, 1
      %p290 = por %p288, %p289
      %p292 = scmp.ne.s32.totalorder %s277, %s291
      %p293 = scmp.eq.s32.totalorder %s36, 0
      %p294 = por %p292, %p293
      %s296 = sadd.s32 %s295, 1
      %p299 = scmp.eq.s32.totalorder %s30, 1
      %p300 = scmp.ne.s32.totalorder %s295, %s297
      %p301 = scmp.eq.s32.totalorder %s30, 0
      %p302 = por %p300, %p301
      %p303 = scmp.ne.s32.totalorder %s295, %s297
      %p304 = scmp.eq.s32.totalorder %s35, 1
      %p305 = por %p303, %p304
      %p306 = scmp.ne.s32.totalorder %s297, %s298
      %p307 = scmp.eq.s32.totalorder %s35, 0
      %p308 = por %p306, %p307
      %p309 = scmp.ne.s32.totalorder %s297, %s298
      %p310 = scmp.eq.s32.totalorder %s36, 1
      %p311 = por %p309, %p310
      %p313 = scmp.ne.s32.totalorder %s298, %s312
      %p314 = scmp.eq.s32.totalorder %s36, 0
      %p315 = por %p313, %p314
      %s317 = sadd.s32 %s316, 1
      %p320 = scmp.eq.s32.totalorder %s30, 1
      %p321 = scmp.ne.s32.totalorder %s316, %s318
      %p322 = scmp.eq.s32.totalorder %s30, 0
      %p323 = por %p321, %p322
      %p324 = scmp.ne.s32.totalorder %s316, %s318
      %p325 = scmp.eq.s32.totalorder %s35, 1
      %p326 = por %p324, %p325
      %p327 = scmp.ne.s32.totalorder %s318, %s319
      %p328 = scmp.eq.s32.totalorder %s35, 0
      %p329 = por %p327, %p328
      %p330 = scmp.ne.s32.totalorder %s318, %s319
      %p331 = scmp.eq.s32.totalorder %s36, 1
      %p332 = por %p330, %p331
      %p334 = scmp.ne.s32.totalorder %s319, %s333
      %p335 = scmp.eq.s32.totalorder %s36, 0
      %p336 = por %p334, %p335
      %s338 = sadd.s32 %s337, 1
      %p341 = scmp.eq.s32.totalorder %s30, 1
      %p342 = scmp.ne.s32.totalorder %s337, %s339
      %p343 = scmp.eq.s32.totalorder %s30, 0
      %p344 = por %p342, %p343
      %p345 = scmp.ne.s32.totalorder %s337, %s339
      %p346 = scmp.eq.s32.totalorder %s35, 1
      %p347 = por %p345, %p346
      %p348 = scmp.ne.s32.totalorder %s339, %s340
      %p349 = scmp.eq.s32.totalorder %s35, 0
      %p350 = por %p348, %p349
      %p351 = scmp.ne.s32.totalorder %s339, %s340
      %p352 = scmp.eq.s32.totalorder %s36, 1
      %p353 = por %p351, %p352
      %p355 = scmp.ne.s32.totalorder %s340, %s354
      %p356 = scmp.eq.s32.totalorder %s36, 0
      %p357 = por %p355, %p356
      %s359 = sadd.s32 %s358, 1
      %p362 = scmp.eq.s32.totalorder %s30, 1
      %p363 = scmp.ne.s32.totalorder %s358, %s360
      %p364 = scmp.eq.s32.totalorder %s30, 0
      %p365 = por %p363, %p364
      %p366 = scmp.ne.s32.totalorder %s358, %s360
      %p367 = scmp.eq.s32.totalorder %s35, 1
      %p368 = por %p366, %p367
      %p369 = scmp.ne.s32.totalorder %s360, %s361
      %p370 = scmp.eq.s32.totalorder %s35, 0
      %p371 = por %p369, %p370
      %p372 = scmp.ne.s32.totalorder %s360, %s361
      %p373 = scmp.eq.s32.totalorder %s36, 1
      %p374 = por %p372, %p373
      %p376 = scmp.ne.s32.totalorder %s361, %s375
      %p377 = scmp.eq.s32.totalorder %s36, 0
      %p378 = por %p376, %p377
      %s380 = sadd.s32 %s379, 1
      %p383 = scmp.eq.s32.totalorder %s30, 1
      %p384 = scmp.ne.s32.totalorder %s379, %s381
      %p385 = scmp.eq.s32.totalorder %s30, 0
      %p386 = por %p384, %p385
      %p387 = scmp.ne.s32.totalorder %s379, %s381
      %p388 = scmp.eq.s32.totalorder %s35, 1
      %p389 = por %p387, %p388
      %p390 = scmp.ne.s32.totalorder %s381, %s382
      %p391 = scmp.eq.s32.totalorder %s35, 0
      %p392 = por %p390, %p391
      %p393 = scmp.ne.s32.totalorder %s381, %s382
      %p394 = scmp.eq.s32.totalorder %s36, 1
      %p395 = por %p393, %p394
      %p397 = scmp.ne.s32.totalorder %s382, %s396
      %p398 = scmp.eq.s32.totalorder %s36, 0
      %p399 = por %p397, %p398
      %s401 = sadd.s32 %s400, 1
      %p404 = scmp.eq.s32.totalorder %s30, 1
      %p405 = scmp.ne.s32.totalorder %s400, %s402
      %p406 = scmp.eq.s32.totalorder %s30, 0
      %p407 = por %p405, %p406
      %p408 = scmp.ne.s32.totalorder %s400, %s402
      %p409 = scmp.eq.s32.totalorder %s35, 1
      %p410 = por %p408, %p409
      %p411 = scmp.ne.s32.totalorder %s402, %s403
      %p412 = scmp.eq.s32.totalorder %s35, 0
      %p413 = por %p411, %p412
      %p414 = scmp.ne.s32.totalorder %s402, %s403
      %p415 = scmp.eq.s32.totalorder %s36, 1
      %p416 = por %p414, %p415
      %p418 = scmp.ne.s32.totalorder %s403, %s417
      %p419 = scmp.eq.s32.totalorder %s36, 0
      %p420 = por %p418, %p419
      %s422 = sadd.s32 %s421, 1
      %p425 = scmp.eq.s32.totalorder %s30, 1
      %p426 = scmp.ne.s32.totalorder %s421, %s423
      %p427 = scmp.eq.s32.totalorder %s30, 0
      %p428 = por %p426, %p427
      %p429 = scmp.ne.s32.totalorder %s421, %s423
      %p430 = scmp.eq.s32.totalorder %s35, 1
      %p431 = por %p429, %p430
      %p432 = scmp.ne.s32.totalorder %s423, %s424
      %p433 = scmp.eq.s32.totalorder %s35, 0
      %p434 = por %p432, %p433
      %p435 = scmp.ne.s32.totalorder %s423, %s424
      %p436 = scmp.eq.s32.totalorder %s36, 1
      %p437 = por %p435, %p436
      %p439 = scmp.ne.s32.totalorder %s424, %s438
      %p440 = scmp.eq.s32.totalorder %s36, 0
      %p441 = por %p439, %p440
      %s443 = sadd.s32 %s442, 1
      %p446 = scmp.eq.s32.totalorder %s30, 1
      %p447 = scmp.ne.s32.totalorder %s442, %s444
      %p448 = scmp.eq.s32.totalorder %s30, 0
      %p449 = por %p447, %p448
      %p450 = scmp.ne.s32.totalorder %s442, %s444
      %p451 = scmp.eq.s32.totalorder %s35, 1
      %p452 = por %p450, %p451
      %p453 = scmp.ne.s32.totalorder %s444, %s445
      %p454 = scmp.eq.s32.totalorder %s35, 0
      %p455 = por %p453, %p454
      %p456 = scmp.ne.s32.totalorder %s444, %s445
      %p457 = scmp.eq.s32.totalorder %s36, 1
      %p458 = por %p456, %p457
      %p460 = scmp.ne.s32.totalorder %s445, %s459
      %p461 = scmp.eq.s32.totalorder %s36, 0
      %p462 = por %p460, %p461
      %s464 = sadd.s32 %s463, 1
      %p467 = scmp.eq.s32.totalorder %s30, 1
      %p468 = scmp.ne.s32.totalorder %s463, %s465
      %p469 = scmp.eq.s32.totalorder %s30, 0
      %p470 = por %p468, %p469
      %p471 = scmp.ne.s32.totalorder %s463, %s465
      %p472 = scmp.eq.s32.totalorder %s35, 1
      %p473 = por %p471, %p472
      %p474 = scmp.ne.s32.totalorder %s465, %s466
      %p475 = scmp.eq.s32.totalorder %s35, 0
      %p476 = por %p474, %p475
      %p477 = scmp.ne.s32.totalorder %s465, %s466
      %p478 = scmp.eq.s32.totalorder %s36, 1
      %p479 = por %p477, %p478
      %p481 = scmp.ne.s32.totalorder %s466, %s480
      %p482 = scmp.eq.s32.totalorder %s36, 0
      %p483 = por %p481, %p482
      %s484 = ssub.s32 %s30, %s37
      %p485 = scmp.eq.s32.totalorder %s484, 0
      %s487 = sadd.s32 %s486, 1
      %s488 = scalar_select %p485, %s486, %s487
      %p491 = pneg %p485
      %p492 = scmp.eq.s32.totalorder %s30, 1
      %p493 = por %p491, %p492
      %p494 = scmp.ne.s32.totalorder %s486, %s489
      %p495 = scmp.eq.s32.totalorder %s30, 0
      %p496 = por %p494, %p495
      %p497 = scmp.ne.s32.totalorder %s486, %s489
      %p498 = scmp.eq.s32.totalorder %s35, 1
      %p499 = por %p497, %p498
      %p500 = scmp.ne.s32.totalorder %s489, %s490
      %p501 = scmp.eq.s32.totalorder %s35, 0
      %p502 = por %p500, %p501
      %p503 = scmp.ne.s32.totalorder %s489, %s490
      %p504 = scmp.eq.s32.totalorder %s36, 1
      %p505 = por %p503, %p504
      %p507 = scmp.ne.s32.totalorder %s490, %s506
      %p508 = scmp.eq.s32.totalorder %s36, 0
      %p509 = por %p507, %p508
      %p510 = scmp.le.s32.totalorder 1, %s30
      %p511 = scmp.lt.s32.totalorder %s30, 3
      %p512 = pnand %p510, %p511
      %p513 = pneg %p512
      // Predicated region
      $region9: #{tpu_custom_call.1} parent=5 // pred_check
        _
      $region10: #{tpu_custom_call.1} parent=5 // pred_check_branch
        %515 = sbr.rel (%p512) target = $region12
      $region11: #{tpu_custom_call.1} parent=5 // pred_region
        %s516 = ssub.s32 %s30, 1
        // Predicated region
        $region13: #{tpu_custom_call.1} parent=11 // pred_check
          %p517 = pneg %p77
        $region14: #{tpu_custom_call.1} parent=11 // pred_check_branch
          %519 = sbr.rel (%p517) target = $region16
        $region15: #{tpu_custom_call.1} parent=11 // pred_region
          _
        $region16: #{tpu_custom_call.1} parent=11 // pred_fallthru
          _
        // Predicated region
        $region17: #{tpu_custom_call.1} parent=11 // pred_check
          %p520 = pneg %p98
        $region18: #{tpu_custom_call.1} parent=11 // pred_check_branch
          %522 = sbr.rel (%p520) target = $region20
        $region19: #{tpu_custom_call.1} parent=11 // pred_region
          _
        $region20: #{tpu_custom_call.1} parent=11 // pred_fallthru
          _
        // Predicated region
        $region21: #{tpu_custom_call.1} parent=11 // pred_check
          %p523 = pneg %p119
        $region22: #{tpu_custom_call.1} parent=11 // pred_check_branch
          %525 = sbr.rel (%p523) target = $region24
        $region23: #{tpu_custom_call.1} parent=11 // pred_region
          _
        $region24: #{tpu_custom_call.1} parent=11 // pred_fallthru
          _
        // Predicated region
        $region25: #{tpu_custom_call.1} parent=11 // pred_check
          %p526 = pneg %p140
        $region26: #{tpu_custom_call.1} parent=11 // pred_check_branch
          %528 = sbr.rel (%p526) target = $region28
        $region27: #{tpu_custom_call.1} parent=11 // pred_region
          _
        $region28: #{tpu_custom_call.1} parent=11 // pred_fallthru
          _
        // Predicated region
        $region29: #{tpu_custom_call.1} parent=11 // pred_check
          %p529 = pneg %p161
        $region30: #{tpu_custom_call.1} parent=11 // pred_check_branch
          %531 = sbr.rel (%p529) target = $region32
        $region31: #{tpu_custom_call.1} parent=11 // pred_region
          _
        $region32: #{tpu_custom_call.1} parent=11 // pred_fallthru
          _
        // Predicated region
        $region33: #{tpu_custom_call.1} parent=11 // pred_check
          %p532 = pneg %p182
        $region34: #{tpu_custom_call.1} parent=11 // pred_check_branch
          %534 = sbr.rel (%p532) target = $region36
        $region35: #{tpu_custom_call.1} parent=11 // pred_region
          _
        $region36: #{tpu_custom_call.1} parent=11 // pred_fallthru
          _
        // Predicated region
        $region37: #{tpu_custom_call.1} parent=11 // pred_check
          %p535 = pneg %p203
        $region38: #{tpu_custom_call.1} parent=11 // pred_check_branch
          %537 = sbr.rel (%p535) target = $region40
        $region39: #{tpu_custom_call.1} parent=11 // pred_region
          _
        $region40: #{tpu_custom_call.1} parent=11 // pred_fallthru
          _
        // Predicated region
        $region41: #{tpu_custom_call.1} parent=11 // pred_check
          %p538 = pneg %p224
        $region42: #{tpu_custom_call.1} parent=11 // pred_check_branch
          %540 = sbr.rel (%p538) target = $region44
        $region43: #{tpu_custom_call.1} parent=11 // pred_region
          _
        $region44: #{tpu_custom_call.1} parent=11 // pred_fallthru
          _
        // Predicated region
        $region45: #{tpu_custom_call.1} parent=11 // pred_check
          %p541 = pneg %p245
        $region46: #{tpu_custom_call.1} parent=11 // pred_check_branch
          %543 = sbr.rel (%p541) target = $region48
        $region47: #{tpu_custom_call.1} parent=11 // pred_region
          _
        $region48: #{tpu_custom_call.1} parent=11 // pred_fallthru
          _
        // Predicated region
        $region49: #{tpu_custom_call.1} parent=11 // pred_check
          %p544 = pneg %p266
        $region50: #{tpu_custom_call.1} parent=11 // pred_check_branch
          %546 = sbr.rel (%p544) target = $region52
        $region51: #{tpu_custom_call.1} parent=11 // pred_region
          _
        $region52: #{tpu_custom_call.1} parent=11 // pred_fallthru
          _
        // Predicated region
        $region53: #{tpu_custom_call.1} parent=11 // pred_check
          %p547 = pneg %p287
        $region54: #{tpu_custom_call.1} parent=11 // pred_check_branch
          %549 = sbr.rel (%p547) target = $region56
        $region55: #{tpu_custom_call.1} parent=11 // pred_region
          _
        $region56: #{tpu_custom_call.1} parent=11 // pred_fallthru
          _
        // Predicated region
        $region57: #{tpu_custom_call.1} parent=11 // pred_check
          %p550 = pneg %p308
        $region58: #{tpu_custom_call.1} parent=11 // pred_check_branch
          %552 = sbr.rel (%p550) target = $region60
        $region59: #{tpu_custom_call.1} parent=11 // pred_region
          _
        $region60: #{tpu_custom_call.1} parent=11 // pred_fallthru
          _
        // Predicated region
        $region61: #{tpu_custom_call.1} parent=11 // pred_check
          %p553 = pneg %p329
        $region62: #{tpu_custom_call.1} parent=11 // pred_check_branch
          %555 = sbr.rel (%p553) target = $region64
        $region63: #{tpu_custom_call.1} parent=11 // pred_region
          _
        $region64: #{tpu_custom_call.1} parent=11 // pred_fallthru
          _
        // Predicated region
        $region65: #{tpu_custom_call.1} parent=11 // pred_check
          %p556 = pneg %p350
        $region66: #{tpu_custom_call.1} parent=11 // pred_check_branch
          %558 = sbr.rel (%p556) target = $region68
        $region67: #{tpu_custom_call.1} parent=11 // pred_region
          _
        $region68: #{tpu_custom_call.1} parent=11 // pred_fallthru
          _
        // Predicated region
        $region69: #{tpu_custom_call.1} parent=11 // pred_check
          %p559 = pneg %p371
        $region70: #{tpu_custom_call.1} parent=11 // pred_check_branch
          %561 = sbr.rel (%p559) target = $region72
        $region71: #{tpu_custom_call.1} parent=11 // pred_region
          _
        $region72: #{tpu_custom_call.1} parent=11 // pred_fallthru
          _
        // Predicated region
        $region73: #{tpu_custom_call.1} parent=11 // pred_check
          %p562 = pneg %p392
        $region74: #{tpu_custom_call.1} parent=11 // pred_check_branch
          %564 = sbr.rel (%p562) target = $region76
        $region75: #{tpu_custom_call.1} parent=11 // pred_region
          _
        $region76: #{tpu_custom_call.1} parent=11 // pred_fallthru
          _
        // Predicated region
        $region77: #{tpu_custom_call.1} parent=11 // pred_check
          %p565 = pneg %p413
        $region78: #{tpu_custom_call.1} parent=11 // pred_check_branch
          %567 = sbr.rel (%p565) target = $region80
        $region79: #{tpu_custom_call.1} parent=11 // pred_region
          _
        $region80: #{tpu_custom_call.1} parent=11 // pred_fallthru
          _
        // Predicated region
        $region81: #{tpu_custom_call.1} parent=11 // pred_check
          %p568 = pneg %p434
        $region82: #{tpu_custom_call.1} parent=11 // pred_check_branch
          %570 = sbr.rel (%p568) target = $region84
        $region83: #{tpu_custom_call.1} parent=11 // pred_region
          _
        $region84: #{tpu_custom_call.1} parent=11 // pred_fallthru
          _
        // Predicated region
        $region85: #{tpu_custom_call.1} parent=11 // pred_check
          %p571 = pneg %p455
        $region86: #{tpu_custom_call.1} parent=11 // pred_check_branch
          %573 = sbr.rel (%p571) target = $region88
        $region87: #{tpu_custom_call.1} parent=11 // pred_region
          _
        $region88: #{tpu_custom_call.1} parent=11 // pred_fallthru
          _
        // Predicated region
        $region89: #{tpu_custom_call.1} parent=11 // pred_check
          %p574 = pneg %p476
        $region90: #{tpu_custom_call.1} parent=11 // pred_check_branch
          %576 = sbr.rel (%p574) target = $region92
        $region91: #{tpu_custom_call.1} parent=11 // pred_region
          _
        $region92: #{tpu_custom_call.1} parent=11 // pred_fallthru
          _
      $region12: #{tpu_custom_call.1} parent=5 // pred_fallthru
        _
      %p577 = scmp.lt.s32.totalorder %s30, 2
      // Predicated region
      $region93: #{tpu_custom_call.1} parent=5 // pred_check
        %p578 = pneg %p577
      $region94: #{tpu_custom_call.1} parent=5 // pred_check_branch
        %580 = sbr.rel (%p578) target = $region96
      $region95: #{tpu_custom_call.1} parent=5 // pred_region
        // Predicated region
        $region97: #{tpu_custom_call.1} parent=95 // pred_check
          %p581 = pneg %p50
        $region98: #{tpu_custom_call.1} parent=95 // pred_check_branch
          %583 = sbr.rel (%p581) target = $region100
        $region99: #{tpu_custom_call.1} parent=95 // pred_region
          %p584 = scmp.lt.s32.totalorder %s30, 1
          %s585 = scalar_select %p584, %s30, 1
          %s586 = smul.addr %s585, 8
          %s587 = scalar_lea.vmem %s0, %s586
        $region100: #{tpu_custom_call.1} parent=95 // pred_fallthru
          _
      $region96: #{tpu_custom_call.1} parent=5 // pred_fallthru
        _
      %p588 = scmp.le.s32.totalorder 1, %s30
      %p589 = scmp.lt.s32.totalorder %s30, 3
      %p590 = pnand %p588, %p589
      %p591 = pneg %p590
      // Predicated region
      $region101: #{tpu_custom_call.1} parent=5 // pred_check
        _
      $region102: #{tpu_custom_call.1} parent=5 // pred_check_branch
        %593 = sbr.rel (%p590) target = $region104
      $region103: #{tpu_custom_call.1} parent=5 // pred_region
        %s594 = ssub.s32 %s30, 1
        %p595 = scmp.lt.s32.totalorder %s35, 1
        %s596 = scalar_select %p595, %s35, 1
        %s597 = smul.addr %s596, 8
        %s598 = scalar_lea.vmem %s0, %s597
        %p599 = pneg %p56
        %p600 = pneg %p53
        %p601 = pneg %p77
        %p602 = pneg %p74
        %p603 = pneg %p98
        %p604 = pneg %p95
        %p605 = pneg %p119
        %p606 = pneg %p116
        %p607 = pneg %p140
        %p608 = pneg %p137
        %p609 = pneg %p161
        %p610 = pneg %p158
        %p611 = pneg %p182
        %p612 = pneg %p179
        %p613 = pneg %p203
        %p614 = pneg %p200
        %p615 = pneg %p224
        %p616 = pneg %p221
        %p617 = pneg %p245
        %p618 = pneg %p242
        %p619 = pneg %p266
        %p620 = pneg %p263
        %p621 = pneg %p287
        %p622 = pneg %p284
        %p623 = pneg %p308
        %p624 = pneg %p305
        %p625 = pneg %p329
        %p626 = pneg %p326
        %p627 = pneg %p350
        %p628 = pneg %p347
        %p629 = pneg %p371
        %p630 = pneg %p368
        %p631 = pneg %p392
        %p632 = pneg %p389
        %p633 = pneg %p413
        %p634 = pneg %p410
        %p635 = pneg %p434
        %p636 = pneg %p431
        %p637 = pneg %p455
        %p638 = pneg %p452
        %p639 = pneg %p476
        %p640 = pneg %p473
        %p641 = pneg %p502
        %p642 = pneg %p499
        %s643 = sand.u32 %s489, 1
        %s644 = scalar_lea.sflag [#allocation3], %s643
        %s645 = sand.u32 %s489, 1
        %s646 = smul.addr %s645, 8
        %s647 = scalar_lea.vmem [#allocation2], %s646
        %p648 = scmp.lt.s32.totalorder %s35, 1
        %s649 = scalar_select %p648, %s35, 1
        %s650 = smul.addr %s649, 8
        %s651 = scalar_lea.vmem %s0, %s650
        %v652 = vld [vmem:[%s651] sm:$0xff]
        %v653 = vld [vmem:[%s1] sm:$0xff]
        %v654 = vld [vmem:[%s1 + $0x8] sm:$0xff]
        %v655 = vld [vmem:[%s1 + $0x10] sm:$0xff]
        %v656 = vld [vmem:[%s1 + $0x18] sm:$0xff]
        %v657 = vld [vmem:[%s1 + $0x20] sm:$0xff]
        %v658 = vld [vmem:[%s1 + $0x28] sm:$0xff]
        %v659 = vld [vmem:[%s1 + $0x30] sm:$0xff]
        %v660 = vld [vmem:[%s1 + $0x38] sm:$0xff]
        %v661 = vld [vmem:[%s2] sm:$0x1]
        %v663 = vlaneseq
        %v664 = vshrl.u32 %v663, 7
        %v665 = vsub.s32 0, %v664
        %v666 = vrot.slane %v661, %v665
        %vm668 = vcmask 523264
        %v670 = vsel %vm668, %v652, 0
        %672 = vmatprep.subr.mxu0 0.0
        %673 = vmatpush1.msra.mxu0 %v653
        %674 = vmatprep.subr.mxu0 0.0
        %675 = vmatpush1.msra.mxu0 %v654
        %676 = vmatprep.subr.mxu0 0.0
        %677 = vmatpush1.msra.mxu0 %v655
        %678 = vmatprep.subr.mxu0 0.0
        %679 = vmatpush1.msra.mxu0 %v656
        %680 = vmatprep.subr.mxu0 0.0
        %681 = vmatpush1.msra.mxu0 %v657
        %682 = vmatprep.subr.mxu0 0.0
        %683 = vmatpush1.msra.mxu0 %v658
        %684 = vmatprep.subr.mxu0 0.0
        %685 = vmatpush1.msra.mxu0 %v659
        %686 = vmatprep.subr.mxu0 0.0
        %687 = vmatpush1.msra.mxu0 %v660
        %688 = vmatprep.subr.mxu0 0.0
        %689 = vmatpush1.msra.mxu0 0.0
        %690 = vmatprep.subr.mxu0 0.0
        %691 = vmatpush1.msra.mxu0 0.0
        %692 = vmatprep.subr.mxu0 0.0
        %693 = vmatpush1.msra.mxu0 0.0
        %694 = vmatprep.subr.mxu0 0.0
        %695 = vmatpush1.msra.mxu0 0.0
        %696 = vmatprep.subr.mxu0 0.0
        %697 = vmatpush1.msra.mxu0 0.0
        %698 = vmatprep.subr.mxu0 0.0
        %699 = vmatpush1.msra.mxu0 0.0
        %700 = vmatprep.subr.mxu0 0.0
        %701 = vmatpush1.msra.mxu0 0.0
        %702 = vmatprep.subr.mxu0 0.0
        %703 = vmatpush1.msra.mxu0 0.0
        %704 = vmatprep.subr.mxu0 0.0
        %705 = vmatpush1.msra.mxu0 0.0
        %706 = vmatprep.subr.mxu0 0.0
        %707 = vmatpush1.msra.mxu0 0.0
        %708 = vmatprep.subr.mxu0 0.0
        %709 = vmatpush1.msra.mxu0 0.0
        %710 = vmatprep.subr.mxu0 0.0
        %711 = vmatpush1.msra.mxu0 0.0
        %712 = vmatprep.subr.mxu0 0.0
        %713 = vmatpush1.msra.mxu0 0.0
        %714 = vmatprep.subr.mxu0 0.0
        %715 = vmatpush1.msra.mxu0 0.0
        %716 = vmatprep.subr.mxu0 0.0
        %717 = vmatpush1.msra.mxu0 0.0
        %718 = vmatprep.subr.mxu0 0.0
        %719 = vmatpush1.msra.mxu0 0.0
        %720 = vmatprep.subr.mxu0 0.0
        %721 = vmatpush1.msra.mxu0 0.0
        %722 = vmatprep.subr.mxu0 0.0
        %723 = vmatpush1.msra.mxu0 0.0
        %724 = vmatprep.subr.mxu0 0.0
        %725 = vmatpush1.msra.mxu0 0.0
        %726 = vmatprep.subr.mxu0 0.0
        %727 = vmatpush1.msra.mxu0 0.0
        %728 = vmatprep.subr.mxu0 0.0
        %729 = vmatpush1.msra.mxu0 0.0
        %730 = vmatprep.subr.mxu0 0.0
        %731 = vmatpush1.msra.mxu0 0.0
        %732 = vmatprep.subr.mxu0 0.0
        %733 = vmatpush1.msra.mxu0 0.0
        %734 = vmatprep.subr.mxu0 0.0
        %735 = vmatpush1.msra.mxu0 0.0
        %736 = vmatprep.mubr.f32.mxu0 0.0
        %737 = vmatmul.mubr.f32.gmra.mrb[0].mxu0 %v670
        %v738 = vpop.f32.mrb[0].mxu0
        %v739 = vadd.f32 %v666, %v738
        %v740 = vpop.f32.mrb[0].mxu0
        %741 = vdwg.mxu0
        %v742 = vld [vmem:[%s3] sm:$0xff]
        %v743 = vld [vmem:[%s3 + $0x8] sm:$0xff]
        %v744 = vld [vmem:[%s3 + $0x10] sm:$0xff]
        %v745 = vld [vmem:[%s3 + $0x18] sm:$0xff]
        %v746 = vld [vmem:[%s3 + $0x20] sm:$0xff]
        %v747 = vld [vmem:[%s3 + $0x28] sm:$0xff]
        %v748 = vld [vmem:[%s3 + $0x30] sm:$0xff]
        %v749 = vld [vmem:[%s3 + $0x38] sm:$0xff]
        %v750 = vld [vmem:[%s4] sm:$0x1]
        %v752 = vlaneseq
        %v753 = vshrl.u32 %v752, 7
        %v754 = vsub.s32 0, %v753
        %v755 = vrot.slane %v750, %v754
        %757 = vmatprep.subr.mxu0 0.0
        %758 = vmatpush1.msra.mxu0 %v742
        %759 = vmatprep.subr.mxu0 0.0
        %760 = vmatpush1.msra.mxu0 %v743
        %761 = vmatprep.subr.mxu0 0.0
        %762 = vmatpush1.msra.mxu0 %v744
        %763 = vmatprep.subr.mxu0 0.0
        %764 = vmatpush1.msra.mxu0 %v745
        %765 = vmatprep.subr.mxu0 0.0
        %766 = vmatpush1.msra.mxu0 %v746
        %767 = vmatprep.subr.mxu0 0.0
        %768 = vmatpush1.msra.mxu0 %v747
        %769 = vmatprep.subr.mxu0 0.0
        %770 = vmatpush1.msra.mxu0 %v748
        %771 = vmatprep.subr.mxu0 0.0
        %772 = vmatpush1.msra.mxu0 %v749
        %773 = vmatprep.subr.mxu0 0.0
        %774 = vmatpush1.msra.mxu0 0.0
        %775 = vmatprep.subr.mxu0 0.0
        %776 = vmatpush1.msra.mxu0 0.0
        %777 = vmatprep.subr.mxu0 0.0
        %778 = vmatpush1.msra.mxu0 0.0
        %779 = vmatprep.subr.mxu0 0.0
        %780 = vmatpush1.msra.mxu0 0.0
        %781 = vmatprep.subr.mxu0 0.0
        %782 = vmatpush1.msra.mxu0 0.0
        %783 = vmatprep.subr.mxu0 0.0
        %784 = vmatpush1.msra.mxu0 0.0
        %785 = vmatprep.subr.mxu0 0.0
        %786 = vmatpush1.msra.mxu0 0.0
        %787 = vmatprep.subr.mxu0 0.0
        %788 = vmatpush1.msra.mxu0 0.0
        %789 = vmatprep.subr.mxu0 0.0
        %790 = vmatpush1.msra.mxu0 0.0
        %791 = vmatprep.subr.mxu0 0.0
        %792 = vmatpush1.msra.mxu0 0.0
        %793 = vmatprep.subr.mxu0 0.0
        %794 = vmatpush1.msra.mxu0 0.0
        %795 = vmatprep.subr.mxu0 0.0
        %796 = vmatpush1.msra.mxu0 0.0
        %797 = vmatprep.subr.mxu0 0.0
        %798 = vmatpush1.msra.mxu0 0.0
        %799 = vmatprep.subr.mxu0 0.0
        %800 = vmatpush1.msra.mxu0 0.0
        %801 = vmatprep.subr.mxu0 0.0
        %802 = vmatpush1.msra.mxu0 0.0
        %803 = vmatprep.subr.mxu0 0.0
        %804 = vmatpush1.msra.mxu0 0.0
        %805 = vmatprep.subr.mxu0 0.0
        %806 = vmatpush1.msra.mxu0 0.0
        %807 = vmatprep.subr.mxu0 0.0
        %808 = vmatpush1.msra.mxu0 0.0
        %809 = vmatprep.subr.mxu0 0.0
        %810 = vmatpush1.msra.mxu0 0.0
        %811 = vmatprep.subr.mxu0 0.0
        %812 = vmatpush1.msra.mxu0 0.0
        %813 = vmatprep.subr.mxu0 0.0
        %814 = vmatpush1.msra.mxu0 0.0
        %815 = vmatprep.subr.mxu0 0.0
        %816 = vmatpush1.msra.mxu0 0.0
        %817 = vmatprep.subr.mxu0 0.0
        %818 = vmatpush1.msra.mxu0 0.0
        %819 = vmatprep.subr.mxu0 0.0
        %820 = vmatpush1.msra.mxu0 0.0
        %821 = vmatprep.mubr.f32.mxu0 0.0
        %822 = vmatmul.mubr.f32.gmra.mrb[0].mxu0 %v670
        %v823 = vpop.f32.mrb[0].mxu0
        %v824 = vadd.f32 %v755, %v823
        %v825 = vpop.f32.mrb[0].mxu0
        %826 = vdwg.mxu0
        %v827 = vld [vmem:[%s5] sm:$0xff]
        %v828 = vld [vmem:[%s5 + $0x8] sm:$0xff]
        %v829 = vld [vmem:[%s5 + $0x10] sm:$0xff]
        %v830 = vld [vmem:[%s5 + $0x18] sm:$0xff]
        %v831 = vld [vmem:[%s5 + $0x20] sm:$0xff]
        %v832 = vld [vmem:[%s5 + $0x28] sm:$0xff]
        %v833 = vld [vmem:[%s5 + $0x30] sm:$0xff]
        %v834 = vld [vmem:[%s5 + $0x38] sm:$0xff]
        %v835 = vld [vmem:[%s6] sm:$0x1]
        %v837 = vlaneseq
        %v838 = vshrl.u32 %v837, 7
        %v839 = vsub.s32 0, %v838
        %v840 = vrot.slane %v835, %v839
        %842 = vmatprep.subr.mxu0 0.0
        %843 = vmatpush1.msra.mxu0 %v827
        %844 = vmatprep.subr.mxu0 0.0
        %845 = vmatpush1.msra.mxu0 %v828
        %846 = vmatprep.subr.mxu0 0.0
        %847 = vmatpush1.msra.mxu0 %v829
        %848 = vmatprep.subr.mxu0 0.0
        %849 = vmatpush1.msra.mxu0 %v830
        %850 = vmatprep.subr.mxu0 0.0
        %851 = vmatpush1.msra.mxu0 %v831
        %852 = vmatprep.subr.mxu0 0.0
        %853 = vmatpush1.msra.mxu0 %v832
        %854 = vmatprep.subr.mxu0 0.0
        %855 = vmatpush1.msra.mxu0 %v833
        %856 = vmatprep.subr.mxu0 0.0
        %857 = vmatpush1.msra.mxu0 %v834
        %858 = vmatprep.subr.mxu0 0.0
        %859 = vmatpush1.msra.mxu0 0.0
        %860 = vmatprep.subr.mxu0 0.0
        %861 = vmatpush1.msra.mxu0 0.0
        %862 = vmatprep.subr.mxu0 0.0
        %863 = vmatpush1.msra.mxu0 0.0
        %864 = vmatprep.subr.mxu0 0.0
        %865 = vmatpush1.msra.mxu0 0.0
        %866 = vmatprep.subr.mxu0 0.0
        %867 = vmatpush1.msra.mxu0 0.0
        %868 = vmatprep.subr.mxu0 0.0
        %869 = vmatpush1.msra.mxu0 0.0
        %870 = vmatprep.subr.mxu0 0.0
        %871 = vmatpush1.msra.mxu0 0.0
        %872 = vmatprep.subr.mxu0 0.0
        %873 = vmatpush1.msra.mxu0 0.0
        %874 = vmatprep.subr.mxu0 0.0
        %875 = vmatpush1.msra.mxu0 0.0
        %876 = vmatprep.subr.mxu0 0.0
        %877 = vmatpush1.msra.mxu0 0.0
        %878 = vmatprep.subr.mxu0 0.0
        %879 = vmatpush1.msra.mxu0 0.0
        %880 = vmatprep.subr.mxu0 0.0
        %881 = vmatpush1.msra.mxu0 0.0
        %882 = vmatprep.subr.mxu0 0.0
        %883 = vmatpush1.msra.mxu0 0.0
        %884 = vmatprep.subr.mxu0 0.0
        %885 = vmatpush1.msra.mxu0 0.0
        %886 = vmatprep.subr.mxu0 0.0
        %887 = vmatpush1.msra.mxu0 0.0
        %888 = vmatprep.subr.mxu0 0.0
        %889 = vmatpush1.msra.mxu0 0.0
        %890 = vmatprep.subr.mxu0 0.0
        %891 = vmatpush1.msra.mxu0 0.0
        %892 = vmatprep.subr.mxu0 0.0
        %893 = vmatpush1.msra.mxu0 0.0
        %894 = vmatprep.subr.mxu0 0.0
        %895 = vmatpush1.msra.mxu0 0.0
        %896 = vmatprep.subr.mxu0 0.0
        %897 = vmatpush1.msra.mxu0 0.0
        %898 = vmatprep.subr.mxu0 0.0
        %899 = vmatpush1.msra.mxu0 0.0
        %900 = vmatprep.subr.mxu0 0.0
        %901 = vmatpush1.msra.mxu0 0.0
        %902 = vmatprep.subr.mxu0 0.0
        %903 = vmatpush1.msra.mxu0 0.0
        %904 = vmatprep.subr.mxu0 0.0
        %905 = vmatpush1.msra.mxu0 0.0
        %906 = vmatprep.mubr.f32.mxu0 0.0
        %907 = vmatmul.mubr.f32.gmra.mrb[0].mxu0 %v670
        %v908 = vpop.f32.mrb[0].mxu0
        %v909 = vadd.f32 %v840, %v908
        %v910 = vpop.f32.mrb[0].mxu0
        %911 = vdwg.mxu0
        %vm912 = vcmask 130048
        %v914 = vsel %vm912, %v739, 0
        %v917 = vsel %vm912, %v824, 0
        %919 = vmatprep.subr.mxu0 0.0
        %920 = vmatpush1.xpose.msra.mxu0 %v917
        %921 = vmatprep.subr.mxu0 0.0
        %922 = vmatpush1.xpose.msra.mxu0 0.0
        %923 = vmatprep.subr.mxu0 0.0
        %924 = vmatpush1.xpose.msra.mxu0 0.0
        %925 = vmatprep.subr.mxu0 0.0
        %926 = vmatpush1.xpose.msra.mxu0 0.0
        %927 = vmatprep.subr.mxu0 0.0
        %928 = vmatpush1.xpose.msra.mxu0 0.0
        %929 = vmatprep.subr.mxu0 0.0
        %930 = vmatpush1.xpose.msra.mxu0 0.0
        %931 = vmatprep.subr.mxu0 0.0
        %932 = vmatpush1.xpose.msra.mxu0 0.0
        %933 = vmatprep.subr.mxu0 0.0
        %934 = vmatpush1.xpose.msra.mxu0 0.0
        %935 = vmatprep.subr.mxu0 0.0
        %936 = vmatpush1.xpose.msra.mxu0 0.0
        %937 = vmatprep.subr.mxu0 0.0
        %938 = vmatpush1.xpose.msra.mxu0 0.0
        %939 = vmatprep.subr.mxu0 0.0
        %940 = vmatpush1.xpose.msra.mxu0 0.0
        %941 = vmatprep.subr.mxu0 0.0
        %942 = vmatpush1.xpose.msra.mxu0 0.0
        %943 = vmatprep.subr.mxu0 0.0
        %944 = vmatpush1.xpose.msra.mxu0 0.0
        %945 = vmatprep.subr.mxu0 0.0
        %946 = vmatpush1.xpose.msra.mxu0 0.0
        %947 = vmatprep.subr.mxu0 0.0
        %948 = vmatpush1.xpose.msra.mxu0 0.0
        %949 = vmatprep.subr.mxu0 0.0
        %950 = vmatpush1.xpose.msra.mxu0 0.0
        %951 = vmatprep.subr.mxu0 0.0
        %952 = vmatpush1.xpose.msra.mxu0 0.0
        %953 = vmatprep.subr.mxu0 0.0
        %954 = vmatpush1.xpose.msra.mxu0 0.0
        %955 = vmatprep.subr.mxu0 0.0
        %956 = vmatpush1.xpose.msra.mxu0 0.0
        %957 = vmatprep.subr.mxu0 0.0
        %958 = vmatpush1.xpose.msra.mxu0 0.0
        %959 = vmatprep.subr.mxu0 0.0
        %960 = vmatpush1.xpose.msra.mxu0 0.0
        %961 = vmatprep.subr.mxu0 0.0
        %962 = vmatpush1.xpose.msra.mxu0 0.0
        %963 = vmatprep.subr.mxu0 0.0
        %964 = vmatpush1.xpose.msra.mxu0 0.0
        %965 = vmatprep.subr.mxu0 0.0
        %966 = vmatpush1.xpose.msra.mxu0 0.0
        %967 = vmatprep.subr.mxu0 0.0
        %968 = vmatpush1.xpose.msra.mxu0 0.0
        %969 = vmatprep.subr.mxu0 0.0
        %970 = vmatpush1.xpose.msra.mxu0 0.0
        %971 = vmatprep.subr.mxu0 0.0
        %972 = vmatpush1.xpose.msra.mxu0 0.0
        %973 = vmatprep.subr.mxu0 0.0
        %974 = vmatpush1.xpose.msra.mxu0 0.0
        %975 = vmatprep.subr.mxu0 0.0
        %976 = vmatpush1.xpose.msra.mxu0 0.0
        %977 = vmatprep.subr.mxu0 0.0
        %978 = vmatpush1.xpose.msra.mxu0 0.0
        %979 = vmatprep.subr.mxu0 0.0
        %980 = vmatpush1.xpose.msra.mxu0 0.0
        %981 = vmatprep.subr.mxu0 0.0
        %982 = vmatpush1.xpose.msra.mxu0 0.0
        %983 = vmatprep.mubr.f32.mxu0 0.0
        %984 = vmatmul.mubr.f32.gmra.mrb[0].mxu0 %v914
        %v985 = vpop.f32.mrb[0].mxu0
        %v986 = vadd.f32 0.0, %v985
        %v987 = vpop.f32.mrb[0].mxu0
        %988 = vdwg.mxu0
        %v989 = vmul.f32 %v986, 0.25
        %vm990 = vcmask 64512
        %v991 = vsel %vm990, %v989, -inf
        %992 = vmax.xlane.f32.xlu0 %v991
        %v993 = vpop.xlane.xlu0 %992
        %v994 = vsub.f32 %v989, %v993
        %v995 = vmul.f32 %v994, 1.442695
        %v996 = vpow.pop %v995
        %v997 = vsel %vm990, %v996, 0.0
        %998 = vadd.xlane.f32.xlu0 %v997
        %v999 = vpop.xlane.xlu0 %998
        %v1000 = vrcp.pop %v999
        %v1001 = vmul.f32 %v996, %v1000
        %v1003 = vsel %vm990, %v1001, 0
        %1005 = vmatprep.subr.mxu0 0.0
        %1006 = vmatpush1.msra.mxu0 %v909
        %1007 = vmatprep.subr.mxu0 0.0
        %1008 = vmatpush1.msra.mxu0 0.0
        %1009 = vmatprep.subr.mxu0 0.0
        %1010 = vmatpush1.msra.mxu0 0.0
        %1011 = vmatprep.subr.mxu0 0.0
        %1012 = vmatpush1.msra.mxu0 0.0
        %1013 = vmatprep.subr.mxu0 0.0
        %1014 = vmatpush1.msra.mxu0 0.0
        %1015 = vmatprep.subr.mxu0 0.0
        %1016 = vmatpush1.msra.mxu0 0.0
        %1017 = vmatprep.subr.mxu0 0.0
        %1018 = vmatpush1.msra.mxu0 0.0
        %1019 = vmatprep.subr.mxu0 0.0
        %1020 = vmatpush1.msra.mxu0 0.0
        %1021 = vmatprep.subr.mxu0 0.0
        %1022 = vmatpush1.msra.mxu0 0.0
        %1023 = vmatprep.subr.mxu0 0.0
        %1024 = vmatpush1.msra.mxu0 0.0
        %1025 = vmatprep.subr.mxu0 0.0
        %1026 = vmatpush1.msra.mxu0 0.0
        %1027 = vmatprep.subr.mxu0 0.0
        %1028 = vmatpush1.msra.mxu0 0.0
        %1029 = vmatprep.subr.mxu0 0.0
        %1030 = vmatpush1.msra.mxu0 0.0
        %1031 = vmatprep.subr.mxu0 0.0
        %1032 = vmatpush1.msra.mxu0 0.0
        %1033 = vmatprep.subr.mxu0 0.0
        %1034 = vmatpush1.msra.mxu0 0.0
        %1035 = vmatprep.subr.mxu0 0.0
        %1036 = vmatpush1.msra.mxu0 0.0
        %1037 = vmatprep.subr.mxu0 0.0
        %1038 = vmatpush1.msra.mxu0 0.0
        %1039 = vmatprep.subr.mxu0 0.0
        %1040 = vmatpush1.msra.mxu0 0.0
        %1041 = vmatprep.subr.mxu0 0.0
        %1042 = vmatpush1.msra.mxu0 0.0
        %1043 = vmatprep.subr.mxu0 0.0
        %1044 = vmatpush1.msra.mxu0 0.0
        %1045 = vmatprep.subr.mxu0 0.0
        %1046 = vmatpush1.msra.mxu0 0.0
        %1047 = vmatprep.subr.mxu0 0.0
        %1048 = vmatpush1.msra.mxu0 0.0
        %1049 = vmatprep.subr.mxu0 0.0
        %1050 = vmatpush1.msra.mxu0 0.0
        %1051 = vmatprep.subr.mxu0 0.0
        %1052 = vmatpush1.msra.mxu0 0.0
        %1053 = vmatprep.subr.mxu0 0.0
        %1054 = vmatpush1.msra.mxu0 0.0
        %1055 = vmatprep.subr.mxu0 0.0
        %1056 = vmatpush1.msra.mxu0 0.0
        %1057 = vmatprep.subr.mxu0 0.0
        %1058 = vmatpush1.msra.mxu0 0.0
        %1059 = vmatprep.subr.mxu0 0.0
        %1060 = vmatpush1.msra.mxu0 0.0
        %1061 = vmatprep.subr.mxu0 0.0
        %1062 = vmatpush1.msra.mxu0 0.0
        %1063 = vmatprep.subr.mxu0 0.0
        %1064 = vmatpush1.msra.mxu0 0.0
        %1065 = vmatprep.subr.mxu0 0.0
        %1066 = vmatpush1.msra.mxu0 0.0
        %1067 = vmatprep.subr.mxu0 0.0
        %1068 = vmatpush1.msra.mxu0 0.0
        %1069 = vmatprep.mubr.f32.mxu0 0.0
        %1070 = vmatmul.mubr.f32.gmra.mrb[0].mxu0 %v1003
        %v1071 = vpop.f32.mrb[0].mxu0
        %v1072 = vadd.f32 0.0, %v1071
        %v1073 = vpop.f32.mrb[0].mxu0
        %1074 = vdwg.mxu0
        %1075 = vrot.lane.b32.xlu0 %v739, 112
        %v1076 = vpop.permute.xlu0 %1075
        %1077 = vrot.lane.b32.xlu0 %v824, 112
        %v1078 = vpop.permute.xlu0 %1077
        %v1079 = vsel %vm912, %v1076, 0
        %v1081 = vsel %vm912, %v1078, 0
        %1083 = vmatprep.subr.mxu0 0.0
        %1084 = vmatpush1.xpose.msra.mxu0 %v1081
        %1085 = vmatprep.subr.mxu0 0.0
        %1086 = vmatpush1.xpose.msra.mxu0 0.0
        %1087 = vmatprep.subr.mxu0 0.0
        %1088 = vmatpush1.xpose.msra.mxu0 0.0
        %1089 = vmatprep.subr.mxu0 0.0
        %1090 = vmatpush1.xpose.msra.mxu0 0.0
        %1091 = vmatprep.subr.mxu0 0.0
        %1092 = vmatpush1.xpose.msra.mxu0 0.0
        %1093 = vmatprep.subr.mxu0 0.0
        %1094 = vmatpush1.xpose.msra.mxu0 0.0
        %1095 = vmatprep.subr.mxu0 0.0
        %1096 = vmatpush1.xpose.msra.mxu0 0.0
        %1097 = vmatprep.subr.mxu0 0.0
        %1098 = vmatpush1.xpose.msra.mxu0 0.0
        %1099 = vmatprep.subr.mxu0 0.0
        %1100 = vmatpush1.xpose.msra.mxu0 0.0
        %1101 = vmatprep.subr.mxu0 0.0
        %1102 = vmatpush1.xpose.msra.mxu0 0.0
        %1103 = vmatprep.subr.mxu0 0.0
        %1104 = vmatpush1.xpose.msra.mxu0 0.0
        %1105 = vmatprep.subr.mxu0 0.0
        %1106 = vmatpush1.xpose.msra.mxu0 0.0
        %1107 = vmatprep.subr.mxu0 0.0
        %1108 = vmatpush1.xpose.msra.mxu0 0.0
        %1109 = vmatprep.subr.mxu0 0.0
        %1110 = vmatpush1.xpose.msra.mxu0 0.0
        %1111 = vmatprep.subr.mxu0 0.0
        %1112 = vmatpush1.xpose.msra.mxu0 0.0
        %1113 = vmatprep.subr.mxu0 0.0
        %1114 = vmatpush1.xpose.msra.mxu0 0.0
        %1115 = vmatprep.subr.mxu0 0.0
        %1116 = vmatpush1.xpose.msra.mxu0 0.0
        %1117 = vmatprep.subr.mxu0 0.0
        %1118 = vmatpush1.xpose.msra.mxu0 0.0
        %1119 = vmatprep.subr.mxu0 0.0
        %1120 = vmatpush1.xpose.msra.mxu0 0.0
        %1121 = vmatprep.subr.mxu0 0.0
        %1122 = vmatpush1.xpose.msra.mxu0 0.0
        %1123 = vmatprep.subr.mxu0 0.0
        %1124 = vmatpush1.xpose.msra.mxu0 0.0
        %1125 = vmatprep.subr.mxu0 0.0
        %1126 = vmatpush1.xpose.msra.mxu0 0.0
        %1127 = vmatprep.subr.mxu0 0.0
        %1128 = vmatpush1.xpose.msra.mxu0 0.0
        %1129 = vmatprep.subr.mxu0 0.0
        %1130 = vmatpush1.xpose.msra.mxu0 0.0
        %1131 = vmatprep.subr.mxu0 0.0
        %1132 = vmatpush1.xpose.msra.mxu0 0.0
        %1133 = vmatprep.subr.mxu0 0.0
        %1134 = vmatpush1.xpose.msra.mxu0 0.0
        %1135 = vmatprep.subr.mxu0 0.0
        %1136 = vmatpush1.xpose.msra.mxu0 0.0
        %1137 = vmatprep.subr.mxu0 0.0
        %1138 = vmatpush1.xpose.msra.mxu0 0.0
        %1139 = vmatprep.subr.mxu0 0.0
        %1140 = vmatpush1.xpose.msra.mxu0 0.0
        %1141 = vmatprep.subr.mxu0 0.0
        %1142 = vmatpush1.xpose.msra.mxu0 0.0
        %1143 = vmatprep.subr.mxu0 0.0
        %1144 = vmatpush1.xpose.msra.mxu0 0.0
        %1145 = vmatprep.subr.mxu0 0.0
        %1146 = vmatpush1.xpose.msra.mxu0 0.0
        %1147 = vmatprep.mubr.f32.mxu0 0.0
        %1148 = vmatmul.mubr.f32.gmra.mrb[0].mxu0 %v1079
        %v1149 = vpop.f32.mrb[0].mxu0
        %v1150 = vadd.f32 0.0, %v1149
        %v1151 = vpop.f32.mrb[0].mxu0
        %1152 = vdwg.mxu0
        %v1153 = vmul.f32 %v1150, 0.25
        %v1154 = vsel %vm990, %v1153, -inf
        %1155 = vmax.xlane.f32.xlu0 %v1154
        %v1156 = vpop.xlane.xlu0 %1155
        %v1157 = vsub.f32 %v1153, %v1156
        %v1158 = vmul.f32 %v1157, 1.442695
        %v1159 = vpow.pop %v1158
        %v1160 = vsel %vm990, %v1159, 0.0
        %1161 = vadd.xlane.f32.xlu0 %v1160
        %v1162 = vpop.xlane.xlu0 %1161
        %v1163 = vrcp.pop %v1162
        %v1164 = vmul.f32 %v1159, %v1163
        %1166 = vrot.lane.b32.xlu0 %v909, 112
        %v1167 = vpop.permute.xlu0 %1166
        %v1170 = vsel %vm990, %v1164, 0
        %1172 = vmatprep.subr.mxu0 0.0
        %1173 = vmatpush1.msra.mxu0 %v1167
        %1174 = vmatprep.subr.mxu0 0.0
        %1175 = vmatpush1.msra.mxu0 0.0
        %1176 = vmatprep.subr.mxu0 0.0
        %1177 = vmatpush1.msra.mxu0 0.0
        %1178 = vmatprep.subr.mxu0 0.0
        %1179 = vmatpush1.msra.mxu0 0.0
        %1180 = vmatprep.subr.mxu0 0.0
        %1181 = vmatpush1.msra.mxu0 0.0
        %1182 = vmatprep.subr.mxu0 0.0
        %1183 = vmatpush1.msra.mxu0 0.0
        %1184 = vmatprep.subr.mxu0 0.0
        %1185 = vmatpush1.msra.mxu0 0.0
        %1186 = vmatprep.subr.mxu0 0.0
        %1187 = vmatpush1.msra.mxu0 0.0
        %1188 = vmatprep.subr.mxu0 0.0
        %1189 = vmatpush1.msra.mxu0 0.0
        %1190 = vmatprep.subr.mxu0 0.0
        %1191 = vmatpush1.msra.mxu0 0.0
        %1192 = vmatprep.subr.mxu0 0.0
        %1193 = vmatpush1.msra.mxu0 0.0
        %1194 = vmatprep.subr.mxu0 0.0
        %1195 = vmatpush1.msra.mxu0 0.0
        %1196 = vmatprep.subr.mxu0 0.0
        %1197 = vmatpush1.msra.mxu0 0.0
        %1198 = vmatprep.subr.mxu0 0.0
        %1199 = vmatpush1.msra.mxu0 0.0
        %1200 = vmatprep.subr.mxu0 0.0
        %1201 = vmatpush1.msra.mxu0 0.0
        %1202 = vmatprep.subr.mxu0 0.0
        %1203 = vmatpush1.msra.mxu0 0.0
        %1204 = vmatprep.subr.mxu0 0.0
        %1205 = vmatpush1.msra.mxu0 0.0
        %1206 = vmatprep.subr.mxu0 0.0
        %1207 = vmatpush1.msra.mxu0 0.0
        %1208 = vmatprep.subr.mxu0 0.0
        %1209 = vmatpush1.msra.mxu0 0.0
        %1210 = vmatprep.subr.mxu0 0.0
        %1211 = vmatpush1.msra.mxu0 0.0
        %1212 = vmatprep.subr.mxu0 0.0
        %1213 = vmatpush1.msra.mxu0 0.0
        %1214 = vmatprep.subr.mxu0 0.0
        %1215 = vmatpush1.msra.mxu0 0.0
        %1216 = vmatprep.subr.mxu0 0.0
        %1217 = vmatpush1.msra.mxu0 0.0
        %1218 = vmatprep.subr.mxu0 0.0
        %1219 = vmatpush1.msra.mxu0 0.0
        %1220 = vmatprep.subr.mxu0 0.0
        %1221 = vmatpush1.msra.mxu0 0.0
        %1222 = vmatprep.subr.mxu0 0.0
        %1223 = vmatpush1.msra.mxu0 0.0
        %1224 = vmatprep.subr.mxu0 0.0
        %1225 = vmatpush1.msra.mxu0 0.0
        %1226 = vmatprep.subr.mxu0 0.0
        %1227 = vmatpush1.msra.mxu0 0.0
        %1228 = vmatprep.subr.mxu0 0.0
        %1229 = vmatpush1.msra.mxu0 0.0
        %1230 = vmatprep.subr.mxu0 0.0
        %1231 = vmatpush1.msra.mxu0 0.0
        %1232 = vmatprep.subr.mxu0 0.0
        %1233 = vmatpush1.msra.mxu0 0.0
        %1234 = vmatprep.subr.mxu0 0.0
        %1235 = vmatpush1.msra.mxu0 0.0
        %1236 = vmatprep.mubr.f32.mxu0 0.0
        %1237 = vmatmul.mubr.f32.gmra.mrb[0].mxu0 %v1170
        %v1238 = vpop.f32.mrb[0].mxu0
        %v1239 = vadd.f32 0.0, %v1238
        %v1240 = vpop.f32.mrb[0].mxu0
        %1241 = vdwg.mxu0
        %1242 = vrot.lane.b32.xlu0 %v739, 96
        %v1243 = vpop.permute.xlu0 %1242
        %1244 = vrot.lane.b32.xlu0 %v824, 96
        %v1245 = vpop.permute.xlu0 %1244
        %v1246 = vsel %vm912, %v1243, 0
        %v1248 = vsel %vm912, %v1245, 0
        %1250 = vmatprep.subr.mxu0 0.0
        %1251 = vmatpush1.xpose.msra.mxu0 %v1248
        %1252 = vmatprep.subr.mxu0 0.0
        %1253 = vmatpush1.xpose.msra.mxu0 0.0
        %1254 = vmatprep.subr.mxu0 0.0
        %1255 = vmatpush1.xpose.msra.mxu0 0.0
        %1256 = vmatprep.subr.mxu0 0.0
        %1257 = vmatpush1.xpose.msra.mxu0 0.0
        %1258 = vmatprep.subr.mxu0 0.0
        %1259 = vmatpush1.xpose.msra.mxu0 0.0
        %1260 = vmatprep.subr.mxu0 0.0
        %1261 = vmatpush1.xpose.msra.mxu0 0.0
        %1262 = vmatprep.subr.mxu0 0.0
        %1263 = vmatpush1.xpose.msra.mxu0 0.0
        %1264 = vmatprep.subr.mxu0 0.0
        %1265 = vmatpush1.xpose.msra.mxu0 0.0
        %1266 = vmatprep.subr.mxu0 0.0
        %1267 = vmatpush1.xpose.msra.mxu0 0.0
        %1268 = vmatprep.subr.mxu0 0.0
        %1269 = vmatpush1.xpose.msra.mxu0 0.0
        %1270 = vmatprep.subr.mxu0 0.0
        %1271 = vmatpush1.xpose.msra.mxu0 0.0
        %1272 = vmatprep.subr.mxu0 0.0
        %1273 = vmatpush1.xpose.msra.mxu0 0.0
        %1274 = vmatprep.subr.mxu0 0.0
        %1275 = vmatpush1.xpose.msra.mxu0 0.0
        %1276 = vmatprep.subr.mxu0 0.0
        %1277 = vmatpush1.xpose.msra.mxu0 0.0
        %1278 = vmatprep.subr.mxu0 0.0
        %1279 = vmatpush1.xpose.msra.mxu0 0.0
        %1280 = vmatprep.subr.mxu0 0.0
        %1281 = vmatpush1.xpose.msra.mxu0 0.0
        %1282 = vmatprep.subr.mxu0 0.0
        %1283 = vmatpush1.xpose.msra.mxu0 0.0
        %1284 = vmatprep.subr.mxu0 0.0
        %1285 = vmatpush1.xpose.msra.mxu0 0.0
        %1286 = vmatprep.subr.mxu0 0.0
        %1287 = vmatpush1.xpose.msra.mxu0 0.0
        %1288 = vmatprep.subr.mxu0 0.0
        %1289 = vmatpush1.xpose.msra.mxu0 0.0
        %1290 = vmatprep.subr.mxu0 0.0
        %1291 = vmatpush1.xpose.msra.mxu0 0.0
        %1292 = vmatprep.subr.mxu0 0.0
        %1293 = vmatpush1.xpose.msra.mxu0 0.0
        %1294 = vmatprep.subr.mxu0 0.0
        %1295 = vmatpush1.xpose.msra.mxu0 0.0
        %1296 = vmatprep.subr.mxu0 0.0
        %1297 = vmatpush1.xpose.msra.mxu0 0.0
        %1298 = vmatprep.subr.mxu0 0.0
        %1299 = vmatpush1.xpose.msra.mxu0 0.0
        %1300 = vmatprep.subr.mxu0 0.0
        %1301 = vmatpush1.xpose.msra.mxu0 0.0
        %1302 = vmatprep.subr.mxu0 0.0
        %1303 = vmatpush1.xpose.msra.mxu0 0.0
        %1304 = vmatprep.subr.mxu0 0.0
        %1305 = vmatpush1.xpose.msra.mxu0 0.0
        %1306 = vmatprep.subr.mxu0 0.0
        %1307 = vmatpush1.xpose.msra.mxu0 0.0
        %1308 = vmatprep.subr.mxu0 0.0
        %1309 = vmatpush1.xpose.msra.mxu0 0.0
        %1310 = vmatprep.subr.mxu0 0.0
        %1311 = vmatpush1.xpose.msra.mxu0 0.0
        %1312 = vmatprep.subr.mxu0 0.0
        %1313 = vmatpush1.xpose.msra.mxu0 0.0
        %1314 = vmatprep.mubr.f32.mxu0 0.0
        %1315 = vmatmul.mubr.f32.gmra.mrb[0].mxu0 %v1246
        %v1316 = vpop.f32.mrb[0].mxu0
        %v1317 = vadd.f32 0.0, %v1316
        %v1318 = vpop.f32.mrb[0].mxu0
        %1319 = vdwg.mxu0
        %v1320 = vmul.f32 %v1317, 0.25
        %v1321 = vsel %vm990, %v1320, -inf
        %1322 = vmax.xlane.f32.xlu0 %v1321
        %v1323 = vpop.xlane.xlu0 %1322
        %v1324 = vsub.f32 %v1320, %v1323
        %v1325 = vmul.f32 %v1324, 1.442695
        %v1326 = vpow.pop %v1325
        %v1327 = vsel %vm990, %v1326, 0.0
        %1328 = vadd.xlane.f32.xlu0 %v1327
        %v1329 = vpop.xlane.xlu0 %1328
        %v1330 = vrcp.pop %v1329
        %v1331 = vmul.f32 %v1326, %v1330
        %1332 = vrot.lane.b32.xlu0 %v909, 96
        %v1333 = vpop.permute.xlu0 %1332
        %v1336 = vsel %vm990, %v1331, 0
        %1338 = vmatprep.subr.mxu0 0.0
        %1339 = vmatpush1.msra.mxu0 %v1333
        %1340 = vmatprep.subr.mxu0 0.0
        %1341 = vmatpush1.msra.mxu0 0.0
        %1342 = vmatprep.subr.mxu0 0.0
        %1343 = vmatpush1.msra.mxu0 0.0
        %1344 = vmatprep.subr.mxu0 0.0
        %1345 = vmatpush1.msra.mxu0 0.0
        %1346 = vmatprep.subr.mxu0 0.0
        %1347 = vmatpush1.msra.mxu0 0.0
        %1348 = vmatprep.subr.mxu0 0.0
        %1349 = vmatpush1.msra.mxu0 0.0
        %1350 = vmatprep.subr.mxu0 0.0
        %1351 = vmatpush1.msra.mxu0 0.0
        %1352 = vmatprep.subr.mxu0 0.0
        %1353 = vmatpush1.msra.mxu0 0.0
        %1354 = vmatprep.subr.mxu0 0.0
        %1355 = vmatpush1.msra.mxu0 0.0
        %1356 = vmatprep.subr.mxu0 0.0
        %1357 = vmatpush1.msra.mxu0 0.0
        %1358 = vmatprep.subr.mxu0 0.0
        %1359 = vmatpush1.msra.mxu0 0.0
        %1360 = vmatprep.subr.mxu0 0.0
        %1361 = vmatpush1.msra.mxu0 0.0
        %1362 = vmatprep.subr.mxu0 0.0
        %1363 = vmatpush1.msra.mxu0 0.0
        %1364 = vmatprep.subr.mxu0 0.0
        %1365 = vmatpush1.msra.mxu0 0.0
        %1366 = vmatprep.subr.mxu0 0.0
        %1367 = vmatpush1.msra.mxu0 0.0
        %1368 = vmatprep.subr.mxu0 0.0
        %1369 = vmatpush1.msra.mxu0 0.0
        %1370 = vmatprep.subr.mxu0 0.0
        %1371 = vmatpush1.msra.mxu0 0.0
        %1372 = vmatprep.subr.mxu0 0.0
        %1373 = vmatpush1.msra.mxu0 0.0
        %1374 = vmatprep.subr.mxu0 0.0
        %1375 = vmatpush1.msra.mxu0 0.0
        %1376 = vmatprep.subr.mxu0 0.0
        %1377 = vmatpush1.msra.mxu0 0.0
        %1378 = vmatprep.subr.mxu0 0.0
        %1379 = vmatpush1.msra.mxu0 0.0
        %1380 = vmatprep.subr.mxu0 0.0
        %1381 = vmatpush1.msra.mxu0 0.0
        %1382 = vmatprep.subr.mxu0 0.0
        %1383 = vmatpush1.msra.mxu0 0.0
        %1384 = vmatprep.subr.mxu0 0.0
        %1385 = vmatpush1.msra.mxu0 0.0
        %1386 = vmatprep.subr.mxu0 0.0
        %1387 = vmatpush1.msra.mxu0 0.0
        %1388 = vmatprep.subr.mxu0 0.0
        %1389 = vmatpush1.msra.mxu0 0.0
        %1390 = vmatprep.subr.mxu0 0.0
        %1391 = vmatpush1.msra.mxu0 0.0
        %1392 = vmatprep.subr.mxu0 0.0
        %1393 = vmatpush1.msra.mxu0 0.0
        %1394 = vmatprep.subr.mxu0 0.0
        %1395 = vmatpush1.msra.mxu0 0.0
        %1396 = vmatprep.subr.mxu0 0.0
        %1397 = vmatpush1.msra.mxu0 0.0
        %1398 = vmatprep.subr.mxu0 0.0
        %1399 = vmatpush1.msra.mxu0 0.0
        %1400 = vmatprep.subr.mxu0 0.0
        %1401 = vmatpush1.msra.mxu0 0.0
        %1402 = vmatprep.mubr.f32.mxu0 0.0
        %1403 = vmatmul.mubr.f32.gmra.mrb[0].mxu0 %v1336
        %v1404 = vpop.f32.mrb[0].mxu0
        %v1405 = vadd.f32 0.0, %v1404
        %v1406 = vpop.f32.mrb[0].mxu0
        %1407 = vdwg.mxu0
        %1408 = vrot.lane.b32.xlu0 %v739, 80
        %v1409 = vpop.permute.xlu0 %1408
        %1410 = vrot.lane.b32.xlu0 %v824, 80
        %v1411 = vpop.permute.xlu0 %1410
        %v1412 = vsel %vm912, %v1409, 0
        %v1414 = vsel %vm912, %v1411, 0
        %1416 = vmatprep.subr.mxu0 0.0
        %1417 = vmatpush1.xpose.msra.mxu0 %v1414
        %1418 = vmatprep.subr.mxu0 0.0
        %1419 = vmatpush1.xpose.msra.mxu0 0.0
        %1420 = vmatprep.subr.mxu0 0.0
        %1421 = vmatpush1.xpose.msra.mxu0 0.0
        %1422 = vmatprep.subr.mxu0 0.0
        %1423 = vmatpush1.xpose.msra.mxu0 0.0
        %1424 = vmatprep.subr.mxu0 0.0
        %1425 = vmatpush1.xpose.msra.mxu0 0.0
        %1426 = vmatprep.subr.mxu0 0.0
        %1427 = vmatpush1.xpose.msra.mxu0 0.0
        %1428 = vmatprep.subr.mxu0 0.0
        %1429 = vmatpush1.xpose.msra.mxu0 0.0
        %1430 = vmatprep.subr.mxu0 0.0
        %1431 = vmatpush1.xpose.msra.mxu0 0.0
        %1432 = vmatprep.subr.mxu0 0.0
        %1433 = vmatpush1.xpose.msra.mxu0 0.0
        %1434 = vmatprep.subr.mxu0 0.0
        %1435 = vmatpush1.xpose.msra.mxu0 0.0
        %1436 = vmatprep.subr.mxu0 0.0
        %1437 = vmatpush1.xpose.msra.mxu0 0.0
        %1438 = vmatprep.subr.mxu0 0.0
        %1439 = vmatpush1.xpose.msra.mxu0 0.0
        %1440 = vmatprep.subr.mxu0 0.0
        %1441 = vmatpush1.xpose.msra.mxu0 0.0
        %1442 = vmatprep.subr.mxu0 0.0
        %1443 = vmatpush1.xpose.msra.mxu0 0.0
        %1444 = vmatprep.subr.mxu0 0.0
        %1445 = vmatpush1.xpose.msra.mxu0 0.0
        %1446 = vmatprep.subr.mxu0 0.0
        %1447 = vmatpush1.xpose.msra.mxu0 0.0
        %1448 = vmatprep.subr.mxu0 0.0
        %1449 = vmatpush1.xpose.msra.mxu0 0.0
        %1450 = vmatprep.subr.mxu0 0.0
        %1451 = vmatpush1.xpose.msra.mxu0 0.0
        %1452 = vmatprep.subr.mxu0 0.0
        %1453 = vmatpush1.xpose.msra.mxu0 0.0
        %1454 = vmatprep.subr.mxu0 0.0
        %1455 = vmatpush1.xpose.msra.mxu0 0.0
        %1456 = vmatprep.subr.mxu0 0.0
        %1457 = vmatpush1.xpose.msra.mxu0 0.0
        %1458 = vmatprep.subr.mxu0 0.0
        %1459 = vmatpush1.xpose.msra.mxu0 0.0
        %1460 = vmatprep.subr.mxu0 0.0
        %1461 = vmatpush1.xpose.msra.mxu0 0.0
        %1462 = vmatprep.subr.mxu0 0.0
        %1463 = vmatpush1.xpose.msra.mxu0 0.0
        %1464 = vmatprep.subr.mxu0 0.0
        %1465 = vmatpush1.xpose.msra.mxu0 0.0
        %1466 = vmatprep.subr.mxu0 0.0
        %1467 = vmatpush1.xpose.msra.mxu0 0.0
        %1468 = vmatprep.subr.mxu0 0.0
        %1469 = vmatpush1.xpose.msra.mxu0 0.0
        %1470 = vmatprep.subr.mxu0 0.0
        %1471 = vmatpush1.xpose.msra.mxu0 0.0
        %1472 = vmatprep.subr.mxu0 0.0
        %1473 = vmatpush1.xpose.msra.mxu0 0.0
        %1474 = vmatprep.subr.mxu0 0.0
        %1475 = vmatpush1.xpose.msra.mxu0 0.0
        %1476 = vmatprep.subr.mxu0 0.0
        %1477 = vmatpush1.xpose.msra.mxu0 0.0
        %1478 = vmatprep.subr.mxu0 0.0
        %1479 = vmatpush1.xpose.msra.mxu0 0.0
        %1480 = vmatprep.mubr.f32.mxu0 0.0
        %1481 = vmatmul.mubr.f32.gmra.mrb[0].mxu0 %v1412
        %v1482 = vpop.f32.mrb[0].mxu0
        %v1483 = vadd.f32 0.0, %v1482
        %v1484 = vpop.f32.mrb[0].mxu0
        %1485 = vdwg.mxu0
        %v1486 = vmul.f32 %v1483, 0.25
        %v1487 = vsel %vm990, %v1486, -inf
        %1488 = vmax.xlane.f32.xlu0 %v1487
        %v1489 = vpop.xlane.xlu0 %1488
        %v1490 = vsub.f32 %v1486, %v1489
        %v1491 = vmul.f32 %v1490, 1.442695
        %v1492 = vpow.pop %v1491
        %v1493 = vsel %vm990, %v1492, 0.0
        %1494 = vadd.xlane.f32.xlu0 %v1493
        %v1495 = vpop.xlane.xlu0 %1494
        %v1496 = vrcp.pop %v1495
        %v1497 = vmul.f32 %v1492, %v1496
        %1498 = vrot.lane.b32.xlu0 %v909, 80
        %v1499 = vpop.permute.xlu0 %1498
        %v1502 = vsel %vm990, %v1497, 0
        %1504 = vmatprep.subr.mxu0 0.0
        %1505 = vmatpush1.msra.mxu0 %v1499
        %1506 = vmatprep.subr.mxu0 0.0
        %1507 = vmatpush1.msra.mxu0 0.0
        %1508 = vmatprep.subr.mxu0 0.0
        %1509 = vmatpush1.msra.mxu0 0.0
        %1510 = vmatprep.subr.mxu0 0.0
        %1511 = vmatpush1.msra.mxu0 0.0
        %1512 = vmatprep.subr.mxu0 0.0
        %1513 = vmatpush1.msra.mxu0 0.0
        %1514 = vmatprep.subr.mxu0 0.0
        %1515 = vmatpush1.msra.mxu0 0.0
        %1516 = vmatprep.subr.mxu0 0.0
        %1517 = vmatpush1.msra.mxu0 0.0
        %1518 = vmatprep.subr.mxu0 0.0
        %1519 = vmatpush1.msra.mxu0 0.0
        %1520 = vmatprep.subr.mxu0 0.0
        %1521 = vmatpush1.msra.mxu0 0.0
        %1522 = vmatprep.subr.mxu0 0.0
        %1523 = vmatpush1.msra.mxu0 0.0
        %1524 = vmatprep.subr.mxu0 0.0
        %1525 = vmatpush1.msra.mxu0 0.0
        %1526 = vmatprep.subr.mxu0 0.0
        %1527 = vmatpush1.msra.mxu0 0.0
        %1528 = vmatprep.subr.mxu0 0.0
        %1529 = vmatpush1.msra.mxu0 0.0
        %1530 = vmatprep.subr.mxu0 0.0
        %1531 = vmatpush1.msra.mxu0 0.0
        %1532 = vmatprep.subr.mxu0 0.0
        %1533 = vmatpush1.msra.mxu0 0.0
        %1534 = vmatprep.subr.mxu0 0.0
        %1535 = vmatpush1.msra.mxu0 0.0
        %1536 = vmatprep.subr.mxu0 0.0
        %1537 = vmatpush1.msra.mxu0 0.0
        %1538 = vmatprep.subr.mxu0 0.0
        %1539 = vmatpush1.msra.mxu0 0.0
        %1540 = vmatprep.subr.mxu0 0.0
        %1541 = vmatpush1.msra.mxu0 0.0
        %1542 = vmatprep.subr.mxu0 0.0
        %1543 = vmatpush1.msra.mxu0 0.0
        %1544 = vmatprep.subr.mxu0 0.0
        %1545 = vmatpush1.msra.mxu0 0.0
        %1546 = vmatprep.subr.mxu0 0.0
        %1547 = vmatpush1.msra.mxu0 0.0
        %1548 = vmatprep.subr.mxu0 0.0
        %1549 = vmatpush1.msra.mxu0 0.0
        %1550 = vmatprep.subr.mxu0 0.0
        %1551 = vmatpush1.msra.mxu0 0.0
        %1552 = vmatprep.subr.mxu0 0.0
        %1553 = vmatpush1.msra.mxu0 0.0
        %1554 = vmatprep.subr.mxu0 0.0
        %1555 = vmatpush1.msra.mxu0 0.0
        %1556 = vmatprep.subr.mxu0 0.0
        %1557 = vmatpush1.msra.mxu0 0.0
        %1558 = vmatprep.subr.mxu0 0.0
        %1559 = vmatpush1.msra.mxu0 0.0
        %1560 = vmatprep.subr.mxu0 0.0
        %1561 = vmatpush1.msra.mxu0 0.0
        %1562 = vmatprep.subr.mxu0 0.0
        %1563 = vmatpush1.msra.mxu0 0.0
        %1564 = vmatprep.subr.mxu0 0.0
        %1565 = vmatpush1.msra.mxu0 0.0
        %1566 = vmatprep.subr.mxu0 0.0
        %1567 = vmatpush1.msra.mxu0 0.0
        %1568 = vmatprep.mubr.f32.mxu0 0.0
        %1569 = vmatmul.mubr.f32.gmra.mrb[0].mxu0 %v1502
        %v1570 = vpop.f32.mrb[0].mxu0
        %v1571 = vadd.f32 0.0, %v1570
        %v1572 = vpop.f32.mrb[0].mxu0
        %1573 = vdwg.mxu0
        %1575 = vrot.lane.b32.xlu0 %v1239, 16
        %v1576 = vpop.permute.xlu0 %1575
        %1579 = vrot.lane.b32.xlu0 %v1405, 32
        %v1580 = vpop.permute.xlu0 %1579
        %1583 = vrot.lane.b32.xlu0 %v1571, 48
        %v1584 = vpop.permute.xlu0 %1583
        %v1586 = vsel %vm912, %v1072, %v1576
        %vm1587 = vcmask 261120
        %v1588 = vsel %vm1587, %v1586, %v1580
        %vm1589 = vcmask 392192
        %v1590 = vsel %vm1589, %v1588, %v1584
        %v1591 = vld [vmem:[%s7] sm:$0xff]
        %v1592 = vld [vmem:[%s7 + $0x8] sm:$0xff]
        %v1593 = vld [vmem:[%s7 + $0x10] sm:$0xff]
        %v1594 = vld [vmem:[%s7 + $0x18] sm:$0xff]
        %v1595 = vld [vmem:[%s7 + $0x20] sm:$0xff]
        %v1596 = vld [vmem:[%s7 + $0x28] sm:$0xff]
        %v1597 = vld [vmem:[%s7 + $0x30] sm:$0xff]
        %v1598 = vld [vmem:[%s7 + $0x38] sm:$0xff]
        %v1599 = vld [vmem:[%s8] sm:$0x1]
        %v1601 = vlaneseq
        %v1602 = vshrl.u32 %v1601, 7
        %v1603 = vsub.s32 0, %v1602
        %v1604 = vrot.slane %v1599, %v1603
        %v1607 = vsel %vm668, %v1590, 0
        %1609 = vmatprep.subr.mxu0 0.0
        %1610 = vmatpush1.msra.mxu0 %v1591
        %1611 = vmatprep.subr.mxu0 0.0
        %1612 = vmatpush1.msra.mxu0 %v1592
        %1613 = vmatprep.subr.mxu0 0.0
        %1614 = vmatpush1.msra.mxu0 %v1593
        %1615 = vmatprep.subr.mxu0 0.0
        %1616 = vmatpush1.msra.mxu0 %v1594
        %1617 = vmatprep.subr.mxu0 0.0
        %1618 = vmatpush1.msra.mxu0 %v1595
        %1619 = vmatprep.subr.mxu0 0.0
        %1620 = vmatpush1.msra.mxu0 %v1596
        %1621 = vmatprep.subr.mxu0 0.0
        %1622 = vmatpush1.msra.mxu0 %v1597
        %1623 = vmatprep.subr.mxu0 0.0
        %1624 = vmatpush1.msra.mxu0 %v1598
        %1625 = vmatprep.subr.mxu0 0.0
        %1626 = vmatpush1.msra.mxu0 0.0
        %1627 = vmatprep.subr.mxu0 0.0
        %1628 = vmatpush1.msra.mxu0 0.0
        %1629 = vmatprep.subr.mxu0 0.0
        %1630 = vmatpush1.msra.mxu0 0.0
        %1631 = vmatprep.subr.mxu0 0.0
        %1632 = vmatpush1.msra.mxu0 0.0
        %1633 = vmatprep.subr.mxu0 0.0
        %1634 = vmatpush1.msra.mxu0 0.0
        %1635 = vmatprep.subr.mxu0 0.0
        %1636 = vmatpush1.msra.mxu0 0.0
        %1637 = vmatprep.subr.mxu0 0.0
        %1638 = vmatpush1.msra.mxu0 0.0
        %1639 = vmatprep.subr.mxu0 0.0
        %1640 = vmatpush1.msra.mxu0 0.0
        %1641 = vmatprep.subr.mxu0 0.0
        %1642 = vmatpush1.msra.mxu0 0.0
        %1643 = vmatprep.subr.mxu0 0.0
        %1644 = vmatpush1.msra.mxu0 0.0
        %1645 = vmatprep.subr.mxu0 0.0
        %1646 = vmatpush1.msra.mxu0 0.0
        %1647 = vmatprep.subr.mxu0 0.0
        %1648 = vmatpush1.msra.mxu0 0.0
        %1649 = vmatprep.subr.mxu0 0.0
        %1650 = vmatpush1.msra.mxu0 0.0
        %1651 = vmatprep.subr.mxu0 0.0
        %1652 = vmatpush1.msra.mxu0 0.0
        %1653 = vmatprep.subr.mxu0 0.0
        %1654 = vmatpush1.msra.mxu0 0.0
        %1655 = vmatprep.subr.mxu0 0.0
        %1656 = vmatpush1.msra.mxu0 0.0
        %1657 = vmatprep.subr.mxu0 0.0
        %1658 = vmatpush1.msra.mxu0 0.0
        %1659 = vmatprep.subr.mxu0 0.0
        %1660 = vmatpush1.msra.mxu0 0.0
        %1661 = vmatprep.subr.mxu0 0.0
        %1662 = vmatpush1.msra.mxu0 0.0
        %1663 = vmatprep.subr.mxu0 0.0
        %1664 = vmatpush1.msra.mxu0 0.0
        %1665 = vmatprep.subr.mxu0 0.0
        %1666 = vmatpush1.msra.mxu0 0.0
        %1667 = vmatprep.subr.mxu0 0.0
        %1668 = vmatpush1.msra.mxu0 0.0
        %1669 = vmatprep.subr.mxu0 0.0
        %1670 = vmatpush1.msra.mxu0 0.0
        %1671 = vmatprep.subr.mxu0 0.0
        %1672 = vmatpush1.msra.mxu0 0.0
        %1673 = vmatprep.mubr.f32.mxu0 0.0
        %1674 = vmatmul.mubr.f32.gmra.mrb[0].mxu0 %v1607
        %v1675 = vpop.f32.mrb[0].mxu0
        %v1676 = vadd.f32 %v1604, %v1675
        %v1677 = vpop.f32.mrb[0].mxu0
        %1678 = vdwg.mxu0
        %v1679 = vadd.f32 %v652, %v1676
        %v1680 = vld [vmem:[%s9] sm:$0x1]
        %v1681 = vld [vmem:[%s10] sm:$0x1]
        %v1682 = vsel %vm668, %v1679, 0.0
        %1683 = vadd.xlane.f32.xlu0 %v1682
        %v1684 = vpop.xlane.xlu0 %1683
        %v1685 = vrcp.pop 64.0
        %v1686 = vmul.f32 %v1684, %v1685
        %v1687 = vsub.f32 %v1679, %v1686
        %v1688 = vmul.f32 %v1687, %v1687
        %v1689 = vsel %vm668, %v1688, 0.0
        %1690 = vadd.xlane.f32.xlu0 %v1689
        %v1691 = vpop.xlane.xlu0 %1690
        %v1692 = vmul.f32 %v1691, %v1685
        %v1693 = vadd.f32 %v1692, 1e-05
        %v1694 = vrsqrt.pop %v1693
        %v1695 = vmul.f32 %v1687, %v1694
        %v1697 = vlaneseq
        %v1698 = vshrl.u32 %v1697, 7
        %v1699 = vsub.s32 0, %v1698
        %v1700 = vrot.slane %v1680, %v1699
        %v1702 = vmul.f32 %v1695, %v1700
        %v1704 = vlaneseq
        %v1705 = vshrl.u32 %v1704, 7
        %v1706 = vsub.s32 0, %v1705
        %v1707 = vrot.slane %v1681, %v1706
        %v1709 = vadd.f32 %v1702, %v1707
        %v1710 = vld [vmem:[%s11] sm:$0xff]
        %v1711 = vld [vmem:[%s11 + $0x8] sm:$0xff]
        %v1712 = vld [vmem:[%s11 + $0x10] sm:$0xff]
        %v1713 = vld [vmem:[%s11 + $0x18] sm:$0xff]
        %v1714 = vld [vmem:[%s11 + $0x20] sm:$0xff]
        %v1715 = vld [vmem:[%s11 + $0x28] sm:$0xff]
        %v1716 = vld [vmem:[%s11 + $0x30] sm:$0xff]
        %v1717 = vld [vmem:[%s11 + $0x38] sm:$0xff]
        %v1718 = vld [vmem:[%s11 + $0x40] sm:$0xff]
        %v1719 = vld [vmem:[%s11 + $0x48] sm:$0xff]
        %v1720 = vld [vmem:[%s11 + $0x50] sm:$0xff]
        %v1721 = vld [vmem:[%s11 + $0x58] sm:$0xff]
        %v1722 = vld [vmem:[%s11 + $0x60] sm:$0xff]
        %v1723 = vld [vmem:[%s11 + $0x68] sm:$0xff]
        %v1724 = vld [vmem:[%s11 + $0x70] sm:$0xff]
        %v1725 = vld [vmem:[%s11 + $0x78] sm:$0xff]
        %v1726 = vld [vmem:[%s11 + $0x80] sm:$0xff]
        %v1727 = vld [vmem:[%s11 + $0x88] sm:$0xff]
        %v1728 = vld [vmem:[%s11 + $0x90] sm:$0xff]
        %v1729 = vld [vmem:[%s11 + $0x98] sm:$0xff]
        %v1730 = vld [vmem:[%s11 + $0xa0] sm:$0xff]
        %v1731 = vld [vmem:[%s11 + $0xa8] sm:$0xff]
        %v1732 = vld [vmem:[%s11 + $0xb0] sm:$0xff]
        %v1733 = vld [vmem:[%s11 + $0xb8] sm:$0xff]
        %v1734 = vld [vmem:[%s11 + $0xc0] sm:$0xff]
        %v1735 = vld [vmem:[%s11 + $0xc8] sm:$0xff]
        %v1736 = vld [vmem:[%s11 + $0xd0] sm:$0xff]
        %v1737 = vld [vmem:[%s11 + $0xd8] sm:$0xff]
        %v1738 = vld [vmem:[%s11 + $0xe0] sm:$0xff]
        %v1739 = vld [vmem:[%s11 + $0xe8] sm:$0xff]
        %v1740 = vld [vmem:[%s11 + $0xf0] sm:$0xff]
        %v1741 = vld [vmem:[%s11 + $0xf8] sm:$0xff]
        %v1742 = vld [vmem:[%s11 + $0x100] sm:$0xff]
        %v1743 = vld [vmem:[%s11 + $0x108] sm:$0xff]
        %v1744 = vld [vmem:[%s11 + $0x110] sm:$0xff]
        %v1745 = vld [vmem:[%s11 + $0x118] sm:$0xff]
        %v1746 = vld [vmem:[%s11 + $0x120] sm:$0xff]
        %v1747 = vld [vmem:[%s11 + $0x128] sm:$0xff]
        %v1748 = vld [vmem:[%s11 + $0x130] sm:$0xff]
        %v1749 = vld [vmem:[%s11 + $0x138] sm:$0xff]
        %v1750 = vld [vmem:[%s11 + $0x140] sm:$0xff]
        %v1751 = vld [vmem:[%s11 + $0x148] sm:$0xff]
        %v1752 = vld [vmem:[%s11 + $0x150] sm:$0xff]
        %v1753 = vld [vmem:[%s11 + $0x158] sm:$0xff]
        %v1754 = vld [vmem:[%s11 + $0x160] sm:$0xff]
        %v1755 = vld [vmem:[%s11 + $0x168] sm:$0xff]
        %v1756 = vld [vmem:[%s11 + $0x170] sm:$0xff]
        %v1757 = vld [vmem:[%s11 + $0x178] sm:$0xff]
        %v1758 = vld [vmem:[%s11 + $0x180] sm:$0xff]
        %v1759 = vld [vmem:[%s11 + $0x188] sm:$0xff]
        %v1760 = vld [vmem:[%s11 + $0x190] sm:$0xff]
        %v1761 = vld [vmem:[%s11 + $0x198] sm:$0xff]
        %v1762 = vld [vmem:[%s11 + $0x1a0] sm:$0xff]
        %v1763 = vld [vmem:[%s11 + $0x1a8] sm:$0xff]
        %v1764 = vld [vmem:[%s11 + $0x1b0] sm:$0xff]
        %v1765 = vld [vmem:[%s11 + $0x1b8] sm:$0xff]
        %v1766 = vld [vmem:[%s11 + $0x1c0] sm:$0xff]
        %v1767 = vld [vmem:[%s11 + $0x1c8] sm:$0xff]
        %v1768 = vld [vmem:[%s11 + $0x1d0] sm:$0xff]
        %v1769 = vld [vmem:[%s11 + $0x1d8] sm:$0xff]
        %v1770 = vld [vmem:[%s11 + $0x1e0] sm:$0xff]
        %v1771 = vld [vmem:[%s11 + $0x1e8] sm:$0xff]
        %v1772 = vld [vmem:[%s11 + $0x1f0] sm:$0xff]
        %v1773 = vld [vmem:[%s11 + $0x1f8] sm:$0xff]
        %v1774 = vld [vmem:[%s11 + $0x200] sm:$0xff]
        %v1775 = vld [vmem:[%s11 + $0x208] sm:$0xff]
        %v1776 = vld [vmem:[%s11 + $0x210] sm:$0xff]
        %v1777 = vld [vmem:[%s11 + $0x218] sm:$0xff]
        %v1778 = vld [vmem:[%s11 + $0x220] sm:$0xff]
        %v1779 = vld [vmem:[%s11 + $0x228] sm:$0xff]
        %v1780 = vld [vmem:[%s11 + $0x230] sm:$0xff]
        %v1781 = vld [vmem:[%s11 + $0x238] sm:$0xff]
        %v1782 = vld [vmem:[%s11 + $0x240] sm:$0xff]
        %v1783 = vld [vmem:[%s11 + $0x248] sm:$0xff]
        %v1784 = vld [vmem:[%s11 + $0x250] sm:$0xff]
        %v1785 = vld [vmem:[%s11 + $0x258] sm:$0xff]
        %v1786 = vld [vmem:[%s11 + $0x260] sm:$0xff]
        %v1787 = vld [vmem:[%s11 + $0x268] sm:$0xff]
        %v1788 = vld [vmem:[%s11 + $0x270] sm:$0xff]
        %v1789 = vld [vmem:[%s11 + $0x278] sm:$0xff]
        %v1790 = vld [vmem:[%s11 + $0x280] sm:$0xff]
        %v1791 = vld [vmem:[%s11 + $0x288] sm:$0xff]
        %v1792 = vld [vmem:[%s11 + $0x290] sm:$0xff]
        %v1793 = vld [vmem:[%s11 + $0x298] sm:$0xff]
        %v1794 = vld [vmem:[%s11 + $0x2a0] sm:$0xff]
        %v1795 = vld [vmem:[%s11 + $0x2a8] sm:$0xff]
        %v1796 = vld [vmem:[%s11 + $0x2b0] sm:$0xff]
        %v1797 = vld [vmem:[%s11 + $0x2b8] sm:$0xff]
        %v1798 = vld [vmem:[%s11 + $0x2c0] sm:$0xff]
        %v1799 = vld [vmem:[%s11 + $0x2c8] sm:$0xff]
        %v1800 = vld [vmem:[%s11 + $0x2d0] sm:$0xff]
        %v1801 = vld [vmem:[%s11 + $0x2d8] sm:$0xff]
        %v1802 = vld [vmem:[%s11 + $0x2e0] sm:$0xff]
        %v1803 = vld [vmem:[%s11 + $0x2e8] sm:$0xff]
        %v1804 = vld [vmem:[%s11 + $0x2f0] sm:$0xff]
        %v1805 = vld [vmem:[%s11 + $0x2f8] sm:$0xff]
        %v1806 = vld [vmem:[%s11 + $0x300] sm:$0xff]
        %v1807 = vld [vmem:[%s11 + $0x308] sm:$0xff]
        %v1808 = vld [vmem:[%s11 + $0x310] sm:$0xff]
        %v1809 = vld [vmem:[%s11 + $0x318] sm:$0xff]
        %v1810 = vld [vmem:[%s11 + $0x320] sm:$0xff]
        %v1811 = vld [vmem:[%s11 + $0x328] sm:$0xff]
        %v1812 = vld [vmem:[%s11 + $0x330] sm:$0xff]
        %v1813 = vld [vmem:[%s11 + $0x338] sm:$0xff]
        %v1814 = vld [vmem:[%s11 + $0x340] sm:$0xff]
        %v1815 = vld [vmem:[%s11 + $0x348] sm:$0xff]
        %v1816 = vld [vmem:[%s11 + $0x350] sm:$0xff]
        %v1817 = vld [vmem:[%s11 + $0x358] sm:$0xff]
        %v1818 = vld [vmem:[%s11 + $0x360] sm:$0xff]
        %v1819 = vld [vmem:[%s11 + $0x368] sm:$0xff]
        %v1820 = vld [vmem:[%s11 + $0x370] sm:$0xff]
        %v1821 = vld [vmem:[%s11 + $0x378] sm:$0xff]
        %v1822 = vld [vmem:[%s11 + $0x380] sm:$0xff]
        %v1823 = vld [vmem:[%s11 + $0x388] sm:$0xff]
        %v1824 = vld [vmem:[%s11 + $0x390] sm:$0xff]
        %v1825 = vld [vmem:[%s11 + $0x398] sm:$0xff]
        %v1826 = vld [vmem:[%s11 + $0x3a0] sm:$0xff]
        %v1827 = vld [vmem:[%s11 + $0x3a8] sm:$0xff]
        %v1828 = vld [vmem:[%s11 + $0x3b0] sm:$0xff]
        %v1829 = vld [vmem:[%s11 + $0x3b8] sm:$0xff]
        %v1830 = vld [vmem:[%s11 + $0x3c0] sm:$0xff]
        %v1831 = vld [vmem:[%s11 + $0x3c8] sm:$0xff]
        %v1832 = vld [vmem:[%s11 + $0x3d0] sm:$0xff]
        %v1833 = vld [vmem:[%s11 + $0x3d8] sm:$0xff]
        %v1834 = vld [vmem:[%s11 + $0x3e0] sm:$0xff]
        %v1835 = vld [vmem:[%s11 + $0x3e8] sm:$0xff]
        %v1836 = vld [vmem:[%s11 + $0x3f0] sm:$0xff]
        %v1837 = vld [vmem:[%s11 + $0x3f8] sm:$0xff]
        %v1838 = vld [vmem:[%s12] sm:$0xff]
        %v1839 = vld [vmem:[%s12 + $0x8] sm:$0xff]
        %v1842 = vlaneseq
        %v1843 = vshrl.u32 %v1842, 7
        %v1844 = vsub.s32 0, %v1843
        %v1845 = vrot.slane %v1838, %v1844
        %v1846 = vlaneseq
        %v1847 = vshrl.u32 %v1846, 7
        %v1848 = vsub.s32 1, %v1847
        %v1849 = vrot.slane %v1838, %v1848
        %v1850 = vlaneseq
        %v1851 = vshrl.u32 %v1850, 7
        %v1852 = vsub.s32 2, %v1851
        %v1853 = vrot.slane %v1838, %v1852
        %v1854 = vlaneseq
        %v1855 = vshrl.u32 %v1854, 7
        %v1856 = vsub.s32 3, %v1855
        %v1857 = vrot.slane %v1838, %v1856
        %v1858 = vlaneseq
        %v1859 = vshrl.u32 %v1858, 7
        %v1860 = vsub.s32 4, %v1859
        %v1861 = vrot.slane %v1838, %v1860
        %v1862 = vlaneseq
        %v1863 = vshrl.u32 %v1862, 7
        %v1864 = vsub.s32 5, %v1863
        %v1865 = vrot.slane %v1838, %v1864
        %v1866 = vlaneseq
        %v1867 = vshrl.u32 %v1866, 7
        %v1868 = vsub.s32 6, %v1867
        %v1869 = vrot.slane %v1838, %v1868
        %v1870 = vlaneseq
        %v1871 = vshrl.u32 %v1870, 7
        %v1872 = vsub.s32 7, %v1871
        %v1873 = vrot.slane %v1838, %v1872
        %v1874 = vlaneseq
        %v1875 = vshrl.u32 %v1874, 7
        %v1876 = vsub.s32 0, %v1875
        %v1877 = vrot.slane %v1839, %v1876
        %v1878 = vlaneseq
        %v1879 = vshrl.u32 %v1878, 7
        %v1880 = vsub.s32 1, %v1879
        %v1881 = vrot.slane %v1839, %v1880
        %v1882 = vlaneseq
        %v1883 = vshrl.u32 %v1882, 7
        %v1884 = vsub.s32 2, %v1883
        %v1885 = vrot.slane %v1839, %v1884
        %v1886 = vlaneseq
        %v1887 = vshrl.u32 %v1886, 7
        %v1888 = vsub.s32 3, %v1887
        %v1889 = vrot.slane %v1839, %v1888
        %v1890 = vlaneseq
        %v1891 = vshrl.u32 %v1890, 7
        %v1892 = vsub.s32 4, %v1891
        %v1893 = vrot.slane %v1839, %v1892
        %v1894 = vlaneseq
        %v1895 = vshrl.u32 %v1894, 7
        %v1896 = vsub.s32 5, %v1895
        %v1897 = vrot.slane %v1839, %v1896
        %v1898 = vlaneseq
        %v1899 = vshrl.u32 %v1898, 7
        %v1900 = vsub.s32 6, %v1899
        %v1901 = vrot.slane %v1839, %v1900
        %v1902 = vlaneseq
        %v1903 = vshrl.u32 %v1902, 7
        %v1904 = vsub.s32 7, %v1903
        %v1905 = vrot.slane %v1839, %v1904
        %v1923 = vsel %vm668, %v1709, 0
        %1925 = vmatprep.subr.mxu0 %v1711
        %1926 = vmatpush1.msra.mxu0 %v1710
        %1927 = vmatprep.subr.mxu0 %v1727
        %1928 = vmatpush1.msra.mxu0 %v1726
        %1929 = vmatprep.subr.mxu0 %v1743
        %1930 = vmatpush1.msra.mxu0 %v1742
        %1931 = vmatprep.subr.mxu0 %v1759
        %1932 = vmatpush1.msra.mxu0 %v1758
        %1933 = vmatprep.subr.mxu0 %v1775
        %1934 = vmatpush1.msra.mxu0 %v1774
        %1935 = vmatprep.subr.mxu0 %v1791
        %1936 = vmatpush1.msra.mxu0 %v1790
        %1937 = vmatprep.subr.mxu0 %v1807
        %1938 = vmatpush1.msra.mxu0 %v1806
        %1939 = vmatprep.subr.mxu0 %v1823
        %1940 = vmatpush1.msra.mxu0 %v1822
        %1941 = vmatprep.subr.mxu0 0.0
        %1942 = vmatpush1.msra.mxu0 0.0
        %1943 = vmatprep.subr.mxu0 0.0
        %1944 = vmatpush1.msra.mxu0 0.0
        %1945 = vmatprep.subr.mxu0 0.0
        %1946 = vmatpush1.msra.mxu0 0.0
        %1947 = vmatprep.subr.mxu0 0.0
        %1948 = vmatpush1.msra.mxu0 0.0
        %1949 = vmatprep.subr.mxu0 0.0
        %1950 = vmatpush1.msra.mxu0 0.0
        %1951 = vmatprep.subr.mxu0 0.0
        %1952 = vmatpush1.msra.mxu0 0.0
        %1953 = vmatprep.subr.mxu0 0.0
        %1954 = vmatpush1.msra.mxu0 0.0
        %1955 = vmatprep.subr.mxu0 0.0
        %1956 = vmatpush1.msra.mxu0 0.0
        %1957 = vmatprep.subr.mxu0 0.0
        %1958 = vmatpush1.msra.mxu0 0.0
        %1959 = vmatprep.subr.mxu0 0.0
        %1960 = vmatpush1.msra.mxu0 0.0
        %1961 = vmatprep.subr.mxu0 0.0
        %1962 = vmatpush1.msra.mxu0 0.0
        %1963 = vmatprep.subr.mxu0 0.0
        %1964 = vmatpush1.msra.mxu0 0.0
        %1965 = vmatprep.subr.mxu0 0.0
        %1966 = vmatpush1.msra.mxu0 0.0
        %1967 = vmatprep.subr.mxu0 0.0
        %1968 = vmatpush1.msra.mxu0 0.0
        %1969 = vmatprep.subr.mxu0 0.0
        %1970 = vmatpush1.msra.mxu0 0.0
        %1971 = vmatprep.subr.mxu0 0.0
        %1972 = vmatpush1.msra.mxu0 0.0
        %1973 = vmatprep.subr.mxu0 0.0
        %1974 = vmatpush1.msra.mxu0 0.0
        %1975 = vmatprep.subr.mxu0 0.0
        %1976 = vmatpush1.msra.mxu0 0.0
        %1977 = vmatprep.subr.mxu0 0.0
        %1978 = vmatpush1.msra.mxu0 0.0
        %1979 = vmatprep.subr.mxu0 0.0
        %1980 = vmatpush1.msra.mxu0 0.0
        %1981 = vmatprep.subr.mxu0 0.0
        %1982 = vmatpush1.msra.mxu0 0.0
        %1983 = vmatprep.subr.mxu0 0.0
        %1984 = vmatpush1.msra.mxu0 0.0
        %1985 = vmatprep.subr.mxu0 0.0
        %1986 = vmatpush1.msra.mxu0 0.0
        %1987 = vmatprep.subr.mxu0 0.0
        %1988 = vmatpush1.msra.mxu0 0.0
        %1989 = vmatprep.mubr.f32.mxu0 0.0
        %1990 = vmatmul.mubr.f32.gmra.mrb[0].mxu0 %v1923
        %v1991 = vpop.f32.mrb[0].mxu0
        %v1992 = vadd.f32 %v1845, %v1991
        %v1993 = vpop.f32.mrb[0].mxu0
        %v1994 = vadd.f32 %v1849, %v1993
        %1995 = vdwg.mxu0
        %1996 = vmatprep.subr.mxu0 %v1713
        %1997 = vmatpush1.msra.mxu0 %v1712
        %1998 = vmatprep.subr.mxu0 %v1729
        %1999 = vmatpush1.msra.mxu0 %v1728
        %2000 = vmatprep.subr.mxu0 %v1745
        %2001 = vmatpush1.msra.mxu0 %v1744
        %2002 = vmatprep.subr.mxu0 %v1761
        %2003 = vmatpush1.msra.mxu0 %v1760
        %2004 = vmatprep.subr.mxu0 %v1777
        %2005 = vmatpush1.msra.mxu0 %v1776
        %2006 = vmatprep.subr.mxu0 %v1793
        %2007 = vmatpush1.msra.mxu0 %v1792
        %2008 = vmatprep.subr.mxu0 %v1809
        %2009 = vmatpush1.msra.mxu0 %v1808
        %2010 = vmatprep.subr.mxu0 %v1825
        %2011 = vmatpush1.msra.mxu0 %v1824
        %2012 = vmatprep.subr.mxu0 0.0
        %2013 = vmatpush1.msra.mxu0 0.0
        %2014 = vmatprep.subr.mxu0 0.0
        %2015 = vmatpush1.msra.mxu0 0.0
        %2016 = vmatprep.subr.mxu0 0.0
        %2017 = vmatpush1.msra.mxu0 0.0
        %2018 = vmatprep.subr.mxu0 0.0
        %2019 = vmatpush1.msra.mxu0 0.0
        %2020 = vmatprep.subr.mxu0 0.0
        %2021 = vmatpush1.msra.mxu0 0.0
        %2022 = vmatprep.subr.mxu0 0.0
        %2023 = vmatpush1.msra.mxu0 0.0
        %2024 = vmatprep.subr.mxu0 0.0
        %2025 = vmatpush1.msra.mxu0 0.0
        %2026 = vmatprep.subr.mxu0 0.0
        %2027 = vmatpush1.msra.mxu0 0.0
        %2028 = vmatprep.subr.mxu0 0.0
        %2029 = vmatpush1.msra.mxu0 0.0
        %2030 = vmatprep.subr.mxu0 0.0
        %2031 = vmatpush1.msra.mxu0 0.0
        %2032 = vmatprep.subr.mxu0 0.0
        %2033 = vmatpush1.msra.mxu0 0.0
        %2034 = vmatprep.subr.mxu0 0.0
        %2035 = vmatpush1.msra.mxu0 0.0
        %2036 = vmatprep.subr.mxu0 0.0
        %2037 = vmatpush1.msra.mxu0 0.0
        %2038 = vmatprep.subr.mxu0 0.0
        %2039 = vmatpush1.msra.mxu0 0.0
        %2040 = vmatprep.subr.mxu0 0.0
        %2041 = vmatpush1.msra.mxu0 0.0
        %2042 = vmatprep.subr.mxu0 0.0
        %2043 = vmatpush1.msra.mxu0 0.0
        %2044 = vmatprep.subr.mxu0 0.0
        %2045 = vmatpush1.msra.mxu0 0.0
        %2046 = vmatprep.subr.mxu0 0.0
        %2047 = vmatpush1.msra.mxu0 0.0
        %2048 = vmatprep.subr.mxu0 0.0
        %2049 = vmatpush1.msra.mxu0 0.0
        %2050 = vmatprep.subr.mxu0 0.0
        %2051 = vmatpush1.msra.mxu0 0.0
        %2052 = vmatprep.subr.mxu0 0.0
        %2053 = vmatpush1.msra.mxu0 0.0
        %2054 = vmatprep.subr.mxu0 0.0
        %2055 = vmatpush1.msra.mxu0 0.0
        %2056 = vmatprep.subr.mxu0 0.0
        %2057 = vmatpush1.msra.mxu0 0.0
        %2058 = vmatprep.subr.mxu0 0.0
        %2059 = vmatpush1.msra.mxu0 0.0
        %2060 = vmatprep.mubr.f32.mxu0 0.0
        %2061 = vmatmul.mubr.f32.gmra.mrb[0].mxu0 %v1923
        %v2062 = vpop.f32.mrb[0].mxu0
        %v2063 = vadd.f32 %v1853, %v2062
        %v2064 = vpop.f32.mrb[0].mxu0
        %v2065 = vadd.f32 %v1857, %v2064
        %2066 = vdwg.mxu0
        %2067 = vmatprep.subr.mxu0 %v1715
        %2068 = vmatpush1.msra.mxu0 %v1714
        %2069 = vmatprep.subr.mxu0 %v1731
        %2070 = vmatpush1.msra.mxu0 %v1730
        %2071 = vmatprep.subr.mxu0 %v1747
        %2072 = vmatpush1.msra.mxu0 %v1746
        %2073 = vmatprep.subr.mxu0 %v1763
        %2074 = vmatpush1.msra.mxu0 %v1762
        %2075 = vmatprep.subr.mxu0 %v1779
        %2076 = vmatpush1.msra.mxu0 %v1778
        %2077 = vmatprep.subr.mxu0 %v1795
        %2078 = vmatpush1.msra.mxu0 %v1794
        %2079 = vmatprep.subr.mxu0 %v1811
        %2080 = vmatpush1.msra.mxu0 %v1810
        %2081 = vmatprep.subr.mxu0 %v1827
        %2082 = vmatpush1.msra.mxu0 %v1826
        %2083 = vmatprep.subr.mxu0 0.0
        %2084 = vmatpush1.msra.mxu0 0.0
        %2085 = vmatprep.subr.mxu0 0.0
        %2086 = vmatpush1.msra.mxu0 0.0
        %2087 = vmatprep.subr.mxu0 0.0
        %2088 = vmatpush1.msra.mxu0 0.0
        %2089 = vmatprep.subr.mxu0 0.0
        %2090 = vmatpush1.msra.mxu0 0.0
        %2091 = vmatprep.subr.mxu0 0.0
        %2092 = vmatpush1.msra.mxu0 0.0
        %2093 = vmatprep.subr.mxu0 0.0
        %2094 = vmatpush1.msra.mxu0 0.0
        %2095 = vmatprep.subr.mxu0 0.0
        %2096 = vmatpush1.msra.mxu0 0.0
        %2097 = vmatprep.subr.mxu0 0.0
        %2098 = vmatpush1.msra.mxu0 0.0
        %2099 = vmatprep.subr.mxu0 0.0
        %2100 = vmatpush1.msra.mxu0 0.0
        %2101 = vmatprep.subr.mxu0 0.0
        %2102 = vmatpush1.msra.mxu0 0.0
        %2103 = vmatprep.subr.mxu0 0.0
        %2104 = vmatpush1.msra.mxu0 0.0
        %2105 = vmatprep.subr.mxu0 0.0
        %2106 = vmatpush1.msra.mxu0 0.0
        %2107 = vmatprep.subr.mxu0 0.0
        %2108 = vmatpush1.msra.mxu0 0.0
        %2109 = vmatprep.subr.mxu0 0.0
        %2110 = vmatpush1.msra.mxu0 0.0
        %2111 = vmatprep.subr.mxu0 0.0
        %2112 = vmatpush1.msra.mxu0 0.0
        %2113 = vmatprep.subr.mxu0 0.0
        %2114 = vmatpush1.msra.mxu0 0.0
        %2115 = vmatprep.subr.mxu0 0.0
        %2116 = vmatpush1.msra.mxu0 0.0
        %2117 = vmatprep.subr.mxu0 0.0
        %2118 = vmatpush1.msra.mxu0 0.0
        %2119 = vmatprep.subr.mxu0 0.0
        %2120 = vmatpush1.msra.mxu0 0.0
        %2121 = vmatprep.subr.mxu0 0.0
        %2122 = vmatpush1.msra.mxu0 0.0
        %2123 = vmatprep.subr.mxu0 0.0
        %2124 = vmatpush1.msra.mxu0 0.0
        %2125 = vmatprep.subr.mxu0 0.0
        %2126 = vmatpush1.msra.mxu0 0.0
        %2127 = vmatprep.subr.mxu0 0.0
        %2128 = vmatpush1.msra.mxu0 0.0
        %2129 = vmatprep.subr.mxu0 0.0
        %2130 = vmatpush1.msra.mxu0 0.0
        %2131 = vmatprep.mubr.f32.mxu0 0.0
        %2132 = vmatmul.mubr.f32.gmra.mrb[0].mxu0 %v1923
        %v2133 = vpop.f32.mrb[0].mxu0
        %v2134 = vadd.f32 %v1861, %v2133
        %v2135 = vpop.f32.mrb[0].mxu0
        %v2136 = vadd.f32 %v1865, %v2135
        %2137 = vdwg.mxu0
        %2138 = vmatprep.subr.mxu0 %v1717
        %2139 = vmatpush1.msra.mxu0 %v1716
        %2140 = vmatprep.subr.mxu0 %v1733
        %2141 = vmatpush1.msra.mxu0 %v1732
        %2142 = vmatprep.subr.mxu0 %v1749
        %2143 = vmatpush1.msra.mxu0 %v1748
        %2144 = vmatprep.subr.mxu0 %v1765
        %2145 = vmatpush1.msra.mxu0 %v1764
        %2146 = vmatprep.subr.mxu0 %v1781
        %2147 = vmatpush1.msra.mxu0 %v1780
        %2148 = vmatprep.subr.mxu0 %v1797
        %2149 = vmatpush1.msra.mxu0 %v1796
        %2150 = vmatprep.subr.mxu0 %v1813
        %2151 = vmatpush1.msra.mxu0 %v1812
        %2152 = vmatprep.subr.mxu0 %v1829
        %2153 = vmatpush1.msra.mxu0 %v1828
        %2154 = vmatprep.subr.mxu0 0.0
        %2155 = vmatpush1.msra.mxu0 0.0
        %2156 = vmatprep.subr.mxu0 0.0
        %2157 = vmatpush1.msra.mxu0 0.0
        %2158 = vmatprep.subr.mxu0 0.0
        %2159 = vmatpush1.msra.mxu0 0.0
        %2160 = vmatprep.subr.mxu0 0.0
        %2161 = vmatpush1.msra.mxu0 0.0
        %2162 = vmatprep.subr.mxu0 0.0
        %2163 = vmatpush1.msra.mxu0 0.0
        %2164 = vmatprep.subr.mxu0 0.0
        %2165 = vmatpush1.msra.mxu0 0.0
        %2166 = vmatprep.subr.mxu0 0.0
        %2167 = vmatpush1.msra.mxu0 0.0
        %2168 = vmatprep.subr.mxu0 0.0
        %2169 = vmatpush1.msra.mxu0 0.0
        %2170 = vmatprep.subr.mxu0 0.0
        %2171 = vmatpush1.msra.mxu0 0.0
        %2172 = vmatprep.subr.mxu0 0.0
        %2173 = vmatpush1.msra.mxu0 0.0
        %2174 = vmatprep.subr.mxu0 0.0
        %2175 = vmatpush1.msra.mxu0 0.0
        %2176 = vmatprep.subr.mxu0 0.0
        %2177 = vmatpush1.msra.mxu0 0.0
        %2178 = vmatprep.subr.mxu0 0.0
        %2179 = vmatpush1.msra.mxu0 0.0
        %2180 = vmatprep.subr.mxu0 0.0
        %2181 = vmatpush1.msra.mxu0 0.0
        %2182 = vmatprep.subr.mxu0 0.0
        %2183 = vmatpush1.msra.mxu0 0.0
        %2184 = vmatprep.subr.mxu0 0.0
        %2185 = vmatpush1.msra.mxu0 0.0
        %2186 = vmatprep.subr.mxu0 0.0
        %2187 = vmatpush1.msra.mxu0 0.0
        %2188 = vmatprep.subr.mxu0 0.0
        %2189 = vmatpush1.msra.mxu0 0.0
        %2190 = vmatprep.subr.mxu0 0.0
        %2191 = vmatpush1.msra.mxu0 0.0
        %2192 = vmatprep.subr.mxu0 0.0
        %2193 = vmatpush1.msra.mxu0 0.0
        %2194 = vmatprep.subr.mxu0 0.0
        %2195 = vmatpush1.msra.mxu0 0.0
        %2196 = vmatprep.subr.mxu0 0.0
        %2197 = vmatpush1.msra.mxu0 0.0
        %2198 = vmatprep.subr.mxu0 0.0
        %2199 = vmatpush1.msra.mxu0 0.0
        %2200 = vmatprep.subr.mxu0 0.0
        %2201 = vmatpush1.msra.mxu0 0.0
        %2202 = vmatprep.mubr.f32.mxu0 0.0
        %2203 = vmatmul.mubr.f32.gmra.mrb[0].mxu0 %v1923
        %v2204 = vpop.f32.mrb[0].mxu0
        %v2205 = vadd.f32 %v1869, %v2204
        %v2206 = vpop.f32.mrb[0].mxu0
        %v2207 = vadd.f32 %v1873, %v2206
        %2208 = vdwg.mxu0
        %2209 = vmatprep.subr.mxu0 %v1719
        %2210 = vmatpush1.msra.mxu0 %v1718
        %2211 = vmatprep.subr.mxu0 %v1735
        %2212 = vmatpush1.msra.mxu0 %v1734
        %2213 = vmatprep.subr.mxu0 %v1751
        %2214 = vmatpush1.msra.mxu0 %v1750
        %2215 = vmatprep.subr.mxu0 %v1767
        %2216 = vmatpush1.msra.mxu0 %v1766
        %2217 = vmatprep.subr.mxu0 %v1783
        %2218 = vmatpush1.msra.mxu0 %v1782
        %2219 = vmatprep.subr.mxu0 %v1799
        %2220 = vmatpush1.msra.mxu0 %v1798
        %2221 = vmatprep.subr.mxu0 %v1815
        %2222 = vmatpush1.msra.mxu0 %v1814
        %2223 = vmatprep.subr.mxu0 %v1831
        %2224 = vmatpush1.msra.mxu0 %v1830
        %2225 = vmatprep.subr.mxu0 0.0
        %2226 = vmatpush1.msra.mxu0 0.0
        %2227 = vmatprep.subr.mxu0 0.0
        %2228 = vmatpush1.msra.mxu0 0.0
        %2229 = vmatprep.subr.mxu0 0.0
        %2230 = vmatpush1.msra.mxu0 0.0
        %2231 = vmatprep.subr.mxu0 0.0
        %2232 = vmatpush1.msra.mxu0 0.0
        %2233 = vmatprep.subr.mxu0 0.0
        %2234 = vmatpush1.msra.mxu0 0.0
        %2235 = vmatprep.subr.mxu0 0.0
        %2236 = vmatpush1.msra.mxu0 0.0
        %2237 = vmatprep.subr.mxu0 0.0
        %2238 = vmatpush1.msra.mxu0 0.0
        %2239 = vmatprep.subr.mxu0 0.0
        %2240 = vmatpush1.msra.mxu0 0.0
        %2241 = vmatprep.subr.mxu0 0.0
        %2242 = vmatpush1.msra.mxu0 0.0
        %2243 = vmatprep.subr.mxu0 0.0
        %2244 = vmatpush1.msra.mxu0 0.0
        %2245 = vmatprep.subr.mxu0 0.0
        %2246 = vmatpush1.msra.mxu0 0.0
        %2247 = vmatprep.subr.mxu0 0.0
        %2248 = vmatpush1.msra.mxu0 0.0
        %2249 = vmatprep.subr.mxu0 0.0
        %2250 = vmatpush1.msra.mxu0 0.0
        %2251 = vmatprep.subr.mxu0 0.0
        %2252 = vmatpush1.msra.mxu0 0.0
        %2253 = vmatprep.subr.mxu0 0.0
        %2254 = vmatpush1.msra.mxu0 0.0
        %2255 = vmatprep.subr.mxu0 0.0
        %2256 = vmatpush1.msra.mxu0 0.0
        %2257 = vmatprep.subr.mxu0 0.0
        %2258 = vmatpush1.msra.mxu0 0.0
        %2259 = vmatprep.subr.mxu0 0.0
        %2260 = vmatpush1.msra.mxu0 0.0
        %2261 = vmatprep.subr.mxu0 0.0
        %2262 = vmatpush1.msra.mxu0 0.0
        %2263 = vmatprep.subr.mxu0 0.0
        %2264 = vmatpush1.msra.mxu0 0.0
        %2265 = vmatprep.subr.mxu0 0.0
        %2266 = vmatpush1.msra.mxu0 0.0
        %2267 = vmatprep.subr.mxu0 0.0
        %2268 = vmatpush1.msra.mxu0 0.0
        %2269 = vmatprep.subr.mxu0 0.0
        %2270 = vmatpush1.msra.mxu0 0.0
        %2271 = vmatprep.subr.mxu0 0.0
        %2272 = vmatpush1.msra.mxu0 0.0
        %2273 = vmatprep.mubr.f32.mxu0 0.0
        %2274 = vmatmul.mubr.f32.gmra.mrb[0].mxu0 %v1923
        %v2275 = vpop.f32.mrb[0].mxu0
        %v2276 = vadd.f32 %v1877, %v2275
        %v2277 = vpop.f32.mrb[0].mxu0
        %v2278 = vadd.f32 %v1881, %v2277
        %2279 = vdwg.mxu0
        %2280 = vmatprep.subr.mxu0 %v1721
        %2281 = vmatpush1.msra.mxu0 %v1720
        %2282 = vmatprep.subr.mxu0 %v1737
        %2283 = vmatpush1.msra.mxu0 %v1736
        %2284 = vmatprep.subr.mxu0 %v1753
        %2285 = vmatpush1.msra.mxu0 %v1752
        %2286 = vmatprep.subr.mxu0 %v1769
        %2287 = vmatpush1.msra.mxu0 %v1768
        %2288 = vmatprep.subr.mxu0 %v1785
        %2289 = vmatpush1.msra.mxu0 %v1784
        %2290 = vmatprep.subr.mxu0 %v1801
        %2291 = vmatpush1.msra.mxu0 %v1800
        %2292 = vmatprep.subr.mxu0 %v1817
        %2293 = vmatpush1.msra.mxu0 %v1816
        %2294 = vmatprep.subr.mxu0 %v1833
        %2295 = vmatpush1.msra.mxu0 %v1832
        %2296 = vmatprep.subr.mxu0 0.0
        %2297 = vmatpush1.msra.mxu0 0.0
        %2298 = vmatprep.subr.mxu0 0.0
        %2299 = vmatpush1.msra.mxu0 0.0
        %2300 = vmatprep.subr.mxu0 0.0
        %2301 = vmatpush1.msra.mxu0 0.0
        %2302 = vmatprep.subr.mxu0 0.0
        %2303 = vmatpush1.msra.mxu0 0.0
        %2304 = vmatprep.subr.mxu0 0.0
        %2305 = vmatpush1.msra.mxu0 0.0
        %2306 = vmatprep.subr.mxu0 0.0
        %2307 = vmatpush1.msra.mxu0 0.0
        %2308 = vmatprep.subr.mxu0 0.0
        %2309 = vmatpush1.msra.mxu0 0.0
        %2310 = vmatprep.subr.mxu0 0.0
        %2311 = vmatpush1.msra.mxu0 0.0
        %2312 = vmatprep.subr.mxu0 0.0
        %2313 = vmatpush1.msra.mxu0 0.0
        %2314 = vmatprep.subr.mxu0 0.0
        %2315 = vmatpush1.msra.mxu0 0.0
        %2316 = vmatprep.subr.mxu0 0.0
        %2317 = vmatpush1.msra.mxu0 0.0
        %2318 = vmatprep.subr.mxu0 0.0
        %2319 = vmatpush1.msra.mxu0 0.0
        %2320 = vmatprep.subr.mxu0 0.0
        %2321 = vmatpush1.msra.mxu0 0.0
        %2322 = vmatprep.subr.mxu0 0.0
        %2323 = vmatpush1.msra.mxu0 0.0
        %2324 = vmatprep.subr.mxu0 0.0
        %2325 = vmatpush1.msra.mxu0 0.0
        %2326 = vmatprep.subr.mxu0 0.0
        %2327 = vmatpush1.msra.mxu0 0.0
        %2328 = vmatprep.subr.mxu0 0.0
        %2329 = vmatpush1.msra.mxu0 0.0
        %2330 = vmatprep.subr.mxu0 0.0
        %2331 = vmatpush1.msra.mxu0 0.0
        %2332 = vmatprep.subr.mxu0 0.0
        %2333 = vmatpush1.msra.mxu0 0.0
        %2334 = vmatprep.subr.mxu0 0.0
        %2335 = vmatpush1.msra.mxu0 0.0
        %2336 = vmatprep.subr.mxu0 0.0
        %2337 = vmatpush1.msra.mxu0 0.0
        %2338 = vmatprep.subr.mxu0 0.0
        %2339 = vmatpush1.msra.mxu0 0.0
        %2340 = vmatprep.subr.mxu0 0.0
        %2341 = vmatpush1.msra.mxu0 0.0
        %2342 = vmatprep.subr.mxu0 0.0
        %2343 = vmatpush1.msra.mxu0 0.0
        %2344 = vmatprep.mubr.f32.mxu0 0.0
        %2345 = vmatmul.mubr.f32.gmra.mrb[0].mxu0 %v1923
        %v2346 = vpop.f32.mrb[0].mxu0
        %v2347 = vadd.f32 %v1885, %v2346
        %v2348 = vpop.f32.mrb[0].mxu0
        %v2349 = vadd.f32 %v1889, %v2348
        %2350 = vdwg.mxu0
        %2351 = vmatprep.subr.mxu0 %v1723
        %2352 = vmatpush1.msra.mxu0 %v1722
        %2353 = vmatprep.subr.mxu0 %v1739
        %2354 = vmatpush1.msra.mxu0 %v1738
        %2355 = vmatprep.subr.mxu0 %v1755
        %2356 = vmatpush1.msra.mxu0 %v1754
        %2357 = vmatprep.subr.mxu0 %v1771
        %2358 = vmatpush1.msra.mxu0 %v1770
        %2359 = vmatprep.subr.mxu0 %v1787
        %2360 = vmatpush1.msra.mxu0 %v1786
        %2361 = vmatprep.subr.mxu0 %v1803
        %2362 = vmatpush1.msra.mxu0 %v1802
        %2363 = vmatprep.subr.mxu0 %v1819
        %2364 = vmatpush1.msra.mxu0 %v1818
        %2365 = vmatprep.subr.mxu0 %v1835
        %2366 = vmatpush1.msra.mxu0 %v1834
        %2367 = vmatprep.subr.mxu0 0.0
        %2368 = vmatpush1.msra.mxu0 0.0
        %2369 = vmatprep.subr.mxu0 0.0
        %2370 = vmatpush1.msra.mxu0 0.0
        %2371 = vmatprep.subr.mxu0 0.0
        %2372 = vmatpush1.msra.mxu0 0.0
        %2373 = vmatprep.subr.mxu0 0.0
        %2374 = vmatpush1.msra.mxu0 0.0
        %2375 = vmatprep.subr.mxu0 0.0
        %2376 = vmatpush1.msra.mxu0 0.0
        %2377 = vmatprep.subr.mxu0 0.0
        %2378 = vmatpush1.msra.mxu0 0.0
        %2379 = vmatprep.subr.mxu0 0.0
        %2380 = vmatpush1.msra.mxu0 0.0
        %2381 = vmatprep.subr.mxu0 0.0
        %2382 = vmatpush1.msra.mxu0 0.0
        %2383 = vmatprep.subr.mxu0 0.0
        %2384 = vmatpush1.msra.mxu0 0.0
        %2385 = vmatprep.subr.mxu0 0.0
        %2386 = vmatpush1.msra.mxu0 0.0
        %2387 = vmatprep.subr.mxu0 0.0
        %2388 = vmatpush1.msra.mxu0 0.0
        %2389 = vmatprep.subr.mxu0 0.0
        %2390 = vmatpush1.msra.mxu0 0.0
        %2391 = vmatprep.subr.mxu0 0.0
        %2392 = vmatpush1.msra.mxu0 0.0
        %2393 = vmatprep.subr.mxu0 0.0
        %2394 = vmatpush1.msra.mxu0 0.0
        %2395 = vmatprep.subr.mxu0 0.0
        %2396 = vmatpush1.msra.mxu0 0.0
        %2397 = vmatprep.subr.mxu0 0.0
        %2398 = vmatpush1.msra.mxu0 0.0
        %2399 = vmatprep.subr.mxu0 0.0
        %2400 = vmatpush1.msra.mxu0 0.0
        %2401 = vmatprep.subr.mxu0 0.0
        %2402 = vmatpush1.msra.mxu0 0.0
        %2403 = vmatprep.subr.mxu0 0.0
        %2404 = vmatpush1.msra.mxu0 0.0
        %2405 = vmatprep.subr.mxu0 0.0
        %2406 = vmatpush1.msra.mxu0 0.0
        %2407 = vmatprep.subr.mxu0 0.0
        %2408 = vmatpush1.msra.mxu0 0.0
        %2409 = vmatprep.subr.mxu0 0.0
        %2410 = vmatpush1.msra.mxu0 0.0
        %2411 = vmatprep.subr.mxu0 0.0
        %2412 = vmatpush1.msra.mxu0 0.0
        %2413 = vmatprep.subr.mxu0 0.0
        %2414 = vmatpush1.msra.mxu0 0.0
        %2415 = vmatprep.mubr.f32.mxu0 0.0
        %2416 = vmatmul.mubr.f32.gmra.mrb[0].mxu0 %v1923
        %v2417 = vpop.f32.mrb[0].mxu0
        %v2418 = vadd.f32 %v1893, %v2417
        %v2419 = vpop.f32.mrb[0].mxu0
        %v2420 = vadd.f32 %v1897, %v2419
        %2421 = vdwg.mxu0
        %2422 = vmatprep.subr.mxu0 %v1725
        %2423 = vmatpush1.msra.mxu0 %v1724
        %2424 = vmatprep.subr.mxu0 %v1741
        %2425 = vmatpush1.msra.mxu0 %v1740
        %2426 = vmatprep.subr.mxu0 %v1757
        %2427 = vmatpush1.msra.mxu0 %v1756
        %2428 = vmatprep.subr.mxu0 %v1773
        %2429 = vmatpush1.msra.mxu0 %v1772
        %2430 = vmatprep.subr.mxu0 %v1789
        %2431 = vmatpush1.msra.mxu0 %v1788
        %2432 = vmatprep.subr.mxu0 %v1805
        %2433 = vmatpush1.msra.mxu0 %v1804
        %2434 = vmatprep.subr.mxu0 %v1821
        %2435 = vmatpush1.msra.mxu0 %v1820
        %2436 = vmatprep.subr.mxu0 %v1837
        %2437 = vmatpush1.msra.mxu0 %v1836
        %2438 = vmatprep.subr.mxu0 0.0
        %2439 = vmatpush1.msra.mxu0 0.0
        %2440 = vmatprep.subr.mxu0 0.0
        %2441 = vmatpush1.msra.mxu0 0.0
        %2442 = vmatprep.subr.mxu0 0.0
        %2443 = vmatpush1.msra.mxu0 0.0
        %2444 = vmatprep.subr.mxu0 0.0
        %2445 = vmatpush1.msra.mxu0 0.0
        %2446 = vmatprep.subr.mxu0 0.0
        %2447 = vmatpush1.msra.mxu0 0.0
        %2448 = vmatprep.subr.mxu0 0.0
        %2449 = vmatpush1.msra.mxu0 0.0
        %2450 = vmatprep.subr.mxu0 0.0
        %2451 = vmatpush1.msra.mxu0 0.0
        %2452 = vmatprep.subr.mxu0 0.0
        %2453 = vmatpush1.msra.mxu0 0.0
        %2454 = vmatprep.subr.mxu0 0.0
        %2455 = vmatpush1.msra.mxu0 0.0
        %2456 = vmatprep.subr.mxu0 0.0
        %2457 = vmatpush1.msra.mxu0 0.0
        %2458 = vmatprep.subr.mxu0 0.0
        %2459 = vmatpush1.msra.mxu0 0.0
        %2460 = vmatprep.subr.mxu0 0.0
        %2461 = vmatpush1.msra.mxu0 0.0
        %2462 = vmatprep.subr.mxu0 0.0
        %2463 = vmatpush1.msra.mxu0 0.0
        %2464 = vmatprep.subr.mxu0 0.0
        %2465 = vmatpush1.msra.mxu0 0.0
        %2466 = vmatprep.subr.mxu0 0.0
        %2467 = vmatpush1.msra.mxu0 0.0
        %2468 = vmatprep.subr.mxu0 0.0
        %2469 = vmatpush1.msra.mxu0 0.0
        %2470 = vmatprep.subr.mxu0 0.0
        %2471 = vmatpush1.msra.mxu0 0.0
        %2472 = vmatprep.subr.mxu0 0.0
        %2473 = vmatpush1.msra.mxu0 0.0
        %2474 = vmatprep.subr.mxu0 0.0
        %2475 = vmatpush1.msra.mxu0 0.0
        %2476 = vmatprep.subr.mxu0 0.0
        %2477 = vmatpush1.msra.mxu0 0.0
        %2478 = vmatprep.subr.mxu0 0.0
        %2479 = vmatpush1.msra.mxu0 0.0
        %2480 = vmatprep.subr.mxu0 0.0
        %2481 = vmatpush1.msra.mxu0 0.0
        %2482 = vmatprep.subr.mxu0 0.0
        %2483 = vmatpush1.msra.mxu0 0.0
        %2484 = vmatprep.subr.mxu0 0.0
        %2485 = vmatpush1.msra.mxu0 0.0
        %2486 = vmatprep.mubr.f32.mxu0 0.0
        %2487 = vmatmul.mubr.f32.gmra.mrb[0].mxu0 %v1923
        %v2488 = vpop.f32.mrb[0].mxu0
        %v2489 = vadd.f32 %v1901, %v2488
        %v2490 = vpop.f32.mrb[0].mxu0
        %v2491 = vadd.f32 %v1905, %v2490
        %2492 = vdwg.mxu0
        %v2493 = vmax.f32 %v1992, 0.0
        %v2494 = vmax.f32 %v1994, 0.0
        %v2495 = vmax.f32 %v2063, 0.0
        %v2496 = vmax.f32 %v2065, 0.0
        %v2497 = vmax.f32 %v2134, 0.0
        %v2498 = vmax.f32 %v2136, 0.0
        %v2499 = vmax.f32 %v2205, 0.0
        %v2500 = vmax.f32 %v2207, 0.0
        %v2501 = vmax.f32 %v2276, 0.0
        %v2502 = vmax.f32 %v2278, 0.0
        %v2503 = vmax.f32 %v2347, 0.0
        %v2504 = vmax.f32 %v2349, 0.0
        %v2505 = vmax.f32 %v2418, 0.0
        %v2506 = vmax.f32 %v2420, 0.0
        %v2507 = vmax.f32 %v2489, 0.0
        %v2508 = vmax.f32 %v2491, 0.0
        %v2509 = vld [vmem:[%s13] sm:$0xff]
        %v2510 = vld [vmem:[%s13 + $0x8] sm:$0xff]
        %v2511 = vld [vmem:[%s13 + $0x10] sm:$0xff]
        %v2512 = vld [vmem:[%s13 + $0x18] sm:$0xff]
        %v2513 = vld [vmem:[%s13 + $0x20] sm:$0xff]
        %v2514 = vld [vmem:[%s13 + $0x28] sm:$0xff]
        %v2515 = vld [vmem:[%s13 + $0x30] sm:$0xff]
        %v2516 = vld [vmem:[%s13 + $0x38] sm:$0xff]
        %v2517 = vld [vmem:[%s13 + $0x40] sm:$0xff]
        %v2518 = vld [vmem:[%s13 + $0x48] sm:$0xff]
        %v2519 = vld [vmem:[%s13 + $0x50] sm:$0xff]
        %v2520 = vld [vmem:[%s13 + $0x58] sm:$0xff]
        %v2521 = vld [vmem:[%s13 + $0x60] sm:$0xff]
        %v2522 = vld [vmem:[%s13 + $0x68] sm:$0xff]
        %v2523 = vld [vmem:[%s13 + $0x70] sm:$0xff]
        %v2524 = vld [vmem:[%s13 + $0x78] sm:$0xff]
        %v2525 = vld [vmem:[%s13 + $0x80] sm:$0xff]
        %v2526 = vld [vmem:[%s13 + $0x88] sm:$0xff]
        %v2527 = vld [vmem:[%s13 + $0x90] sm:$0xff]
        %v2528 = vld [vmem:[%s13 + $0x98] sm:$0xff]
        %v2529 = vld [vmem:[%s13 + $0xa0] sm:$0xff]
        %v2530 = vld [vmem:[%s13 + $0xa8] sm:$0xff]
        %v2531 = vld [vmem:[%s13 + $0xb0] sm:$0xff]
        %v2532 = vld [vmem:[%s13 + $0xb8] sm:$0xff]
        %v2533 = vld [vmem:[%s13 + $0xc0] sm:$0xff]
        %v2534 = vld [vmem:[%s13 + $0xc8] sm:$0xff]
        %v2535 = vld [vmem:[%s13 + $0xd0] sm:$0xff]
        %v2536 = vld [vmem:[%s13 + $0xd8] sm:$0xff]
        %v2537 = vld [vmem:[%s13 + $0xe0] sm:$0xff]
        %v2538 = vld [vmem:[%s13 + $0xe8] sm:$0xff]
        %v2539 = vld [vmem:[%s13 + $0xf0] sm:$0xff]
        %v2540 = vld [vmem:[%s13 + $0xf8] sm:$0xff]
        %v2541 = vld [vmem:[%s13 + $0x100] sm:$0xff]
        %v2542 = vld [vmem:[%s13 + $0x108] sm:$0xff]
        %v2543 = vld [vmem:[%s13 + $0x110] sm:$0xff]
        %v2544 = vld [vmem:[%s13 + $0x118] sm:$0xff]
        %v2545 = vld [vmem:[%s13 + $0x120] sm:$0xff]
        %v2546 = vld [vmem:[%s13 + $0x128] sm:$0xff]
        %v2547 = vld [vmem:[%s13 + $0x130] sm:$0xff]
        %v2548 = vld [vmem:[%s13 + $0x138] sm:$0xff]
        %v2549 = vld [vmem:[%s13 + $0x140] sm:$0xff]
        %v2550 = vld [vmem:[%s13 + $0x148] sm:$0xff]
        %v2551 = vld [vmem:[%s13 + $0x150] sm:$0xff]
        %v2552 = vld [vmem:[%s13 + $0x158] sm:$0xff]
        %v2553 = vld [vmem:[%s13 + $0x160] sm:$0xff]
        %v2554 = vld [vmem:[%s13 + $0x168] sm:$0xff]
        %v2555 = vld [vmem:[%s13 + $0x170] sm:$0xff]
        %v2556 = vld [vmem:[%s13 + $0x178] sm:$0xff]
        %v2557 = vld [vmem:[%s13 + $0x180] sm:$0xff]
        %v2558 = vld [vmem:[%s13 + $0x188] sm:$0xff]
        %v2559 = vld [vmem:[%s13 + $0x190] sm:$0xff]
        %v2560 = vld [vmem:[%s13 + $0x198] sm:$0xff]
        %v2561 = vld [vmem:[%s13 + $0x1a0] sm:$0xff]
        %v2562 = vld [vmem:[%s13 + $0x1a8] sm:$0xff]
        %v2563 = vld [vmem:[%s13 + $0x1b0] sm:$0xff]
        %v2564 = vld [vmem:[%s13 + $0x1b8] sm:$0xff]
        %v2565 = vld [vmem:[%s13 + $0x1c0] sm:$0xff]
        %v2566 = vld [vmem:[%s13 + $0x1c8] sm:$0xff]
        %v2567 = vld [vmem:[%s13 + $0x1d0] sm:$0xff]
        %v2568 = vld [vmem:[%s13 + $0x1d8] sm:$0xff]
        %v2569 = vld [vmem:[%s13 + $0x1e0] sm:$0xff]
        %v2570 = vld [vmem:[%s13 + $0x1e8] sm:$0xff]
        %v2571 = vld [vmem:[%s13 + $0x1f0] sm:$0xff]
        %v2572 = vld [vmem:[%s13 + $0x1f8] sm:$0xff]
        %v2573 = vld [vmem:[%s13 + $0x200] sm:$0xff]
        %v2574 = vld [vmem:[%s13 + $0x208] sm:$0xff]
        %v2575 = vld [vmem:[%s13 + $0x210] sm:$0xff]
        %v2576 = vld [vmem:[%s13 + $0x218] sm:$0xff]
        %v2577 = vld [vmem:[%s13 + $0x220] sm:$0xff]
        %v2578 = vld [vmem:[%s13 + $0x228] sm:$0xff]
        %v2579 = vld [vmem:[%s13 + $0x230] sm:$0xff]
        %v2580 = vld [vmem:[%s13 + $0x238] sm:$0xff]
        %v2581 = vld [vmem:[%s13 + $0x240] sm:$0xff]
        %v2582 = vld [vmem:[%s13 + $0x248] sm:$0xff]
        %v2583 = vld [vmem:[%s13 + $0x250] sm:$0xff]
        %v2584 = vld [vmem:[%s13 + $0x258] sm:$0xff]
        %v2585 = vld [vmem:[%s13 + $0x260] sm:$0xff]
        %v2586 = vld [vmem:[%s13 + $0x268] sm:$0xff]
        %v2587 = vld [vmem:[%s13 + $0x270] sm:$0xff]
        %v2588 = vld [vmem:[%s13 + $0x278] sm:$0xff]
        %v2589 = vld [vmem:[%s13 + $0x280] sm:$0xff]
        %v2590 = vld [vmem:[%s13 + $0x288] sm:$0xff]
        %v2591 = vld [vmem:[%s13 + $0x290] sm:$0xff]
        %v2592 = vld [vmem:[%s13 + $0x298] sm:$0xff]
        %v2593 = vld [vmem:[%s13 + $0x2a0] sm:$0xff]
        %v2594 = vld [vmem:[%s13 + $0x2a8] sm:$0xff]
        %v2595 = vld [vmem:[%s13 + $0x2b0] sm:$0xff]
        %v2596 = vld [vmem:[%s13 + $0x2b8] sm:$0xff]
        %v2597 = vld [vmem:[%s13 + $0x2c0] sm:$0xff]
        %v2598 = vld [vmem:[%s13 + $0x2c8] sm:$0xff]
        %v2599 = vld [vmem:[%s13 + $0x2d0] sm:$0xff]
        %v2600 = vld [vmem:[%s13 + $0x2d8] sm:$0xff]
        %v2601 = vld [vmem:[%s13 + $0x2e0] sm:$0xff]
        %v2602 = vld [vmem:[%s13 + $0x2e8] sm:$0xff]
        %v2603 = vld [vmem:[%s13 + $0x2f0] sm:$0xff]
        %v2604 = vld [vmem:[%s13 + $0x2f8] sm:$0xff]
        %v2605 = vld [vmem:[%s13 + $0x300] sm:$0xff]
        %v2606 = vld [vmem:[%s13 + $0x308] sm:$0xff]
        %v2607 = vld [vmem:[%s13 + $0x310] sm:$0xff]
        %v2608 = vld [vmem:[%s13 + $0x318] sm:$0xff]
        %v2609 = vld [vmem:[%s13 + $0x320] sm:$0xff]
        %v2610 = vld [vmem:[%s13 + $0x328] sm:$0xff]
        %v2611 = vld [vmem:[%s13 + $0x330] sm:$0xff]
        %v2612 = vld [vmem:[%s13 + $0x338] sm:$0xff]
        %v2613 = vld [vmem:[%s13 + $0x340] sm:$0xff]
        %v2614 = vld [vmem:[%s13 + $0x348] sm:$0xff]
        %v2615 = vld [vmem:[%s13 + $0x350] sm:$0xff]
        %v2616 = vld [vmem:[%s13 + $0x358] sm:$0xff]
        %v2617 = vld [vmem:[%s13 + $0x360] sm:$0xff]
        %v2618 = vld [vmem:[%s13 + $0x368] sm:$0xff]
        %v2619 = vld [vmem:[%s13 + $0x370] sm:$0xff]
        %v2620 = vld [vmem:[%s13 + $0x378] sm:$0xff]
        %v2621 = vld [vmem:[%s13 + $0x380] sm:$0xff]
        %v2622 = vld [vmem:[%s13 + $0x388] sm:$0xff]
        %v2623 = vld [vmem:[%s13 + $0x390] sm:$0xff]
        %v2624 = vld [vmem:[%s13 + $0x398] sm:$0xff]
        %v2625 = vld [vmem:[%s13 + $0x3a0] sm:$0xff]
        %v2626 = vld [vmem:[%s13 + $0x3a8] sm:$0xff]
        %v2627 = vld [vmem:[%s13 + $0x3b0] sm:$0xff]
        %v2628 = vld [vmem:[%s13 + $0x3b8] sm:$0xff]
        %v2629 = vld [vmem:[%s13 + $0x3c0] sm:$0xff]
        %v2630 = vld [vmem:[%s13 + $0x3c8] sm:$0xff]
        %v2631 = vld [vmem:[%s13 + $0x3d0] sm:$0xff]
        %v2632 = vld [vmem:[%s13 + $0x3d8] sm:$0xff]
        %v2633 = vld [vmem:[%s13 + $0x3e0] sm:$0xff]
        %v2634 = vld [vmem:[%s13 + $0x3e8] sm:$0xff]
        %v2635 = vld [vmem:[%s13 + $0x3f0] sm:$0xff]
        %v2636 = vld [vmem:[%s13 + $0x3f8] sm:$0xff]
        %v2637 = vld [vmem:[%s13 + $0x400] sm:$0xff]
        %v2638 = vld [vmem:[%s13 + $0x408] sm:$0xff]
        %v2639 = vld [vmem:[%s13 + $0x410] sm:$0xff]
        %v2640 = vld [vmem:[%s13 + $0x418] sm:$0xff]
        %v2641 = vld [vmem:[%s13 + $0x420] sm:$0xff]
        %v2642 = vld [vmem:[%s13 + $0x428] sm:$0xff]
        %v2643 = vld [vmem:[%s13 + $0x430] sm:$0xff]
        %v2644 = vld [vmem:[%s13 + $0x438] sm:$0xff]
        %v2645 = vld [vmem:[%s13 + $0x440] sm:$0xff]
        %v2646 = vld [vmem:[%s13 + $0x448] sm:$0xff]
        %v2647 = vld [vmem:[%s13 + $0x450] sm:$0xff]
        %v2648 = vld [vmem:[%s13 + $0x458] sm:$0xff]
        %v2649 = vld [vmem:[%s13 + $0x460] sm:$0xff]
        %v2650 = vld [vmem:[%s13 + $0x468] sm:$0xff]
        %v2651 = vld [vmem:[%s13 + $0x470] sm:$0xff]
        %v2652 = vld [vmem:[%s13 + $0x478] sm:$0xff]
        %v2653 = vld [vmem:[%s13 + $0x480] sm:$0xff]
        %v2654 = vld [vmem:[%s13 + $0x488] sm:$0xff]
        %v2655 = vld [vmem:[%s13 + $0x490] sm:$0xff]
        %v2656 = vld [vmem:[%s13 + $0x498] sm:$0xff]
        %v2657 = vld [vmem:[%s13 + $0x4a0] sm:$0xff]
        %v2658 = vld [vmem:[%s13 + $0x4a8] sm:$0xff]
        %v2659 = vld [vmem:[%s13 + $0x4b0] sm:$0xff]
        %v2660 = vld [vmem:[%s13 + $0x4b8] sm:$0xff]
        %v2661 = vld [vmem:[%s13 + $0x4c0] sm:$0xff]
        %v2662 = vld [vmem:[%s13 + $0x4c8] sm:$0xff]
        %v2663 = vld [vmem:[%s13 + $0x4d0] sm:$0xff]
        %v2664 = vld [vmem:[%s13 + $0x4d8] sm:$0xff]
        %v2665 = vld [vmem:[%s13 + $0x4e0] sm:$0xff]
        %v2666 = vld [vmem:[%s13 + $0x4e8] sm:$0xff]
        %v2667 = vld [vmem:[%s13 + $0x4f0] sm:$0xff]
        %v2668 = vld [vmem:[%s13 + $0x4f8] sm:$0xff]
        %v2669 = vld [vmem:[%s13 + $0x500] sm:$0xff]
        %v2670 = vld [vmem:[%s13 + $0x508] sm:$0xff]
        %v2671 = vld [vmem:[%s13 + $0x510] sm:$0xff]
        %v2672 = vld [vmem:[%s13 + $0x518] sm:$0xff]
        %v2673 = vld [vmem:[%s13 + $0x520] sm:$0xff]
        %v2674 = vld [vmem:[%s13 + $0x528] sm:$0xff]
        %v2675 = vld [vmem:[%s13 + $0x530] sm:$0xff]
        %v2676 = vld [vmem:[%s13 + $0x538] sm:$0xff]
        %v2677 = vld [vmem:[%s13 + $0x540] sm:$0xff]
        %v2678 = vld [vmem:[%s13 + $0x548] sm:$0xff]
        %v2679 = vld [vmem:[%s13 + $0x550] sm:$0xff]
        %v2680 = vld [vmem:[%s13 + $0x558] sm:$0xff]
        %v2681 = vld [vmem:[%s13 + $0x560] sm:$0xff]
        %v2682 = vld [vmem:[%s13 + $0x568] sm:$0xff]
        %v2683 = vld [vmem:[%s13 + $0x570] sm:$0xff]
        %v2684 = vld [vmem:[%s13 + $0x578] sm:$0xff]
        %v2685 = vld [vmem:[%s13 + $0x580] sm:$0xff]
        %v2686 = vld [vmem:[%s13 + $0x588] sm:$0xff]
        %v2687 = vld [vmem:[%s13 + $0x590] sm:$0xff]
        %v2688 = vld [vmem:[%s13 + $0x598] sm:$0xff]
        %v2689 = vld [vmem:[%s13 + $0x5a0] sm:$0xff]
        %v2690 = vld [vmem:[%s13 + $0x5a8] sm:$0xff]
        %v2691 = vld [vmem:[%s13 + $0x5b0] sm:$0xff]
        %v2692 = vld [vmem:[%s13 + $0x5b8] sm:$0xff]
        %v2693 = vld [vmem:[%s13 + $0x5c0] sm:$0xff]
        %v2694 = vld [vmem:[%s13 + $0x5c8] sm:$0xff]
        %v2695 = vld [vmem:[%s13 + $0x5d0] sm:$0xff]
        %v2696 = vld [vmem:[%s13 + $0x5d8] sm:$0xff]
        %v2697 = vld [vmem:[%s13 + $0x5e0] sm:$0xff]
        %v2698 = vld [vmem:[%s13 + $0x5e8] sm:$0xff]
        %v2699 = vld [vmem:[%s13 + $0x5f0] sm:$0xff]
        %v2700 = vld [vmem:[%s13 + $0x5f8] sm:$0xff]
        %v2701 = vld [vmem:[%s13 + $0x600] sm:$0xff]
        %v2702 = vld [vmem:[%s13 + $0x608] sm:$0xff]
        %v2703 = vld [vmem:[%s13 + $0x610] sm:$0xff]
        %v2704 = vld [vmem:[%s13 + $0x618] sm:$0xff]
        %v2705 = vld [vmem:[%s13 + $0x620] sm:$0xff]
        %v2706 = vld [vmem:[%s13 + $0x628] sm:$0xff]
        %v2707 = vld [vmem:[%s13 + $0x630] sm:$0xff]
        %v2708 = vld [vmem:[%s13 + $0x638] sm:$0xff]
        %v2709 = vld [vmem:[%s13 + $0x640] sm:$0xff]
        %v2710 = vld [vmem:[%s13 + $0x648] sm:$0xff]
        %v2711 = vld [vmem:[%s13 + $0x650] sm:$0xff]
        %v2712 = vld [vmem:[%s13 + $0x658] sm:$0xff]
        %v2713 = vld [vmem:[%s13 + $0x660] sm:$0xff]
        %v2714 = vld [vmem:[%s13 + $0x668] sm:$0xff]
        %v2715 = vld [vmem:[%s13 + $0x670] sm:$0xff]
        %v2716 = vld [vmem:[%s13 + $0x678] sm:$0xff]
        %v2717 = vld [vmem:[%s13 + $0x680] sm:$0xff]
        %v2718 = vld [vmem:[%s13 + $0x688] sm:$0xff]
        %v2719 = vld [vmem:[%s13 + $0x690] sm:$0xff]
        %v2720 = vld [vmem:[%s13 + $0x698] sm:$0xff]
        %v2721 = vld [vmem:[%s13 + $0x6a0] sm:$0xff]
        %v2722 = vld [vmem:[%s13 + $0x6a8] sm:$0xff]
        %v2723 = vld [vmem:[%s13 + $0x6b0] sm:$0xff]
        %v2724 = vld [vmem:[%s13 + $0x6b8] sm:$0xff]
        %v2725 = vld [vmem:[%s13 + $0x6c0] sm:$0xff]
        %v2726 = vld [vmem:[%s13 + $0x6c8] sm:$0xff]
        %v2727 = vld [vmem:[%s13 + $0x6d0] sm:$0xff]
        %v2728 = vld [vmem:[%s13 + $0x6d8] sm:$0xff]
        %v2729 = vld [vmem:[%s13 + $0x6e0] sm:$0xff]
        %v2730 = vld [vmem:[%s13 + $0x6e8] sm:$0xff]
        %v2731 = vld [vmem:[%s13 + $0x6f0] sm:$0xff]
        %v2732 = vld [vmem:[%s13 + $0x6f8] sm:$0xff]
        %v2733 = vld [vmem:[%s13 + $0x700] sm:$0xff]
        %v2734 = vld [vmem:[%s13 + $0x708] sm:$0xff]
        %v2735 = vld [vmem:[%s13 + $0x710] sm:$0xff]
        %v2736 = vld [vmem:[%s13 + $0x718] sm:$0xff]
        %v2737 = vld [vmem:[%s13 + $0x720] sm:$0xff]
        %v2738 = vld [vmem:[%s13 + $0x728] sm:$0xff]
        %v2739 = vld [vmem:[%s13 + $0x730] sm:$0xff]
        %v2740 = vld [vmem:[%s13 + $0x738] sm:$0xff]
        %v2741 = vld [vmem:[%s13 + $0x740] sm:$0xff]
        %v2742 = vld [vmem:[%s13 + $0x748] sm:$0xff]
        %v2743 = vld [vmem:[%s13 + $0x750] sm:$0xff]
        %v2744 = vld [vmem:[%s13 + $0x758] sm:$0xff]
        %v2745 = vld [vmem:[%s13 + $0x760] sm:$0xff]
        %v2746 = vld [vmem:[%s13 + $0x768] sm:$0xff]
        %v2747 = vld [vmem:[%s13 + $0x770] sm:$0xff]
        %v2748 = vld [vmem:[%s13 + $0x778] sm:$0xff]
        %v2749 = vld [vmem:[%s13 + $0x780] sm:$0xff]
        %v2750 = vld [vmem:[%s13 + $0x788] sm:$0xff]
        %v2751 = vld [vmem:[%s13 + $0x790] sm:$0xff]
        %v2752 = vld [vmem:[%s13 + $0x798] sm:$0xff]
        %v2753 = vld [vmem:[%s13 + $0x7a0] sm:$0xff]
        %v2754 = vld [vmem:[%s13 + $0x7a8] sm:$0xff]
        %v2755 = vld [vmem:[%s13 + $0x7b0] sm:$0xff]
        %v2756 = vld [vmem:[%s13 + $0x7b8] sm:$0xff]
        %v2757 = vld [vmem:[%s13 + $0x7c0] sm:$0xff]
        %v2758 = vld [vmem:[%s13 + $0x7c8] sm:$0xff]
        %v2759 = vld [vmem:[%s13 + $0x7d0] sm:$0xff]
        %v2760 = vld [vmem:[%s13 + $0x7d8] sm:$0xff]
        %v2761 = vld [vmem:[%s13 + $0x7e0] sm:$0xff]
        %v2762 = vld [vmem:[%s13 + $0x7e8] sm:$0xff]
        %v2763 = vld [vmem:[%s13 + $0x7f0] sm:$0xff]
        %v2764 = vld [vmem:[%s13 + $0x7f8] sm:$0xff]
        %v2765 = vld [vmem:[%s14] sm:$0x1]
        %v2767 = vlaneseq
        %v2768 = vshrl.u32 %v2767, 7
        %v2769 = vsub.s32 0, %v2768
        %v2770 = vrot.slane %v2765, %v2769
        %2772 = vmatprep.subr.mxu0 0.0
        %2773 = vmatpush1.msra.mxu0 %v2509
        %2774 = vmatprep.subr.mxu0 0.0
        %2775 = vmatpush1.msra.mxu0 %v2510
        %2776 = vmatprep.subr.mxu0 0.0
        %2777 = vmatpush1.msra.mxu0 %v2511
        %2778 = vmatprep.subr.mxu0 0.0
        %2779 = vmatpush1.msra.mxu0 %v2512
        %2780 = vmatprep.subr.mxu0 0.0
        %2781 = vmatpush1.msra.mxu0 %v2513
        %2782 = vmatprep.subr.mxu0 0.0
        %2783 = vmatpush1.msra.mxu0 %v2514
        %2784 = vmatprep.subr.mxu0 0.0
        %2785 = vmatpush1.msra.mxu0 %v2515
        %2786 = vmatprep.subr.mxu0 0.0
        %2787 = vmatpush1.msra.mxu0 %v2516
        %2788 = vmatprep.subr.mxu0 0.0
        %2789 = vmatpush1.msra.mxu0 %v2517
        %2790 = vmatprep.subr.mxu0 0.0
        %2791 = vmatpush1.msra.mxu0 %v2518
        %2792 = vmatprep.subr.mxu0 0.0
        %2793 = vmatpush1.msra.mxu0 %v2519
        %2794 = vmatprep.subr.mxu0 0.0
        %2795 = vmatpush1.msra.mxu0 %v2520
        %2796 = vmatprep.subr.mxu0 0.0
        %2797 = vmatpush1.msra.mxu0 %v2521
        %2798 = vmatprep.subr.mxu0 0.0
        %2799 = vmatpush1.msra.mxu0 %v2522
        %2800 = vmatprep.subr.mxu0 0.0
        %2801 = vmatpush1.msra.mxu0 %v2523
        %2802 = vmatprep.subr.mxu0 0.0
        %2803 = vmatpush1.msra.mxu0 %v2524
        %2804 = vmatprep.subr.mxu0 0.0
        %2805 = vmatpush1.msra.mxu0 %v2525
        %2806 = vmatprep.subr.mxu0 0.0
        %2807 = vmatpush1.msra.mxu0 %v2526
        %2808 = vmatprep.subr.mxu0 0.0
        %2809 = vmatpush1.msra.mxu0 %v2527
        %2810 = vmatprep.subr.mxu0 0.0
        %2811 = vmatpush1.msra.mxu0 %v2528
        %2812 = vmatprep.subr.mxu0 0.0
        %2813 = vmatpush1.msra.mxu0 %v2529
        %2814 = vmatprep.subr.mxu0 0.0
        %2815 = vmatpush1.msra.mxu0 %v2530
        %2816 = vmatprep.subr.mxu0 0.0
        %2817 = vmatpush1.msra.mxu0 %v2531
        %2818 = vmatprep.subr.mxu0 0.0
        %2819 = vmatpush1.msra.mxu0 %v2532
        %2820 = vmatprep.subr.mxu0 0.0
        %2821 = vmatpush1.msra.mxu0 %v2533
        %2822 = vmatprep.subr.mxu0 0.0
        %2823 = vmatpush1.msra.mxu0 %v2534
        %2824 = vmatprep.subr.mxu0 0.0
        %2825 = vmatpush1.msra.mxu0 %v2535
        %2826 = vmatprep.subr.mxu0 0.0
        %2827 = vmatpush1.msra.mxu0 %v2536
        %2828 = vmatprep.subr.mxu0 0.0
        %2829 = vmatpush1.msra.mxu0 %v2537
        %2830 = vmatprep.subr.mxu0 0.0
        %2831 = vmatpush1.msra.mxu0 %v2538
        %2832 = vmatprep.subr.mxu0 0.0
        %2833 = vmatpush1.msra.mxu0 %v2539
        %2834 = vmatprep.subr.mxu0 0.0
        %2835 = vmatpush1.msra.mxu0 %v2540
        %2836 = vmatprep.mubr.f32.mxu0 %v2494
        %2837 = vmatmul.mubr.f32.gmra.mrb[0].mxu0 %v2493
        %v2838 = vpop.f32.mrb[0].mxu0
        %v2839 = vadd.f32 %v2770, %v2838
        %v2840 = vpop.f32.mrb[0].mxu0
        %2841 = vdwg.mxu0
        %2842 = vmatprep.subr.mxu0 0.0
        %2843 = vmatpush1.msra.mxu0 %v2541
        %2844 = vmatprep.subr.mxu0 0.0
        %2845 = vmatpush1.msra.mxu0 %v2542
        %2846 = vmatprep.subr.mxu0 0.0
        %2847 = vmatpush1.msra.mxu0 %v2543
        %2848 = vmatprep.subr.mxu0 0.0
        %2849 = vmatpush1.msra.mxu0 %v2544
        %2850 = vmatprep.subr.mxu0 0.0
        %2851 = vmatpush1.msra.mxu0 %v2545
        %2852 = vmatprep.subr.mxu0 0.0
        %2853 = vmatpush1.msra.mxu0 %v2546
        %2854 = vmatprep.subr.mxu0 0.0
        %2855 = vmatpush1.msra.mxu0 %v2547
        %2856 = vmatprep.subr.mxu0 0.0
        %2857 = vmatpush1.msra.mxu0 %v2548
        %2858 = vmatprep.subr.mxu0 0.0
        %2859 = vmatpush1.msra.mxu0 %v2549
        %2860 = vmatprep.subr.mxu0 0.0
        %2861 = vmatpush1.msra.mxu0 %v2550
        %2862 = vmatprep.subr.mxu0 0.0
        %2863 = vmatpush1.msra.mxu0 %v2551
        %2864 = vmatprep.subr.mxu0 0.0
        %2865 = vmatpush1.msra.mxu0 %v2552
        %2866 = vmatprep.subr.mxu0 0.0
        %2867 = vmatpush1.msra.mxu0 %v2553
        %2868 = vmatprep.subr.mxu0 0.0
        %2869 = vmatpush1.msra.mxu0 %v2554
        %2870 = vmatprep.subr.mxu0 0.0
        %2871 = vmatpush1.msra.mxu0 %v2555
        %2872 = vmatprep.subr.mxu0 0.0
        %2873 = vmatpush1.msra.mxu0 %v2556
        %2874 = vmatprep.subr.mxu0 0.0
        %2875 = vmatpush1.msra.mxu0 %v2557
        %2876 = vmatprep.subr.mxu0 0.0
        %2877 = vmatpush1.msra.mxu0 %v2558
        %2878 = vmatprep.subr.mxu0 0.0
        %2879 = vmatpush1.msra.mxu0 %v2559
        %2880 = vmatprep.subr.mxu0 0.0
        %2881 = vmatpush1.msra.mxu0 %v2560
        %2882 = vmatprep.subr.mxu0 0.0
        %2883 = vmatpush1.msra.mxu0 %v2561
        %2884 = vmatprep.subr.mxu0 0.0
        %2885 = vmatpush1.msra.mxu0 %v2562
        %2886 = vmatprep.subr.mxu0 0.0
        %2887 = vmatpush1.msra.mxu0 %v2563
        %2888 = vmatprep.subr.mxu0 0.0
        %2889 = vmatpush1.msra.mxu0 %v2564
        %2890 = vmatprep.subr.mxu0 0.0
        %2891 = vmatpush1.msra.mxu0 %v2565
        %2892 = vmatprep.subr.mxu0 0.0
        %2893 = vmatpush1.msra.mxu0 %v2566
        %2894 = vmatprep.subr.mxu0 0.0
        %2895 = vmatpush1.msra.mxu0 %v2567
        %2896 = vmatprep.subr.mxu0 0.0
        %2897 = vmatpush1.msra.mxu0 %v2568
        %2898 = vmatprep.subr.mxu0 0.0
        %2899 = vmatpush1.msra.mxu0 %v2569
        %2900 = vmatprep.subr.mxu0 0.0
        %2901 = vmatpush1.msra.mxu0 %v2570
        %2902 = vmatprep.subr.mxu0 0.0
        %2903 = vmatpush1.msra.mxu0 %v2571
        %2904 = vmatprep.subr.mxu0 0.0
        %2905 = vmatpush1.msra.mxu0 %v2572
        %2906 = vmatprep.mubr.f32.mxu0 %v2496
        %2907 = vmatmul.mubr.f32.gmra.mrb[0].mxu0 %v2495
        %v2908 = vpop.f32.mrb[0].mxu0
        %v2909 = vadd.f32 %v2839, %v2908
        %v2910 = vpop.f32.mrb[0].mxu0
        %2911 = vdwg.mxu0
        %2912 = vmatprep.subr.mxu0 0.0
        %2913 = vmatpush1.msra.mxu0 %v2573
        %2914 = vmatprep.subr.mxu0 0.0
        %2915 = vmatpush1.msra.mxu0 %v2574
        %2916 = vmatprep.subr.mxu0 0.0
        %2917 = vmatpush1.msra.mxu0 %v2575
        %2918 = vmatprep.subr.mxu0 0.0
        %2919 = vmatpush1.msra.mxu0 %v2576
        %2920 = vmatprep.subr.mxu0 0.0
        %2921 = vmatpush1.msra.mxu0 %v2577
        %2922 = vmatprep.subr.mxu0 0.0
        %2923 = vmatpush1.msra.mxu0 %v2578
        %2924 = vmatprep.subr.mxu0 0.0
        %2925 = vmatpush1.msra.mxu0 %v2579
        %2926 = vmatprep.subr.mxu0 0.0
        %2927 = vmatpush1.msra.mxu0 %v2580
        %2928 = vmatprep.subr.mxu0 0.0
        %2929 = vmatpush1.msra.mxu0 %v2581
        %2930 = vmatprep.subr.mxu0 0.0
        %2931 = vmatpush1.msra.mxu0 %v2582
        %2932 = vmatprep.subr.mxu0 0.0
        %2933 = vmatpush1.msra.mxu0 %v2583
        %2934 = vmatprep.subr.mxu0 0.0
        %2935 = vmatpush1.msra.mxu0 %v2584
        %2936 = vmatprep.subr.mxu0 0.0
        %2937 = vmatpush1.msra.mxu0 %v2585
        %2938 = vmatprep.subr.mxu0 0.0
        %2939 = vmatpush1.msra.mxu0 %v2586
        %2940 = vmatprep.subr.mxu0 0.0
        %2941 = vmatpush1.msra.mxu0 %v2587
        %2942 = vmatprep.subr.mxu0 0.0
        %2943 = vmatpush1.msra.mxu0 %v2588
        %2944 = vmatprep.subr.mxu0 0.0
        %2945 = vmatpush1.msra.mxu0 %v2589
        %2946 = vmatprep.subr.mxu0 0.0
        %2947 = vmatpush1.msra.mxu0 %v2590
        %2948 = vmatprep.subr.mxu0 0.0
        %2949 = vmatpush1.msra.mxu0 %v2591
        %2950 = vmatprep.subr.mxu0 0.0
        %2951 = vmatpush1.msra.mxu0 %v2592
        %2952 = vmatprep.subr.mxu0 0.0
        %2953 = vmatpush1.msra.mxu0 %v2593
        %2954 = vmatprep.subr.mxu0 0.0
        %2955 = vmatpush1.msra.mxu0 %v2594
        %2956 = vmatprep.subr.mxu0 0.0
        %2957 = vmatpush1.msra.mxu0 %v2595
        %2958 = vmatprep.subr.mxu0 0.0
        %2959 = vmatpush1.msra.mxu0 %v2596
        %2960 = vmatprep.subr.mxu0 0.0
        %2961 = vmatpush1.msra.mxu0 %v2597
        %2962 = vmatprep.subr.mxu0 0.0
        %2963 = vmatpush1.msra.mxu0 %v2598
        %2964 = vmatprep.subr.mxu0 0.0
        %2965 = vmatpush1.msra.mxu0 %v2599
        %2966 = vmatprep.subr.mxu0 0.0
        %2967 = vmatpush1.msra.mxu0 %v2600
        %2968 = vmatprep.subr.mxu0 0.0
        %2969 = vmatpush1.msra.mxu0 %v2601
        %2970 = vmatprep.subr.mxu0 0.0
        %2971 = vmatpush1.msra.mxu0 %v2602
        %2972 = vmatprep.subr.mxu0 0.0
        %2973 = vmatpush1.msra.mxu0 %v2603
        %2974 = vmatprep.subr.mxu0 0.0
        %2975 = vmatpush1.msra.mxu0 %v2604
        %2976 = vmatprep.mubr.f32.mxu0 %v2498
        %2977 = vmatmul.mubr.f32.gmra.mrb[0].mxu0 %v2497
        %v2978 = vpop.f32.mrb[0].mxu0
        %v2979 = vadd.f32 %v2909, %v2978
        %v2980 = vpop.f32.mrb[0].mxu0
        %2981 = vdwg.mxu0
        %2982 = vmatprep.subr.mxu0 0.0
        %2983 = vmatpush1.msra.mxu0 %v2605
        %2984 = vmatprep.subr.mxu0 0.0
        %2985 = vmatpush1.msra.mxu0 %v2606
        %2986 = vmatprep.subr.mxu0 0.0
        %2987 = vmatpush1.msra.mxu0 %v2607
        %2988 = vmatprep.subr.mxu0 0.0
        %2989 = vmatpush1.msra.mxu0 %v2608
        %2990 = vmatprep.subr.mxu0 0.0
        %2991 = vmatpush1.msra.mxu0 %v2609
        %2992 = vmatprep.subr.mxu0 0.0
        %2993 = vmatpush1.msra.mxu0 %v2610
        %2994 = vmatprep.subr.mxu0 0.0
        %2995 = vmatpush1.msra.mxu0 %v2611
        %2996 = vmatprep.subr.mxu0 0.0
        %2997 = vmatpush1.msra.mxu0 %v2612
        %2998 = vmatprep.subr.mxu0 0.0
        %2999 = vmatpush1.msra.mxu0 %v2613
        %3000 = vmatprep.subr.mxu0 0.0
        %3001 = vmatpush1.msra.mxu0 %v2614
        %3002 = vmatprep.subr.mxu0 0.0
        %3003 = vmatpush1.msra.mxu0 %v2615
        %3004 = vmatprep.subr.mxu0 0.0
        %3005 = vmatpush1.msra.mxu0 %v2616
        %3006 = vmatprep.subr.mxu0 0.0
        %3007 = vmatpush1.msra.mxu0 %v2617
        %3008 = vmatprep.subr.mxu0 0.0
        %3009 = vmatpush1.msra.mxu0 %v2618
        %3010 = vmatprep.subr.mxu0 0.0
        %3011 = vmatpush1.msra.mxu0 %v2619
        %3012 = vmatprep.subr.mxu0 0.0
        %3013 = vmatpush1.msra.mxu0 %v2620
        %3014 = vmatprep.subr.mxu0 0.0
        %3015 = vmatpush1.msra.mxu0 %v2621
        %3016 = vmatprep.subr.mxu0 0.0
        %3017 = vmatpush1.msra.mxu0 %v2622
        %3018 = vmatprep.subr.mxu0 0.0
        %3019 = vmatpush1.msra.mxu0 %v2623
        %3020 = vmatprep.subr.mxu0 0.0
        %3021 = vmatpush1.msra.mxu0 %v2624
        %3022 = vmatprep.subr.mxu0 0.0
        %3023 = vmatpush1.msra.mxu0 %v2625
        %3024 = vmatprep.subr.mxu0 0.0
        %3025 = vmatpush1.msra.mxu0 %v2626
        %3026 = vmatprep.subr.mxu0 0.0
        %3027 = vmatpush1.msra.mxu0 %v2627
        %3028 = vmatprep.subr.mxu0 0.0
        %3029 = vmatpush1.msra.mxu0 %v2628
        %3030 = vmatprep.subr.mxu0 0.0
        %3031 = vmatpush1.msra.mxu0 %v2629
        %3032 = vmatprep.subr.mxu0 0.0
        %3033 = vmatpush1.msra.mxu0 %v2630
        %3034 = vmatprep.subr.mxu0 0.0
        %3035 = vmatpush1.msra.mxu0 %v2631
        %3036 = vmatprep.subr.mxu0 0.0
        %3037 = vmatpush1.msra.mxu0 %v2632
        %3038 = vmatprep.subr.mxu0 0.0
        %3039 = vmatpush1.msra.mxu0 %v2633
        %3040 = vmatprep.subr.mxu0 0.0
        %3041 = vmatpush1.msra.mxu0 %v2634
        %3042 = vmatprep.subr.mxu0 0.0
        %3043 = vmatpush1.msra.mxu0 %v2635
        %3044 = vmatprep.subr.mxu0 0.0
        %3045 = vmatpush1.msra.mxu0 %v2636
        %3046 = vmatprep.mubr.f32.mxu0 %v2500
        %3047 = vmatmul.mubr.f32.gmra.mrb[0].mxu0 %v2499
        %v3048 = vpop.f32.mrb[0].mxu0
        %v3049 = vadd.f32 %v2979, %v3048
        %v3050 = vpop.f32.mrb[0].mxu0
        %3051 = vdwg.mxu0
        %3052 = vmatprep.subr.mxu0 0.0
        %3053 = vmatpush1.msra.mxu0 %v2637
        %3054 = vmatprep.subr.mxu0 0.0
        %3055 = vmatpush1.msra.mxu0 %v2638
        %3056 = vmatprep.subr.mxu0 0.0
        %3057 = vmatpush1.msra.mxu0 %v2639
        %3058 = vmatprep.subr.mxu0 0.0
        %3059 = vmatpush1.msra.mxu0 %v2640
        %3060 = vmatprep.subr.mxu0 0.0
        %3061 = vmatpush1.msra.mxu0 %v2641
        %3062 = vmatprep.subr.mxu0 0.0
        %3063 = vmatpush1.msra.mxu0 %v2642
        %3064 = vmatprep.subr.mxu0 0.0
        %3065 = vmatpush1.msra.mxu0 %v2643
        %3066 = vmatprep.subr.mxu0 0.0
        %3067 = vmatpush1.msra.mxu0 %v2644
        %3068 = vmatprep.subr.mxu0 0.0
        %3069 = vmatpush1.msra.mxu0 %v2645
        %3070 = vmatprep.subr.mxu0 0.0
        %3071 = vmatpush1.msra.mxu0 %v2646
        %3072 = vmatprep.subr.mxu0 0.0
        %3073 = vmatpush1.msra.mxu0 %v2647
        %3074 = vmatprep.subr.mxu0 0.0
        %3075 = vmatpush1.msra.mxu0 %v2648
        %3076 = vmatprep.subr.mxu0 0.0
        %3077 = vmatpush1.msra.mxu0 %v2649
        %3078 = vmatprep.subr.mxu0 0.0
        %3079 = vmatpush1.msra.mxu0 %v2650
        %3080 = vmatprep.subr.mxu0 0.0
        %3081 = vmatpush1.msra.mxu0 %v2651
        %3082 = vmatprep.subr.mxu0 0.0
        %3083 = vmatpush1.msra.mxu0 %v2652
        %3084 = vmatprep.subr.mxu0 0.0
        %3085 = vmatpush1.msra.mxu0 %v2653
        %3086 = vmatprep.subr.mxu0 0.0
        %3087 = vmatpush1.msra.mxu0 %v2654
        %3088 = vmatprep.subr.mxu0 0.0
        %3089 = vmatpush1.msra.mxu0 %v2655
        %3090 = vmatprep.subr.mxu0 0.0
        %3091 = vmatpush1.msra.mxu0 %v2656
        %3092 = vmatprep.subr.mxu0 0.0
        %3093 = vmatpush1.msra.mxu0 %v2657
        %3094 = vmatprep.subr.mxu0 0.0
        %3095 = vmatpush1.msra.mxu0 %v2658
        %3096 = vmatprep.subr.mxu0 0.0
        %3097 = vmatpush1.msra.mxu0 %v2659
        %3098 = vmatprep.subr.mxu0 0.0
        %3099 = vmatpush1.msra.mxu0 %v2660
        %3100 = vmatprep.subr.mxu0 0.0
        %3101 = vmatpush1.msra.mxu0 %v2661
        %3102 = vmatprep.subr.mxu0 0.0
        %3103 = vmatpush1.msra.mxu0 %v2662
        %3104 = vmatprep.subr.mxu0 0.0
        %3105 = vmatpush1.msra.mxu0 %v2663
        %3106 = vmatprep.subr.mxu0 0.0
        %3107 = vmatpush1.msra.mxu0 %v2664
        %3108 = vmatprep.subr.mxu0 0.0
        %3109 = vmatpush1.msra.mxu0 %v2665
        %3110 = vmatprep.subr.mxu0 0.0
        %3111 = vmatpush1.msra.mxu0 %v2666
        %3112 = vmatprep.subr.mxu0 0.0
        %3113 = vmatpush1.msra.mxu0 %v2667
        %3114 = vmatprep.subr.mxu0 0.0
        %3115 = vmatpush1.msra.mxu0 %v2668
        %3116 = vmatprep.mubr.f32.mxu0 %v2502
        %3117 = vmatmul.mubr.f32.gmra.mrb[0].mxu0 %v2501
        %v3118 = vpop.f32.mrb[0].mxu0
        %v3119 = vadd.f32 %v3049, %v3118
        %v3120 = vpop.f32.mrb[0].mxu0
        %3121 = vdwg.mxu0
        %3122 = vmatprep.subr.mxu0 0.0
        %3123 = vmatpush1.msra.mxu0 %v2669
        %3124 = vmatprep.subr.mxu0 0.0
        %3125 = vmatpush1.msra.mxu0 %v2670
        %3126 = vmatprep.subr.mxu0 0.0
        %3127 = vmatpush1.msra.mxu0 %v2671
        %3128 = vmatprep.subr.mxu0 0.0
        %3129 = vmatpush1.msra.mxu0 %v2672
        %3130 = vmatprep.subr.mxu0 0.0
        %3131 = vmatpush1.msra.mxu0 %v2673
        %3132 = vmatprep.subr.mxu0 0.0
        %3133 = vmatpush1.msra.mxu0 %v2674
        %3134 = vmatprep.subr.mxu0 0.0
        %3135 = vmatpush1.msra.mxu0 %v2675
        %3136 = vmatprep.subr.mxu0 0.0
        %3137 = vmatpush1.msra.mxu0 %v2676
        %3138 = vmatprep.subr.mxu0 0.0
        %3139 = vmatpush1.msra.mxu0 %v2677
        %3140 = vmatprep.subr.mxu0 0.0
        %3141 = vmatpush1.msra.mxu0 %v2678
        %3142 = vmatprep.subr.mxu0 0.0
        %3143 = vmatpush1.msra.mxu0 %v2679
        %3144 = vmatprep.subr.mxu0 0.0
        %3145 = vmatpush1.msra.mxu0 %v2680
        %3146 = vmatprep.subr.mxu0 0.0
        %3147 = vmatpush1.msra.mxu0 %v2681
        %3148 = vmatprep.subr.mxu0 0.0
        %3149 = vmatpush1.msra.mxu0 %v2682
        %3150 = vmatprep.subr.mxu0 0.0
        %3151 = vmatpush1.msra.mxu0 %v2683
        %3152 = vmatprep.subr.mxu0 0.0
        %3153 = vmatpush1.msra.mxu0 %v2684
        %3154 = vmatprep.subr.mxu0 0.0
        %3155 = vmatpush1.msra.mxu0 %v2685
        %3156 = vmatprep.subr.mxu0 0.0
        %3157 = vmatpush1.msra.mxu0 %v2686
        %3158 = vmatprep.subr.mxu0 0.0
        %3159 = vmatpush1.msra.mxu0 %v2687
        %3160 = vmatprep.subr.mxu0 0.0
        %3161 = vmatpush1.msra.mxu0 %v2688
        %3162 = vmatprep.subr.mxu0 0.0
        %3163 = vmatpush1.msra.mxu0 %v2689
        %3164 = vmatprep.subr.mxu0 0.0
        %3165 = vmatpush1.msra.mxu0 %v2690
        %3166 = vmatprep.subr.mxu0 0.0
        %3167 = vmatpush1.msra.mxu0 %v2691
        %3168 = vmatprep.subr.mxu0 0.0
        %3169 = vmatpush1.msra.mxu0 %v2692
        %3170 = vmatprep.subr.mxu0 0.0
        %3171 = vmatpush1.msra.mxu0 %v2693
        %3172 = vmatprep.subr.mxu0 0.0
        %3173 = vmatpush1.msra.mxu0 %v2694
        %3174 = vmatprep.subr.mxu0 0.0
        %3175 = vmatpush1.msra.mxu0 %v2695
        %3176 = vmatprep.subr.mxu0 0.0
        %3177 = vmatpush1.msra.mxu0 %v2696
        %3178 = vmatprep.subr.mxu0 0.0
        %3179 = vmatpush1.msra.mxu0 %v2697
        %3180 = vmatprep.subr.mxu0 0.0
        %3181 = vmatpush1.msra.mxu0 %v2698
        %3182 = vmatprep.subr.mxu0 0.0
        %3183 = vmatpush1.msra.mxu0 %v2699
        %3184 = vmatprep.subr.mxu0 0.0
        %3185 = vmatpush1.msra.mxu0 %v2700
        %3186 = vmatprep.mubr.f32.mxu0 %v2504
        %3187 = vmatmul.mubr.f32.gmra.mrb[0].mxu0 %v2503
        %v3188 = vpop.f32.mrb[0].mxu0
        %v3189 = vadd.f32 %v3119, %v3188
        %v3190 = vpop.f32.mrb[0].mxu0
        %3191 = vdwg.mxu0
        %3192 = vmatprep.subr.mxu0 0.0
        %3193 = vmatpush1.msra.mxu0 %v2701
        %3194 = vmatprep.subr.mxu0 0.0
        %3195 = vmatpush1.msra.mxu0 %v2702
        %3196 = vmatprep.subr.mxu0 0.0
        %3197 = vmatpush1.msra.mxu0 %v2703
        %3198 = vmatprep.subr.mxu0 0.0
        %3199 = vmatpush1.msra.mxu0 %v2704
        %3200 = vmatprep.subr.mxu0 0.0
        %3201 = vmatpush1.msra.mxu0 %v2705
        %3202 = vmatprep.subr.mxu0 0.0
        %3203 = vmatpush1.msra.mxu0 %v2706
        %3204 = vmatprep.subr.mxu0 0.0
        %3205 = vmatpush1.msra.mxu0 %v2707
        %3206 = vmatprep.subr.mxu0 0.0
        %3207 = vmatpush1.msra.mxu0 %v2708
        %3208 = vmatprep.subr.mxu0 0.0
        %3209 = vmatpush1.msra.mxu0 %v2709
        %3210 = vmatprep.subr.mxu0 0.0
        %3211 = vmatpush1.msra.mxu0 %v2710
        %3212 = vmatprep.subr.mxu0 0.0
        %3213 = vmatpush1.msra.mxu0 %v2711
        %3214 = vmatprep.subr.mxu0 0.0
        %3215 = vmatpush1.msra.mxu0 %v2712
        %3216 = vmatprep.subr.mxu0 0.0
        %3217 = vmatpush1.msra.mxu0 %v2713
        %3218 = vmatprep.subr.mxu0 0.0
        %3219 = vmatpush1.msra.mxu0 %v2714
        %3220 = vmatprep.subr.mxu0 0.0
        %3221 = vmatpush1.msra.mxu0 %v2715
        %3222 = vmatprep.subr.mxu0 0.0
        %3223 = vmatpush1.msra.mxu0 %v2716
        %3224 = vmatprep.subr.mxu0 0.0
        %3225 = vmatpush1.msra.mxu0 %v2717
        %3226 = vmatprep.subr.mxu0 0.0
        %3227 = vmatpush1.msra.mxu0 %v2718
        %3228 = vmatprep.subr.mxu0 0.0
        %3229 = vmatpush1.msra.mxu0 %v2719
        %3230 = vmatprep.subr.mxu0 0.0
        %3231 = vmatpush1.msra.mxu0 %v2720
        %3232 = vmatprep.subr.mxu0 0.0
        %3233 = vmatpush1.msra.mxu0 %v2721
        %3234 = vmatprep.subr.mxu0 0.0
        %3235 = vmatpush1.msra.mxu0 %v2722
        %3236 = vmatprep.subr.mxu0 0.0
        %3237 = vmatpush1.msra.mxu0 %v2723
        %3238 = vmatprep.subr.mxu0 0.0
        %3239 = vmatpush1.msra.mxu0 %v2724
        %3240 = vmatprep.subr.mxu0 0.0
        %3241 = vmatpush1.msra.mxu0 %v2725
        %3242 = vmatprep.subr.mxu0 0.0
        %3243 = vmatpush1.msra.mxu0 %v2726
        %3244 = vmatprep.subr.mxu0 0.0
        %3245 = vmatpush1.msra.mxu0 %v2727
        %3246 = vmatprep.subr.mxu0 0.0
        %3247 = vmatpush1.msra.mxu0 %v2728
        %3248 = vmatprep.subr.mxu0 0.0
        %3249 = vmatpush1.msra.mxu0 %v2729
        %3250 = vmatprep.subr.mxu0 0.0
        %3251 = vmatpush1.msra.mxu0 %v2730
        %3252 = vmatprep.subr.mxu0 0.0
        %3253 = vmatpush1.msra.mxu0 %v2731
        %3254 = vmatprep.subr.mxu0 0.0
        %3255 = vmatpush1.msra.mxu0 %v2732
        %3256 = vmatprep.mubr.f32.mxu0 %v2506
        %3257 = vmatmul.mubr.f32.gmra.mrb[0].mxu0 %v2505
        %v3258 = vpop.f32.mrb[0].mxu0
        %v3259 = vadd.f32 %v3189, %v3258
        %v3260 = vpop.f32.mrb[0].mxu0
        %3261 = vdwg.mxu0
        %3262 = vmatprep.subr.mxu0 0.0
        %3263 = vmatpush1.msra.mxu0 %v2733
        %3264 = vmatprep.subr.mxu0 0.0
        %3265 = vmatpush1.msra.mxu0 %v2734
        %3266 = vmatprep.subr.mxu0 0.0
        %3267 = vmatpush1.msra.mxu0 %v2735
        %3268 = vmatprep.subr.mxu0 0.0
        %3269 = vmatpush1.msra.mxu0 %v2736
        %3270 = vmatprep.subr.mxu0 0.0
        %3271 = vmatpush1.msra.mxu0 %v2737
        %3272 = vmatprep.subr.mxu0 0.0
        %3273 = vmatpush1.msra.mxu0 %v2738
        %3274 = vmatprep.subr.mxu0 0.0
        %3275 = vmatpush1.msra.mxu0 %v2739
        %3276 = vmatprep.subr.mxu0 0.0
        %3277 = vmatpush1.msra.mxu0 %v2740
        %3278 = vmatprep.subr.mxu0 0.0
        %3279 = vmatpush1.msra.mxu0 %v2741
        %3280 = vmatprep.subr.mxu0 0.0
        %3281 = vmatpush1.msra.mxu0 %v2742
        %3282 = vmatprep.subr.mxu0 0.0
        %3283 = vmatpush1.msra.mxu0 %v2743
        %3284 = vmatprep.subr.mxu0 0.0
        %3285 = vmatpush1.msra.mxu0 %v2744
        %3286 = vmatprep.subr.mxu0 0.0
        %3287 = vmatpush1.msra.mxu0 %v2745
        %3288 = vmatprep.subr.mxu0 0.0
        %3289 = vmatpush1.msra.mxu0 %v2746
        %3290 = vmatprep.subr.mxu0 0.0
        %3291 = vmatpush1.msra.mxu0 %v2747
        %3292 = vmatprep.subr.mxu0 0.0
        %3293 = vmatpush1.msra.mxu0 %v2748
        %3294 = vmatprep.subr.mxu0 0.0
        %3295 = vmatpush1.msra.mxu0 %v2749
        %3296 = vmatprep.subr.mxu0 0.0
        %3297 = vmatpush1.msra.mxu0 %v2750
        %3298 = vmatprep.subr.mxu0 0.0
        %3299 = vmatpush1.msra.mxu0 %v2751
        %3300 = vmatprep.subr.mxu0 0.0
        %3301 = vmatpush1.msra.mxu0 %v2752
        %3302 = vmatprep.subr.mxu0 0.0
        %3303 = vmatpush1.msra.mxu0 %v2753
        %3304 = vmatprep.subr.mxu0 0.0
        %3305 = vmatpush1.msra.mxu0 %v2754
        %3306 = vmatprep.subr.mxu0 0.0
        %3307 = vmatpush1.msra.mxu0 %v2755
        %3308 = vmatprep.subr.mxu0 0.0
        %3309 = vmatpush1.msra.mxu0 %v2756
        %3310 = vmatprep.subr.mxu0 0.0
        %3311 = vmatpush1.msra.mxu0 %v2757
        %3312 = vmatprep.subr.mxu0 0.0
        %3313 = vmatpush1.msra.mxu0 %v2758
        %3314 = vmatprep.subr.mxu0 0.0
        %3315 = vmatpush1.msra.mxu0 %v2759
        %3316 = vmatprep.subr.mxu0 0.0
        %3317 = vmatpush1.msra.mxu0 %v2760
        %3318 = vmatprep.subr.mxu0 0.0
        %3319 = vmatpush1.msra.mxu0 %v2761
        %3320 = vmatprep.subr.mxu0 0.0
        %3321 = vmatpush1.msra.mxu0 %v2762
        %3322 = vmatprep.subr.mxu0 0.0
        %3323 = vmatpush1.msra.mxu0 %v2763
        %3324 = vmatprep.subr.mxu0 0.0
        %3325 = vmatpush1.msra.mxu0 %v2764
        %3326 = vmatprep.mubr.f32.mxu0 %v2508
        %3327 = vmatmul.mubr.f32.gmra.mrb[0].mxu0 %v2507
        %v3328 = vpop.f32.mrb[0].mxu0
        %v3329 = vadd.f32 %v3259, %v3328
        %v3330 = vpop.f32.mrb[0].mxu0
        %3331 = vdwg.mxu0
        %v3332 = vadd.f32 %v1709, %v3329
        %v3333 = vld [vmem:[%s15] sm:$0x1]
        %v3334 = vld [vmem:[%s16] sm:$0x1]
        %v3335 = vsel %vm668, %v3332, 0.0
        %3336 = vadd.xlane.f32.xlu0 %v3335
        %v3337 = vpop.xlane.xlu0 %3336
        %v3338 = vmul.f32 %v3337, %v1685
        %v3339 = vsub.f32 %v3332, %v3338
        %v3340 = vmul.f32 %v3339, %v3339
        %v3341 = vsel %vm668, %v3340, 0.0
        %3342 = vadd.xlane.f32.xlu0 %v3341
        %v3343 = vpop.xlane.xlu0 %3342
        %v3344 = vmul.f32 %v3343, %v1685
        %v3345 = vadd.f32 %v3344, 1e-05
        %v3346 = vrsqrt.pop %v3345
        %v3347 = vmul.f32 %v3339, %v3346
        %v3349 = vlaneseq
        %v3350 = vshrl.u32 %v3349, 7
        %v3351 = vsub.s32 0, %v3350
        %v3352 = vrot.slane %v3333, %v3351
        %v3354 = vmul.f32 %v3347, %v3352
        %v3356 = vlaneseq
        %v3357 = vshrl.u32 %v3356, 7
        %v3358 = vsub.s32 0, %v3357
        %v3359 = vrot.slane %v3334, %v3358
        %v3361 = vadd.f32 %v3354, %v3359
        %v3362 = vld [vmem:[%s17] sm:$0xff]
        %v3363 = vld [vmem:[%s17 + $0x8] sm:$0xff]
        %v3364 = vld [vmem:[%s17 + $0x10] sm:$0xff]
        %v3365 = vld [vmem:[%s17 + $0x18] sm:$0xff]
        %v3366 = vld [vmem:[%s17 + $0x20] sm:$0xff]
        %v3367 = vld [vmem:[%s17 + $0x28] sm:$0xff]
        %v3368 = vld [vmem:[%s17 + $0x30] sm:$0xff]
        %v3369 = vld [vmem:[%s17 + $0x38] sm:$0xff]
        %v3370 = vld [vmem:[%s18] sm:$0x1]
        %v3372 = vlaneseq
        %v3373 = vshrl.u32 %v3372, 7
        %v3374 = vsub.s32 0, %v3373
        %v3375 = vrot.slane %v3370, %v3374
        %v3378 = vsel %vm668, %v3361, 0
        %3380 = vmatprep.subr.mxu0 0.0
        %3381 = vmatpush1.msra.mxu0 %v3362
        %3382 = vmatprep.subr.mxu0 0.0
        %3383 = vmatpush1.msra.mxu0 %v3363
        %3384 = vmatprep.subr.mxu0 0.0
        %3385 = vmatpush1.msra.mxu0 %v3364
        %3386 = vmatprep.subr.mxu0 0.0
        %3387 = vmatpush1.msra.mxu0 %v3365
        %3388 = vmatprep.subr.mxu0 0.0
        %3389 = vmatpush1.msra.mxu0 %v3366
        %3390 = vmatprep.subr.mxu0 0.0
        %3391 = vmatpush1.msra.mxu0 %v3367
        %3392 = vmatprep.subr.mxu0 0.0
        %3393 = vmatpush1.msra.mxu0 %v3368
        %3394 = vmatprep.subr.mxu0 0.0
        %3395 = vmatpush1.msra.mxu0 %v3369
        %3396 = vmatprep.subr.mxu0 0.0
        %3397 = vmatpush1.msra.mxu0 0.0
        %3398 = vmatprep.subr.mxu0 0.0
        %3399 = vmatpush1.msra.mxu0 0.0
        %3400 = vmatprep.subr.mxu0 0.0
        %3401 = vmatpush1.msra.mxu0 0.0
        %3402 = vmatprep.subr.mxu0 0.0
        %3403 = vmatpush1.msra.mxu0 0.0
        %3404 = vmatprep.subr.mxu0 0.0
        %3405 = vmatpush1.msra.mxu0 0.0
        %3406 = vmatprep.subr.mxu0 0.0
        %3407 = vmatpush1.msra.mxu0 0.0
        %3408 = vmatprep.subr.mxu0 0.0
        %3409 = vmatpush1.msra.mxu0 0.0
        %3410 = vmatprep.subr.mxu0 0.0
        %3411 = vmatpush1.msra.mxu0 0.0
        %3412 = vmatprep.subr.mxu0 0.0
        %3413 = vmatpush1.msra.mxu0 0.0
        %3414 = vmatprep.subr.mxu0 0.0
        %3415 = vmatpush1.msra.mxu0 0.0
        %3416 = vmatprep.subr.mxu0 0.0
        %3417 = vmatpush1.msra.mxu0 0.0
        %3418 = vmatprep.subr.mxu0 0.0
        %3419 = vmatpush1.msra.mxu0 0.0
        %3420 = vmatprep.subr.mxu0 0.0
        %3421 = vmatpush1.msra.mxu0 0.0
        %3422 = vmatprep.subr.mxu0 0.0
        %3423 = vmatpush1.msra.mxu0 0.0
        %3424 = vmatprep.subr.mxu0 0.0
        %3425 = vmatpush1.msra.mxu0 0.0
        %3426 = vmatprep.subr.mxu0 0.0
        %3427 = vmatpush1.msra.mxu0 0.0
        %3428 = vmatprep.subr.mxu0 0.0
        %3429 = vmatpush1.msra.mxu0 0.0
        %3430 = vmatprep.subr.mxu0 0.0
        %3431 = vmatpush1.msra.mxu0 0.0
        %3432 = vmatprep.subr.mxu0 0.0
        %3433 = vmatpush1.msra.mxu0 0.0
        %3434 = vmatprep.subr.mxu0 0.0
        %3435 = vmatpush1.msra.mxu0 0.0
        %3436 = vmatprep.subr.mxu0 0.0
        %3437 = vmatpush1.msra.mxu0 0.0
        %3438 = vmatprep.subr.mxu0 0.0
        %3439 = vmatpush1.msra.mxu0 0.0
        %3440 = vmatprep.subr.mxu0 0.0
        %3441 = vmatpush1.msra.mxu0 0.0
        %3442 = vmatprep.subr.mxu0 0.0
        %3443 = vmatpush1.msra.mxu0 0.0
        %3444 = vmatprep.mubr.f32.mxu0 0.0
        %3445 = vmatmul.mubr.f32.gmra.mrb[0].mxu0 %v3378
        %v3446 = vpop.f32.mrb[0].mxu0
        %v3447 = vadd.f32 %v3375, %v3446
        %v3448 = vpop.f32.mrb[0].mxu0
        %3449 = vdwg.mxu0
        %v3450 = vld [vmem:[%s19] sm:$0x1]
        %v3451 = vld [vmem:[%s20] sm:$0x1]
        %v3452 = vsel %vm1587, %v3447, 0.0
        %3453 = vadd.xlane.f32.xlu0 %v3452
        %v3454 = vpop.xlane.xlu0 %3453
        %v3455 = vrcp.pop 32.0
        %v3456 = vmul.f32 %v3454, %v3455
        %v3457 = vsub.f32 %v3447, %v3456
        %v3458 = vmul.f32 %v3457, %v3457
        %v3459 = vsel %vm1587, %v3458, 0.0
        %3460 = vadd.xlane.f32.xlu0 %v3459
        %v3461 = vpop.xlane.xlu0 %3460
        %v3462 = vmul.f32 %v3461, %v3455
        %v3463 = vadd.f32 %v3462, 1e-05
        %v3464 = vrsqrt.pop %v3463
        %v3465 = vmul.f32 %v3457, %v3464
        %v3467 = vlaneseq
        %v3468 = vshrl.u32 %v3467, 7
        %v3469 = vsub.s32 0, %v3468
        %v3470 = vrot.slane %v3450, %v3469
        %v3472 = vmul.f32 %v3465, %v3470
        %v3474 = vlaneseq
        %v3475 = vshrl.u32 %v3474, 7
        %v3476 = vsub.s32 0, %v3475
        %v3477 = vrot.slane %v3451, %v3476
        %v3479 = vadd.f32 %v3472, %v3477
        %v3480 = vsub.f32 0.0, %v3479
        %v3481 = vmul.f32 %v3480, 1.442695
        %v3482 = vpow.pop %v3481
        %v3483 = vadd.f32 %v3482, 1.0
        %v3484 = vrcp.pop %v3483
        %v3485 = vmul.f32 1.0, %v3484
        %3486 = vst.msk [vmem:[%s647] sm:$0xff] %vm1587, %v3485
        %s3487 = sand.u32 %s489, 1
        %s3488 = scalar_lea.sflag [#allocation3], %s3487
        %s3489 = sand.u32 %s489, 1
        %s3490 = smul.addr %s3489, 8
        %s3491 = scalar_lea.vmem [#allocation2], %s3490
        // Predicated region
        $region105: #{tpu_custom_call.1} parent=103 // pred_check
          %p3492 = pneg %p499
        $region106: #{tpu_custom_call.1} parent=103 // pred_check_branch
          %3494 = sbr.rel (%p3492) target = $region108
        $region107: #{tpu_custom_call.1} parent=103 // pred_region
          %s3496 = ssub.s32 128, 128
          %3497 = vsyncadd %s3488, %s3496
          %s3498 = smul.addr %s35, 128
          %s3499 = scalar_lea.hbm %s21, %s3498
          %s3501 = sshll.u32 %s3491, 4
          %s3502 = int_to_ptr.vmem [resolvable:$true] %s3501
          %3504 = dma.vmem_to_hbm [thread:$0]  %s3502, 128, %s3499, %s3488
        $region108: #{tpu_custom_call.1} parent=103 // pred_fallthru
          _
      $region104: #{tpu_custom_call.1} parent=5 // pred_fallthru
        _
      %p3505 = scmp.le.s32.totalorder 2, %s30
      // Predicated region
      $region109: #{tpu_custom_call.1} parent=5 // pred_check
        %p3506 = pneg %p3505
      $region110: #{tpu_custom_call.1} parent=5 // pred_check_branch
        %3508 = sbr.rel (%p3506) target = $region112
      $region111: #{tpu_custom_call.1} parent=5 // pred_region
        %s3509 = ssub.s32 %s30, 2
        // Predicated region
        $region113: #{tpu_custom_call.1} parent=111 // pred_check
          %p3510 = pneg %p505
        $region114: #{tpu_custom_call.1} parent=111 // pred_check_branch
          %3512 = sbr.rel (%p3510) target = $region116
        $region115: #{tpu_custom_call.1} parent=111 // pred_region
          %s3513 = sand.u32 %s490, 1
          %s3514 = scalar_lea.sflag [#allocation3], %s3513
          %s3515 = sand.u32 %s490, 1
          %s3516 = smul.addr %s3515, 8
          %s3517 = scalar_lea.vmem [#allocation2], %s3516
          %3518 = dma.done %s3514, 128
        $region116: #{tpu_custom_call.1} parent=111 // pred_fallthru
          _
      $region112: #{tpu_custom_call.1} parent=5 // pred_fallthru
        _
    $region6: #{tpu_custom_call.1} parent=1 // loop_footer
      %s34 = sadd.s32 1, %s30
    $region7: #{tpu_custom_call.1} parent=1 // loop_footer_branch
      %29 = sbr.rel target = $region3
    $region8: #{tpu_custom_call.1} parent=1 // loop_exit
      _
    %3519 = vsyncpa [#allocation3], 1
    %s3520 = scalar_lea.sflag [#allocation3], 1
    %3521 = vsyncpa %s3520, 1

</llo_original>
